<compile_context>
chip_gen: v7x
topology: tpu7x:2x2x1
jax: 0.10.0
libtpu: 0.0.40
codegen_flags: <defaults>
</compile_context>

<pallas_src>
import functools

import jax
import jax.numpy as jnp
from jax.experimental import pallas as pl
from jax.experimental.pallas import tpu as pltpu

# ------------------------- model hyperparameters -------------------------
IN_CHANNELS = 4
IMG_SIZE = 16
PATCH_SIZE = 4
HIDDEN = 32
MLP_DIM = 64
NUM_LAYERS = 2
NUM_HEADS = 4
DIM_HEAD = HIDDEN // NUM_HEADS
N_TOKENS = (IMG_SIZE // PATCH_SIZE) ** 2            # 16
PATCH_DIM = IN_CHANNELS * PATCH_SIZE * PATCH_SIZE   # 64
LN_EPS = 1e-5

# MXU operand dtype (accumulation is always f32).  Set to jnp.float32 for
# strict f32 parity with the PyTorch reference.
MATMUL_DTYPE = jnp.bfloat16
# Set True to use exact division in the softmax (bit-closer to torch.softmax).
EXACT_SOFTMAX = False


# ------------------------------ helpers ----------------------------------
def _layernorm(x, gamma, beta):
    # x: (M, D) f32 ; gamma/beta: (1, D)
    mean = jnp.mean(x, axis=-1, keepdims=True)
    var = jnp.mean((x - mean) ** 2, axis=-1, keepdims=True)
    inv = jax.lax.rsqrt(var + LN_EPS)
    return (x - mean) * inv * gamma + beta


def _gelu_exact(x):
    # nn.GELU() default (exact erf form) -- kept exact for parity.
    return 0.5 * x * (1.0 + jax.lax.erf(x / jnp.sqrt(2.0).astype(x.dtype)))


def _mm(a, b):
    # MXU matmul: (possibly) bf16 operands, f32 accumulation.
    return jnp.dot(a.astype(MATMUL_DTYPE), b.astype(MATMUL_DTYPE),
                   preferred_element_type=jnp.float32)


def _mha(qkv, b_tile):
    """Multi-head self-attention on a flattened (b_tile*N, 3*D) qkv slab.

    All heads are handled as batched contractions (batch = b_tile*heads);
    head split/merge uses only leading-dim reshapes and last-two-dim
    transposes.  Matches Rearrange('b h (qkv l d) -> qkv b l h d') /
    'b h l d -> b l (h d)' of the PyTorch SABlock.
    """
    scale = DIM_HEAD ** -0.5

    def heads_T(cols):                                   # (bt*N, D) -> (bt*H, dh, N)
        t = cols.reshape(b_tile, N_TOKENS, HIDDEN)
        t = jnp.swapaxes(t, -1, -2)                      # (bt, D, N), minor transpose
        return t.reshape(b_tile * NUM_HEADS, DIM_HEAD, N_TOKENS)

    qT = heads_T(qkv[:, 0:HIDDEN])
    kT = heads_T(qkv[:, HIDDEN:2 * HIDDEN])
    vT = heads_T(qkv[:, 2 * HIDDEN:3 * HIDDEN])

    # S[b, n, m] = sum_d qT[b, d, n] * kT[b, d, m]   (no q un-transpose needed)
    s = jax.lax.dot_general(
        qT.astype(MATMUL_DTYPE), kT.astype(MATMUL_DTYPE),
        dimension_numbers=(((1,), (1,)), ((0,), (0,))),
        preferred_element_type=jnp.float32) * scale
    s = s - jnp.max(s, axis=-1, keepdims=True)
    p = jnp.exp(s)
    denom = jnp.sum(p, axis=-1, keepdims=True)
    if EXACT_SOFTMAX:
        p = p / denom
    else:
        p = p * pl.reciprocal(denom, approx=True)

    # O[b, n, d] = sum_m P[b, n, m] * vT[b, d, m]
    o = jax.lax.dot_general(
        p.astype(MATMUL_DTYPE), vT.astype(MATMUL_DTYPE),
        dimension_numbers=(((2,), (2,)), ((0,), (0,))),
        preferred_element_type=jnp.float32)              # (bt*H, N, dh)

    # merge heads back: 'b h l d -> b l (h d)'
    oT = jnp.swapaxes(o, -1, -2).reshape(b_tile, HIDDEN, N_TOKENS)
    return jnp.swapaxes(oT, -1, -2).reshape(b_tile * N_TOKENS, HIDDEN)


# ------------------------------ fused kernel ------------------------------
def vitdet_fused_kernel(patches_ref, pw_ref, posb_ref,
                        wqkv_ref, wproj_ref, w1_ref, w2_ref,
                        vecs_ref, fc1b_ref, fin_ref,
                        hid_ref, out_ref, *, b_tile):
    # ---- patch embedding (Conv2d k=s=patch == matmul over flattened patches);
    #      conv bias is folded into the pre-tiled positional table. ----
    pt = patches_ref[0]                                  # (bt*N, P) f32
    x = _mm(pt, pw_ref[...]) + posb_ref[...]             # (bt*N, D) f32

    # ---- transformer blocks (statically unrolled; activations stay in VMEM) ----
    for l in range(NUM_LAYERS):
        vecs = vecs_ref[l]                               # (6, HIDDEN) f32
        ln1g, ln1b = vecs[0:1], vecs[1:2]
        projb = vecs[2:3]
        ln2g, ln2b = vecs[3:4], vecs[4:5]
        fc2b = vecs[5:6]
        fc1b = fc1b_ref[l]                               # (1, MLP_DIM) f32

        # attention branch
        h = _layernorm(x, ln1g, ln1b)
        qkv = _mm(h, wqkv_ref[l])                        # (bt*N, 3D), qkv_bias=False
        attn = _mha(qkv, b_tile)
        attn = _mm(attn, wproj_ref[l]) + projb
        x = x + attn                                     # ls1 / drop_path = Identity

        # MLP branch
        h2 = _layernorm(x, ln2g, ln2b)
        m = _mm(h2, w1_ref[l]) + fc1b
        m = _gelu_exact(m)
        m = _mm(m, w2_ref[l]) + fc2b
        x = x + m                                        # ls2 / drop_path = Identity

        hid_ref[l, 0] = x                                # hidden_states_out[l]

    # ---- final LayerNorm ----
    out_ref[0] = _layernorm(x, fin_ref[0:1], fin_ref[1:2])


# ----------------------------- wrapper ------------------------------------
def _pick_b_tile(batch):
    """Whole batch in one grid step unless splitting keeps >= 256 rows/step.

    Rationale (perf review): v5e/v6e have a single TensorCore, so splitting the
    batch only adds ~0.35 us per extra grid step; v7x megacore sharding only
    pays when each core's slab still feeds the 256-wide MXU.  VMEM does not
    bind here (weights <100 KB, activations <1 MiB even at b_tile=16).
    """
    rows_target = 256
    bt_target = max(1, rows_target // N_TOKENS)          # 16 for N=16
    if batch <= 2 * bt_target:
        return batch                                     # single grid step
    for bt in range(bt_target, 0, -1):                   # largest divisor <= target
        if batch % bt == 0:
            return bt
    return batch


def vitdet_forward(x_nchw, params, b_tile=None):
    """x_nchw: (B, C, H, W) float32. Returns (final_feats, hidden_states_out)."""
    B, C, H, W = x_nchw.shape
    p = PATCH_SIZE
    if b_tile is None:
        b_tile = _pick_b_tile(B)
    if B % b_tile:
        raise ValueError(f"b_tile={b_tile} must divide batch={B}")
    num_tiles = B // b_tile
    m_rows = b_tile * N_TOKENS

    # Conv2d(kernel=stride=patch) == patch extraction ((c, ph, pw) order) + matmul.
    patches = x_nchw.reshape(B, C, H // p, p, W // p, p)
    patches = patches.transpose(0, 2, 4, 1, 3, 5).reshape(
        num_tiles, m_rows, PATCH_DIM)

    # Fold the conv bias into the positional embedding and pre-tile to the
    # flattened (b_tile*N, HIDDEN) slab (plain VPU add in the kernel).
    posb = jnp.tile(params["pos_embed"] + params["patch_b"], (b_tile, 1))

    # Weights go to the MXU operand dtype once, in HBM (halves weight DMA too).
    mmdt = MATMUL_DTYPE
    pw = params["patch_w"].astype(mmdt)
    wqkv = params["wqkv"].astype(mmdt)
    wproj = params["wproj"].astype(mmdt)
    w1 = params["w1"].astype(mmdt)
    w2 = params["w2"].astype(mmdt)

    kernel = functools.partial(vitdet_fused_kernel, b_tile=b_tile)

    def full(shape):
        # Whole array as one resident block (constant index_map).
        return pl.BlockSpec(shape, lambda *_: (0,) * len(shape))

    hid_shape = (NUM_LAYERS, num_tiles, m_rows, HIDDEN)
    out_shape = (num_tiles, m_rows, HIDDEN)

    hid, out = pl.pallas_call(
        kernel,
        out_shape=(jax.ShapeDtypeStruct(hid_shape, jnp.float32),
                   jax.ShapeDtypeStruct(out_shape, jnp.float32)),
        grid=(num_tiles,),
        in_specs=[
            pl.BlockSpec((1, m_rows, PATCH_DIM), lambda t: (t, 0, 0)),  # patches
            full((PATCH_DIM, HIDDEN)),                 # patch-embed weight
            full((m_rows, HIDDEN)),                    # pos embed + conv bias (tiled)
            full((NUM_LAYERS, HIDDEN, 3 * HIDDEN)),    # qkv W (qkv_bias=False)
            full((NUM_LAYERS, HIDDEN, HIDDEN)),        # proj W
            full((NUM_LAYERS, HIDDEN, MLP_DIM)),       # fc1 W
            full((NUM_LAYERS, MLP_DIM, HIDDEN)),       # fc2 W
            full((NUM_LAYERS, 6, HIDDEN)),             # ln1g, ln1b, projb, ln2g, ln2b, fc2b
            full((NUM_LAYERS, 1, MLP_DIM)),            # fc1 bias
            full((2, HIDDEN)),                         # final norm gamma, beta
        ],
        out_specs=(
            pl.BlockSpec((NUM_LAYERS, 1, m_rows, HIDDEN), lambda t: (0, t, 0, 0)),
            pl.BlockSpec((1, m_rows, HIDDEN), lambda t: (t, 0, 0)),
        ),
        compiler_params=pltpu.CompilerParams(dimension_semantics=("parallel",)),
    )(patches, pw, posb, wqkv, wproj, w1, w2,
      params["vecs"], params["fc1_b"], params["final_ln"])

    final = out.reshape(B, N_TOKENS, HIDDEN)
    hidden_states = list(hid.reshape(NUM_LAYERS, B, N_TOKENS, HIDDEN))
    # classification=False -> no cls token / head
    return final, hidden_states


# --------------------------- parameter init ---------------------------------
def init_params(key):
    ks = jax.random.split(key, 2 + 4 * NUM_LAYERS)

    def nrm(k, shape):
        return 0.02 * jax.random.normal(k, shape, jnp.float32)

    wqkv, wproj, w1, w2 = [], [], [], []
    for i in range(NUM_LAYERS):
        base = 2 + 4 * i
        # qkv columns assumed [Wq|Wk|Wv], head-contiguous within each block
        # (matches MONAI's Rearrange 'b h (qkv l d) -> qkv b l h d' ordering).
        wqkv.append(nrm(ks[base + 0], (HIDDEN, 3 * HIDDEN)))
        wproj.append(nrm(ks[base + 1], (HIDDEN, HIDDEN)))
        w1.append(nrm(ks[base + 2], (HIDDEN, MLP_DIM)))
        w2.append(nrm(ks[base + 3], (MLP_DIM, HIDDEN)))

    L = NUM_LAYERS
    ones = jnp.ones(HIDDEN, jnp.float32)
    zeros = jnp.zeros(HIDDEN, jnp.float32)
    # per-layer small vectors packed as (L, 6, HIDDEN):
    # rows: 0 ln1_gamma, 1 ln1_beta, 2 proj_bias, 3 ln2_gamma, 4 ln2_beta, 5 fc2_bias
    vecs = jnp.stack([jnp.stack([ones, zeros, zeros, ones, zeros, zeros])
                      for _ in range(L)])

    params = {
        # Conv2d weight (D, C, ph, pw) flattened to (C*ph*pw, D) for the matmul.
        "patch_w": nrm(ks[0], (PATCH_DIM, HIDDEN)),
        "patch_b": jnp.zeros((1, HIDDEN), jnp.float32),
        "pos_embed": nrm(ks[1], (N_TOKENS, HIDDEN)),
        "wqkv": jnp.stack(wqkv),                         # (L, D, 3D)
        "wproj": jnp.stack(wproj),                       # (L, D, D)
        "w1": jnp.stack(w1),                             # (L, D, MLP)
        "w2": jnp.stack(w2),                             # (L, MLP, D)
        "vecs": vecs,                                    # (L, 6, HIDDEN)
        "fc1_b": jnp.zeros((L, 1, MLP_DIM), jnp.float32),
        "final_ln": jnp.stack([ones, zeros]),            # (2, HIDDEN)
    }
    return params


# ------------------------------- main ---------------------------------------
if __name__ == "__main__":
    key = jax.random.PRNGKey(0)
    pkey, xkey = jax.random.split(key)
    params = init_params(pkey)
    # layout: input is NCHW, matching the PyTorch module's (B, C, H, W).
    x = jax.random.normal(xkey, (2, IN_CHANNELS, IMG_SIZE, IMG_SIZE), jnp.float32)

    out, hidden_states = vitdet_forward(x, params)
    out = jax.block_until_ready(out)
    for h in hidden_states:
        jax.block_until_ready(h)

    assert out.shape == (2, N_TOKENS, HIDDEN)
    assert len(hidden_states) == NUM_LAYERS
    assert all(h.shape == (2, N_TOKENS, HIDDEN) for h in hidden_states)
    assert bool(jnp.all(jnp.isfinite(out)))
    # TODO(synk): window attention (window_size>0), rel-pos embeddings, qk-norm,
    # LayerScale, Dropout and DropPath are inactive under the default config
    # used here and are not implemented.
    print("KERNEL_OK")
</pallas_src>

<mosaic_0001>
module attributes {stable_mosaic.version = 11 : i64} {
  func.func @vitdet_fused_kernel(%arg0: i32, %arg1: memref<1x32x64xf32, #tpu.memory_space<vmem>>, %arg2: memref<64x32xbf16, #tpu.memory_space<vmem>>, %arg3: memref<32x32xf32, #tpu.memory_space<vmem>>, %arg4: memref<2x32x96xbf16, #tpu.memory_space<vmem>>, %arg5: memref<2x32x32xbf16, #tpu.memory_space<vmem>>, %arg6: memref<2x32x64xbf16, #tpu.memory_space<vmem>>, %arg7: memref<2x64x32xbf16, #tpu.memory_space<vmem>>, %arg8: memref<2x6x32xf32, #tpu.memory_space<vmem>>, %arg9: memref<2x1x64xf32, #tpu.memory_space<vmem>>, %arg10: memref<2x32xf32, #tpu.memory_space<vmem>>, %arg11: memref<2x1x32x32xf32, #tpu.memory_space<vmem>>, %arg12: memref<1x32x32xf32, #tpu.memory_space<vmem>>) attributes {dimension_semantics = [#tpu.dimension_semantics<parallel>], iteration_bounds = array<i64: 1>, scalar_prefetch = 0 : i64, scratch_operands = 0 : i64, tpu.core_type = #tpu.core_type<tc>, window_params = [{transform_indices = @transform_0, window_bounds = array<i64: 1, 32, 64>}, {pipeline_mode = #tpu.pipeline_mode<synchronous>, transform_indices = @transform_1, window_bounds = array<i64: 64, 32>}, {pipeline_mode = #tpu.pipeline_mode<synchronous>, transform_indices = @transform_2, window_bounds = array<i64: 32, 32>}, {pipeline_mode = #tpu.pipeline_mode<synchronous>, transform_indices = @transform_3, window_bounds = array<i64: 2, 32, 96>}, {pipeline_mode = #tpu.pipeline_mode<synchronous>, transform_indices = @transform_4, window_bounds = array<i64: 2, 32, 32>}, {pipeline_mode = #tpu.pipeline_mode<synchronous>, transform_indices = @transform_5, window_bounds = array<i64: 2, 32, 64>}, {pipeline_mode = #tpu.pipeline_mode<synchronous>, transform_indices = @transform_6, window_bounds = array<i64: 2, 64, 32>}, {pipeline_mode = #tpu.pipeline_mode<synchronous>, transform_indices = @transform_7, window_bounds = array<i64: 2, 6, 32>}, {pipeline_mode = #tpu.pipeline_mode<synchronous>, transform_indices = @transform_8, window_bounds = array<i64: 2, 1, 64>}, {pipeline_mode = #tpu.pipeline_mode<synchronous>, transform_indices = @transform_9, window_bounds = array<i64: 2, 32>}, {transform_indices = @transform_10, window_bounds = array<i64: 2, 1, 32, 32>}, {transform_indices = @transform_11, window_bounds = array<i64: 1, 32, 32>}]} {
    %c0 = arith.constant 0 : index
    %c0_0 = arith.constant 0 : index
    %c0_1 = arith.constant 0 : index
    %0 = vector.load %arg1[%c0, %c0_0, %c0_1] : memref<1x32x64xf32, #tpu.memory_space<vmem>>, vector<1x32x64xf32>
    %1 = vector.shape_cast %0 : vector<1x32x64xf32> to vector<32x64xf32>
    %c0_2 = arith.constant 0 : index
    %c0_3 = arith.constant 0 : index
    %2 = vector.load %arg2[%c0_2, %c0_3] : memref<64x32xbf16, #tpu.memory_space<vmem>>, vector<64x32xbf16>
    %3 = arith.truncf %1 : vector<32x64xf32> to vector<32x64xbf16>
    %cst = arith.constant dense<0.000000e+00> : vector<32x32xf32>
    %4 = tpu.matmul %3, %2, %cst {dimension_numbers = #tpu.dot_dimension_numbers<[1], [0], [0], [1], [0, 0, 1, 1], [], []>} : vector<32x64xbf16>, vector<64x32xbf16>, vector<32x32xf32> -> vector<32x32xf32>
    %c0_4 = arith.constant 0 : index
    %c0_5 = arith.constant 0 : index
    %5 = vector.load %arg3[%c0_4, %c0_5] : memref<32x32xf32, #tpu.memory_space<vmem>>, vector<32x32xf32>
    %6 = arith.addf %4, %5 : vector<32x32xf32>
    %c0_6 = arith.constant 0 : index
    %c0_7 = arith.constant 0 : index
    %c0_8 = arith.constant 0 : index
    %7 = vector.load %arg8[%c0_6, %c0_7, %c0_8] : memref<2x6x32xf32, #tpu.memory_space<vmem>>, vector<1x6x32xf32>
    %8 = vector.shape_cast %7 : vector<1x6x32xf32> to vector<6x32xf32>
    %9 = vector.extract_strided_slice %8 {offsets = [0, 0], sizes = [1, 32], strides = [1, 1]} : vector<6x32xf32> to vector<1x32xf32>
    %10 = vector.extract_strided_slice %8 {offsets = [1, 0], sizes = [1, 32], strides = [1, 1]} : vector<6x32xf32> to vector<1x32xf32>
    %11 = vector.extract_strided_slice %8 {offsets = [2, 0], sizes = [1, 32], strides = [1, 1]} : vector<6x32xf32> to vector<1x32xf32>
    %12 = vector.extract_strided_slice %8 {offsets = [3, 0], sizes = [1, 32], strides = [1, 1]} : vector<6x32xf32> to vector<1x32xf32>
    %13 = vector.extract_strided_slice %8 {offsets = [4, 0], sizes = [1, 32], strides = [1, 1]} : vector<6x32xf32> to vector<1x32xf32>
    %14 = vector.extract_strided_slice %8 {offsets = [5, 0], sizes = [1, 32], strides = [1, 1]} : vector<6x32xf32> to vector<1x32xf32>
    %c0_9 = arith.constant 0 : index
    %c0_10 = arith.constant 0 : index
    %c0_11 = arith.constant 0 : index
    %15 = vector.load %arg9[%c0_9, %c0_10, %c0_11] : memref<2x1x64xf32, #tpu.memory_space<vmem>>, vector<1x1x64xf32>
    %16 = vector.shape_cast %15 : vector<1x1x64xf32> to vector<1x64xf32>
    %cst_12 = arith.constant dense<0.000000e+00> : vector<32xf32>
    %17 = vector.multi_reduction <add>, %6, %cst_12 [1] : vector<32x32xf32> to vector<32xf32>
    %18 = vector.shape_cast %17 : vector<32xf32> to vector<32x1xf32>
    %cst_13 = arith.constant 3.200000e+01 : f32
    %19 = vector.broadcast %cst_13 : f32 to vector<32x1xf32>
    %20 = arith.divf %18, %19 : vector<32x1xf32>
    %21 = vector.broadcast %20 : vector<32x1xf32> to vector<32x32xf32>
    %22 = arith.subf %6, %21 : vector<32x32xf32>
    %23 = arith.mulf %22, %22 : vector<32x32xf32>
    %cst_14 = arith.constant dense<0.000000e+00> : vector<32xf32>
    %24 = vector.multi_reduction <add>, %23, %cst_14 [1] : vector<32x32xf32> to vector<32xf32>
    %25 = vector.shape_cast %24 : vector<32xf32> to vector<32x1xf32>
    %cst_15 = arith.constant 3.200000e+01 : f32
    %26 = vector.broadcast %cst_15 : f32 to vector<32x1xf32>
    %27 = arith.divf %25, %26 : vector<32x1xf32>
    %cst_16 = arith.constant 9.99999974E-6 : f32
    %28 = vector.broadcast %cst_16 : f32 to vector<32x1xf32>
    %29 = arith.addf %27, %28 : vector<32x1xf32>
    %30 = math.rsqrt %29 : vector<32x1xf32>
    %31 = vector.broadcast %20 : vector<32x1xf32> to vector<32x32xf32>
    %32 = arith.subf %6, %31 : vector<32x32xf32>
    %33 = vector.broadcast %30 : vector<32x1xf32> to vector<32x32xf32>
    %34 = arith.mulf %32, %33 : vector<32x32xf32>
    %35 = vector.broadcast %9 : vector<1x32xf32> to vector<32x32xf32>
    %36 = arith.mulf %34, %35 : vector<32x32xf32>
    %37 = vector.broadcast %10 : vector<1x32xf32> to vector<32x32xf32>
    %38 = arith.addf %36, %37 : vector<32x32xf32>
    %c0_17 = arith.constant 0 : index
    %c0_18 = arith.constant 0 : index
    %c0_19 = arith.constant 0 : index
    %39 = vector.load %arg4[%c0_17, %c0_18, %c0_19] : memref<2x32x96xbf16, #tpu.memory_space<vmem>>, vector<1x32x96xbf16>
    %40 = vector.shape_cast %39 : vector<1x32x96xbf16> to vector<32x96xbf16>
    %41 = arith.truncf %38 : vector<32x32xf32> to vector<32x32xbf16>
    %cst_20 = arith.constant dense<0.000000e+00> : vector<32x96xf32>
    %42 = tpu.matmul %41, %40, %cst_20 {dimension_numbers = #tpu.dot_dimension_numbers<[1], [0], [0], [1], [0, 0, 1, 1], [], []>} : vector<32x32xbf16>, vector<32x96xbf16>, vector<32x96xf32> -> vector<32x96xf32>
    %43 = vector.extract_strided_slice %42 {offsets = [0, 0], sizes = [32, 32], strides = [1, 1]} : vector<32x96xf32> to vector<32x32xf32>
    %44 = vector.shape_cast %43 : vector<32x32xf32> to vector<2x16x32xf32>
    %45 = tpu.transpose %44, [0, 2, 1] : vector<2x16x32xf32> -> vector<2x32x16xf32>
    %46 = vector.shape_cast %45 : vector<2x32x16xf32> to vector<8x8x16xf32>
    %47 = vector.extract_strided_slice %42 {offsets = [0, 32], sizes = [32, 32], strides = [1, 1]} : vector<32x96xf32> to vector<32x32xf32>
    %48 = vector.shape_cast %47 : vector<32x32xf32> to vector<2x16x32xf32>
    %49 = tpu.transpose %48, [0, 2, 1] : vector<2x16x32xf32> -> vector<2x32x16xf32>
    %50 = vector.shape_cast %49 : vector<2x32x16xf32> to vector<8x8x16xf32>
    %51 = vector.extract_strided_slice %42 {offsets = [0, 64], sizes = [32, 32], strides = [1, 1]} : vector<32x96xf32> to vector<32x32xf32>
    %52 = vector.shape_cast %51 : vector<32x32xf32> to vector<2x16x32xf32>
    %53 = tpu.transpose %52, [0, 2, 1] : vector<2x16x32xf32> -> vector<2x32x16xf32>
    %54 = vector.shape_cast %53 : vector<2x32x16xf32> to vector<8x8x16xf32>
    %55 = arith.truncf %46 : vector<8x8x16xf32> to vector<8x8x16xbf16>
    %56 = arith.truncf %50 : vector<8x8x16xf32> to vector<8x8x16xbf16>
    %cst_21 = arith.constant dense<0.000000e+00> : vector<8x16x16xf32>
    %57 = tpu.matmul %55, %56, %cst_21 {dimension_numbers = #tpu.dot_dimension_numbers<[1], [1], [2], [2], [0, 0, 0, 2, 1, 2], [0], [0]>} : vector<8x8x16xbf16>, vector<8x8x16xbf16>, vector<8x16x16xf32> -> vector<8x16x16xf32>
    %cst_22 = arith.constant 0.353553385 : f32
    %58 = vector.broadcast %cst_22 : f32 to vector<8x16x16xf32>
    %59 = arith.mulf %57, %58 : vector<8x16x16xf32>
    %cst_23 = arith.constant dense<0xFF800000> : vector<8x16xf32>
    %60 = vector.multi_reduction <maximumf>, %59, %cst_23 [2] : vector<8x16x16xf32> to vector<8x16xf32>
    %61 = vector.shape_cast %60 : vector<8x16xf32> to vector<8x16x1xf32>
    %62 = vector.broadcast %61 : vector<8x16x1xf32> to vector<8x16x16xf32>
    %63 = arith.subf %59, %62 : vector<8x16x16xf32>
    %64 = math.exp %63 : vector<8x16x16xf32>
    %cst_24 = arith.constant dense<0.000000e+00> : vector<8x16xf32>
    %65 = vector.multi_reduction <add>, %64, %cst_24 [2] : vector<8x16x16xf32> to vector<8x16xf32>
    %66 = vector.shape_cast %65 : vector<8x16xf32> to vector<8x16x1xf32>
    %67 = tpu.reciprocal %66 {approx = true} : vector<8x16x1xf32> -> vector<8x16x1xf32>
    %68 = vector.broadcast %67 : vector<8x16x1xf32> to vector<8x16x16xf32>
    %69 = arith.mulf %64, %68 : vector<8x16x16xf32>
    %70 = arith.truncf %69 : vector<8x16x16xf32> to vector<8x16x16xbf16>
    %71 = arith.truncf %54 : vector<8x8x16xf32> to vector<8x8x16xbf16>
    %cst_25 = arith.constant dense<0.000000e+00> : vector<8x16x8xf32>
    %72 = tpu.matmul %70, %71, %cst_25 {dimension_numbers = #tpu.dot_dimension_numbers<[2], [2], [1], [1], [0, 0, 0, 1, 1, 1], [0], [0]>} : vector<8x16x16xbf16>, vector<8x8x16xbf16>, vector<8x16x8xf32> -> vector<8x16x8xf32>
    %73 = tpu.transpose %72, [0, 2, 1] : vector<8x16x8xf32> -> vector<8x8x16xf32>
    %74 = vector.shape_cast %73 : vector<8x8x16xf32> to vector<2x32x16xf32>
    %75 = tpu.transpose %74, [0, 2, 1] : vector<2x32x16xf32> -> vector<2x16x32xf32>
    %76 = vector.shape_cast %75 : vector<2x16x32xf32> to vector<32x32xf32>
    %c0_26 = arith.constant 0 : index
    %c0_27 = arith.constant 0 : index
    %c0_28 = arith.constant 0 : index
    %77 = vector.load %arg5[%c0_26, %c0_27, %c0_28] : memref<2x32x32xbf16, #tpu.memory_space<vmem>>, vector<1x32x32xbf16>
    %78 = vector.shape_cast %77 : vector<1x32x32xbf16> to vector<32x32xbf16>
    %79 = arith.truncf %76 : vector<32x32xf32> to vector<32x32xbf16>
    %cst_29 = arith.constant dense<0.000000e+00> : vector<32x32xf32>
    %80 = tpu.matmul %79, %78, %cst_29 {dimension_numbers = #tpu.dot_dimension_numbers<[1], [0], [0], [1], [0, 0, 1, 1], [], []>} : vector<32x32xbf16>, vector<32x32xbf16>, vector<32x32xf32> -> vector<32x32xf32>
    %81 = vector.broadcast %11 : vector<1x32xf32> to vector<32x32xf32>
    %82 = arith.addf %80, %81 : vector<32x32xf32>
    %83 = arith.addf %6, %82 : vector<32x32xf32>
    %cst_30 = arith.constant dense<0.000000e+00> : vector<32xf32>
    %84 = vector.multi_reduction <add>, %83, %cst_30 [1] : vector<32x32xf32> to vector<32xf32>
    %85 = vector.shape_cast %84 : vector<32xf32> to vector<32x1xf32>
    %cst_31 = arith.constant 3.200000e+01 : f32
    %86 = vector.broadcast %cst_31 : f32 to vector<32x1xf32>
    %87 = arith.divf %85, %86 : vector<32x1xf32>
    %88 = vector.broadcast %87 : vector<32x1xf32> to vector<32x32xf32>
    %89 = arith.subf %83, %88 : vector<32x32xf32>
    %90 = arith.mulf %89, %89 : vector<32x32xf32>
    %cst_32 = arith.constant dense<0.000000e+00> : vector<32xf32>
    %91 = vector.multi_reduction <add>, %90, %cst_32 [1] : vector<32x32xf32> to vector<32xf32>
    %92 = vector.shape_cast %91 : vector<32xf32> to vector<32x1xf32>
    %cst_33 = arith.constant 3.200000e+01 : f32
    %93 = vector.broadcast %cst_33 : f32 to vector<32x1xf32>
    %94 = arith.divf %92, %93 : vector<32x1xf32>
    %cst_34 = arith.constant 9.99999974E-6 : f32
    %95 = vector.broadcast %cst_34 : f32 to vector<32x1xf32>
    %96 = arith.addf %94, %95 : vector<32x1xf32>
    %97 = math.rsqrt %96 : vector<32x1xf32>
    %98 = vector.broadcast %87 : vector<32x1xf32> to vector<32x32xf32>
    %99 = arith.subf %83, %98 : vector<32x32xf32>
    %100 = vector.broadcast %97 : vector<32x1xf32> to vector<32x32xf32>
    %101 = arith.mulf %99, %100 : vector<32x32xf32>
    %102 = vector.broadcast %12 : vector<1x32xf32> to vector<32x32xf32>
    %103 = arith.mulf %101, %102 : vector<32x32xf32>
    %104 = vector.broadcast %13 : vector<1x32xf32> to vector<32x32xf32>
    %105 = arith.addf %103, %104 : vector<32x32xf32>
    %c0_35 = arith.constant 0 : index
    %c0_36 = arith.constant 0 : index
    %c0_37 = arith.constant 0 : index
    %106 = vector.load %arg6[%c0_35, %c0_36, %c0_37] : memref<2x32x64xbf16, #tpu.memory_space<vmem>>, vector<1x32x64xbf16>
    %107 = vector.shape_cast %106 : vector<1x32x64xbf16> to vector<32x64xbf16>
    %108 = arith.truncf %105 : vector<32x32xf32> to vector<32x32xbf16>
    %cst_38 = arith.constant dense<0.000000e+00> : vector<32x64xf32>
    %109 = tpu.matmul %108, %107, %cst_38 {dimension_numbers = #tpu.dot_dimension_numbers<[1], [0], [0], [1], [0, 0, 1, 1], [], []>} : vector<32x32xbf16>, vector<32x64xbf16>, vector<32x64xf32> -> vector<32x64xf32>
    %110 = vector.broadcast %16 : vector<1x64xf32> to vector<32x64xf32>
    %111 = arith.addf %109, %110 : vector<32x64xf32>
    %cst_39 = arith.constant 5.000000e-01 : f32
    %112 = vector.broadcast %cst_39 : f32 to vector<32x64xf32>
    %113 = arith.mulf %112, %111 : vector<32x64xf32>
    %cst_40 = arith.constant 2.000000e+00 : f32
    %114 = math.sqrt %cst_40 : f32
    %115 = vector.broadcast %114 : f32 to vector<32x64xf32>
    %116 = arith.divf %111, %115 : vector<32x64xf32>
    %117 = math.erf %116 : vector<32x64xf32>
    %cst_41 = arith.constant 1.000000e+00 : f32
    %118 = vector.broadcast %cst_41 : f32 to vector<32x64xf32>
    %119 = arith.addf %118, %117 : vector<32x64xf32>
    %120 = arith.mulf %113, %119 : vector<32x64xf32>
    %c0_42 = arith.constant 0 : index
    %c0_43 = arith.constant 0 : index
    %c0_44 = arith.constant 0 : index
    %121 = vector.load %arg7[%c0_42, %c0_43, %c0_44] : memref<2x64x32xbf16, #tpu.memory_space<vmem>>, vector<1x64x32xbf16>
    %122 = vector.shape_cast %121 : vector<1x64x32xbf16> to vector<64x32xbf16>
    %123 = arith.truncf %120 : vector<32x64xf32> to vector<32x64xbf16>
    %cst_45 = arith.constant dense<0.000000e+00> : vector<32x32xf32>
    %124 = tpu.matmul %123, %122, %cst_45 {dimension_numbers = #tpu.dot_dimension_numbers<[1], [0], [0], [1], [0, 0, 1, 1], [], []>} : vector<32x64xbf16>, vector<64x32xbf16>, vector<32x32xf32> -> vector<32x32xf32>
    %125 = vector.broadcast %14 : vector<1x32xf32> to vector<32x32xf32>
    %126 = arith.addf %124, %125 : vector<32x32xf32>
    %127 = arith.addf %83, %126 : vector<32x32xf32>
    %c0_46 = arith.constant 0 : index
    %c0_47 = arith.constant 0 : index
    %c0_48 = arith.constant 0 : index
    %c0_49 = arith.constant 0 : index
    %128 = vector.load %arg11[%c0_46, %c0_47, %c0_48, %c0_49] : memref<2x1x32x32xf32, #tpu.memory_space<vmem>>, vector<1x1x32x32xf32>
    %129 = vector.shape_cast %128 : vector<1x1x32x32xf32> to vector<32x32xf32>
    %130 = vector.shape_cast %127 : vector<32x32xf32> to vector<1x1x32x32xf32>
    tpu.vector_store %arg11[%c0_46, %c0_47, %c0_48, %c0_49], %130 {strides = array<i32>} : memref<2x1x32x32xf32, #tpu.memory_space<vmem>>, vector<1x1x32x32xf32>,
    %c1 = arith.constant 1 : index
    %c0_50 = arith.constant 0 : index
    %c0_51 = arith.constant 0 : index
    %131 = vector.load %arg8[%c1, %c0_50, %c0_51] : memref<2x6x32xf32, #tpu.memory_space<vmem>>, vector<1x6x32xf32>
    %132 = vector.shape_cast %131 : vector<1x6x32xf32> to vector<6x32xf32>
    %133 = vector.extract_strided_slice %132 {offsets = [0, 0], sizes = [1, 32], strides = [1, 1]} : vector<6x32xf32> to vector<1x32xf32>
    %134 = vector.extract_strided_slice %132 {offsets = [1, 0], sizes = [1, 32], strides = [1, 1]} : vector<6x32xf32> to vector<1x32xf32>
    %135 = vector.extract_strided_slice %132 {offsets = [2, 0], sizes = [1, 32], strides = [1, 1]} : vector<6x32xf32> to vector<1x32xf32>
    %136 = vector.extract_strided_slice %132 {offsets = [3, 0], sizes = [1, 32], strides = [1, 1]} : vector<6x32xf32> to vector<1x32xf32>
    %137 = vector.extract_strided_slice %132 {offsets = [4, 0], sizes = [1, 32], strides = [1, 1]} : vector<6x32xf32> to vector<1x32xf32>
    %138 = vector.extract_strided_slice %132 {offsets = [5, 0], sizes = [1, 32], strides = [1, 1]} : vector<6x32xf32> to vector<1x32xf32>
    %c1_52 = arith.constant 1 : index
    %c0_53 = arith.constant 0 : index
    %c0_54 = arith.constant 0 : index
    %139 = vector.load %arg9[%c1_52, %c0_53, %c0_54] : memref<2x1x64xf32, #tpu.memory_space<vmem>>, vector<1x1x64xf32>
    %140 = vector.shape_cast %139 : vector<1x1x64xf32> to vector<1x64xf32>
    %cst_55 = arith.constant dense<0.000000e+00> : vector<32xf32>
    %141 = vector.multi_reduction <add>, %127, %cst_55 [1] : vector<32x32xf32> to vector<32xf32>
    %142 = vector.shape_cast %141 : vector<32xf32> to vector<32x1xf32>
    %cst_56 = arith.constant 3.200000e+01 : f32
    %143 = vector.broadcast %cst_56 : f32 to vector<32x1xf32>
    %144 = arith.divf %142, %143 : vector<32x1xf32>
    %145 = vector.broadcast %144 : vector<32x1xf32> to vector<32x32xf32>
    %146 = arith.subf %127, %145 : vector<32x32xf32>
    %147 = arith.mulf %146, %146 : vector<32x32xf32>
    %cst_57 = arith.constant dense<0.000000e+00> : vector<32xf32>
    %148 = vector.multi_reduction <add>, %147, %cst_57 [1] : vector<32x32xf32> to vector<32xf32>
    %149 = vector.shape_cast %148 : vector<32xf32> to vector<32x1xf32>
    %cst_58 = arith.constant 3.200000e+01 : f32
    %150 = vector.broadcast %cst_58 : f32 to vector<32x1xf32>
    %151 = arith.divf %149, %150 : vector<32x1xf32>
    %cst_59 = arith.constant 9.99999974E-6 : f32
    %152 = vector.broadcast %cst_59 : f32 to vector<32x1xf32>
    %153 = arith.addf %151, %152 : vector<32x1xf32>
    %154 = math.rsqrt %153 : vector<32x1xf32>
    %155 = vector.broadcast %144 : vector<32x1xf32> to vector<32x32xf32>
    %156 = arith.subf %127, %155 : vector<32x32xf32>
    %157 = vector.broadcast %154 : vector<32x1xf32> to vector<32x32xf32>
    %158 = arith.mulf %156, %157 : vector<32x32xf32>
    %159 = vector.broadcast %133 : vector<1x32xf32> to vector<32x32xf32>
    %160 = arith.mulf %158, %159 : vector<32x32xf32>
    %161 = vector.broadcast %134 : vector<1x32xf32> to vector<32x32xf32>
    %162 = arith.addf %160, %161 : vector<32x32xf32>
    %c1_60 = arith.constant 1 : index
    %c0_61 = arith.constant 0 : index
    %c0_62 = arith.constant 0 : index
    %163 = vector.load %arg4[%c1_60, %c0_61, %c0_62] : memref<2x32x96xbf16, #tpu.memory_space<vmem>>, vector<1x32x96xbf16>
    %164 = vector.shape_cast %163 : vector<1x32x96xbf16> to vector<32x96xbf16>
    %165 = arith.truncf %162 : vector<32x32xf32> to vector<32x32xbf16>
    %cst_63 = arith.constant dense<0.000000e+00> : vector<32x96xf32>
    %166 = tpu.matmul %165, %164, %cst_63 {dimension_numbers = #tpu.dot_dimension_numbers<[1], [0], [0], [1], [0, 0, 1, 1], [], []>} : vector<32x32xbf16>, vector<32x96xbf16>, vector<32x96xf32> -> vector<32x96xf32>
    %167 = vector.extract_strided_slice %166 {offsets = [0, 0], sizes = [32, 32], strides = [1, 1]} : vector<32x96xf32> to vector<32x32xf32>
    %168 = vector.shape_cast %167 : vector<32x32xf32> to vector<2x16x32xf32>
    %169 = tpu.transpose %168, [0, 2, 1] : vector<2x16x32xf32> -> vector<2x32x16xf32>
    %170 = vector.shape_cast %169 : vector<2x32x16xf32> to vector<8x8x16xf32>
    %171 = vector.extract_strided_slice %166 {offsets = [0, 32], sizes = [32, 32], strides = [1, 1]} : vector<32x96xf32> to vector<32x32xf32>
    %172 = vector.shape_cast %171 : vector<32x32xf32> to vector<2x16x32xf32>
    %173 = tpu.transpose %172, [0, 2, 1] : vector<2x16x32xf32> -> vector<2x32x16xf32>
    %174 = vector.shape_cast %173 : vector<2x32x16xf32> to vector<8x8x16xf32>
    %175 = vector.extract_strided_slice %166 {offsets = [0, 64], sizes = [32, 32], strides = [1, 1]} : vector<32x96xf32> to vector<32x32xf32>
    %176 = vector.shape_cast %175 : vector<32x32xf32> to vector<2x16x32xf32>
    %177 = tpu.transpose %176, [0, 2, 1] : vector<2x16x32xf32> -> vector<2x32x16xf32>
    %178 = vector.shape_cast %177 : vector<2x32x16xf32> to vector<8x8x16xf32>
    %179 = arith.truncf %170 : vector<8x8x16xf32> to vector<8x8x16xbf16>
    %180 = arith.truncf %174 : vector<8x8x16xf32> to vector<8x8x16xbf16>
    %cst_64 = arith.constant dense<0.000000e+00> : vector<8x16x16xf32>
    %181 = tpu.matmul %179, %180, %cst_64 {dimension_numbers = #tpu.dot_dimension_numbers<[1], [1], [2], [2], [0, 0, 0, 2, 1, 2], [0], [0]>} : vector<8x8x16xbf16>, vector<8x8x16xbf16>, vector<8x16x16xf32> -> vector<8x16x16xf32>
    %cst_65 = arith.constant 0.353553385 : f32
    %182 = vector.broadcast %cst_65 : f32 to vector<8x16x16xf32>
    %183 = arith.mulf %181, %182 : vector<8x16x16xf32>
    %cst_66 = arith.constant dense<0xFF800000> : vector<8x16xf32>
    %184 = vector.multi_reduction <maximumf>, %183, %cst_66 [2] : vector<8x16x16xf32> to vector<8x16xf32>
    %185 = vector.shape_cast %184 : vector<8x16xf32> to vector<8x16x1xf32>
    %186 = vector.broadcast %185 : vector<8x16x1xf32> to vector<8x16x16xf32>
    %187 = arith.subf %183, %186 : vector<8x16x16xf32>
    %188 = math.exp %187 : vector<8x16x16xf32>
    %cst_67 = arith.constant dense<0.000000e+00> : vector<8x16xf32>
    %189 = vector.multi_reduction <add>, %188, %cst_67 [2] : vector<8x16x16xf32> to vector<8x16xf32>
    %190 = vector.shape_cast %189 : vector<8x16xf32> to vector<8x16x1xf32>
    %191 = tpu.reciprocal %190 {approx = true} : vector<8x16x1xf32> -> vector<8x16x1xf32>
    %192 = vector.broadcast %191 : vector<8x16x1xf32> to vector<8x16x16xf32>
    %193 = arith.mulf %188, %192 : vector<8x16x16xf32>
    %194 = arith.truncf %193 : vector<8x16x16xf32> to vector<8x16x16xbf16>
    %195 = arith.truncf %178 : vector<8x8x16xf32> to vector<8x8x16xbf16>
    %cst_68 = arith.constant dense<0.000000e+00> : vector<8x16x8xf32>
    %196 = tpu.matmul %194, %195, %cst_68 {dimension_numbers = #tpu.dot_dimension_numbers<[2], [2], [1], [1], [0, 0, 0, 1, 1, 1], [0], [0]>} : vector<8x16x16xbf16>, vector<8x8x16xbf16>, vector<8x16x8xf32> -> vector<8x16x8xf32>
    %197 = tpu.transpose %196, [0, 2, 1] : vector<8x16x8xf32> -> vector<8x8x16xf32>
    %198 = vector.shape_cast %197 : vector<8x8x16xf32> to vector<2x32x16xf32>
    %199 = tpu.transpose %198, [0, 2, 1] : vector<2x32x16xf32> -> vector<2x16x32xf32>
    %200 = vector.shape_cast %199 : vector<2x16x32xf32> to vector<32x32xf32>
    %c1_69 = arith.constant 1 : index
    %c0_70 = arith.constant 0 : index
    %c0_71 = arith.constant 0 : index
    %201 = vector.load %arg5[%c1_69, %c0_70, %c0_71] : memref<2x32x32xbf16, #tpu.memory_space<vmem>>, vector<1x32x32xbf16>
    %202 = vector.shape_cast %201 : vector<1x32x32xbf16> to vector<32x32xbf16>
    %203 = arith.truncf %200 : vector<32x32xf32> to vector<32x32xbf16>
    %cst_72 = arith.constant dense<0.000000e+00> : vector<32x32xf32>
    %204 = tpu.matmul %203, %202, %cst_72 {dimension_numbers = #tpu.dot_dimension_numbers<[1], [0], [0], [1], [0, 0, 1, 1], [], []>} : vector<32x32xbf16>, vector<32x32xbf16>, vector<32x32xf32> -> vector<32x32xf32>
    %205 = vector.broadcast %135 : vector<1x32xf32> to vector<32x32xf32>
    %206 = arith.addf %204, %205 : vector<32x32xf32>
    %207 = arith.addf %127, %206 : vector<32x32xf32>
    %cst_73 = arith.constant dense<0.000000e+00> : vector<32xf32>
    %208 = vector.multi_reduction <add>, %207, %cst_73 [1] : vector<32x32xf32> to vector<32xf32>
    %209 = vector.shape_cast %208 : vector<32xf32> to vector<32x1xf32>
    %cst_74 = arith.constant 3.200000e+01 : f32
    %210 = vector.broadcast %cst_74 : f32 to vector<32x1xf32>
    %211 = arith.divf %209, %210 : vector<32x1xf32>
    %212 = vector.broadcast %211 : vector<32x1xf32> to vector<32x32xf32>
    %213 = arith.subf %207, %212 : vector<32x32xf32>
    %214 = arith.mulf %213, %213 : vector<32x32xf32>
    %cst_75 = arith.constant dense<0.000000e+00> : vector<32xf32>
    %215 = vector.multi_reduction <add>, %214, %cst_75 [1] : vector<32x32xf32> to vector<32xf32>
    %216 = vector.shape_cast %215 : vector<32xf32> to vector<32x1xf32>
    %cst_76 = arith.constant 3.200000e+01 : f32
    %217 = vector.broadcast %cst_76 : f32 to vector<32x1xf32>
    %218 = arith.divf %216, %217 : vector<32x1xf32>
    %cst_77 = arith.constant 9.99999974E-6 : f32
    %219 = vector.broadcast %cst_77 : f32 to vector<32x1xf32>
    %220 = arith.addf %218, %219 : vector<32x1xf32>
    %221 = math.rsqrt %220 : vector<32x1xf32>
    %222 = vector.broadcast %211 : vector<32x1xf32> to vector<32x32xf32>
    %223 = arith.subf %207, %222 : vector<32x32xf32>
    %224 = vector.broadcast %221 : vector<32x1xf32> to vector<32x32xf32>
    %225 = arith.mulf %223, %224 : vector<32x32xf32>
    %226 = vector.broadcast %136 : vector<1x32xf32> to vector<32x32xf32>
    %227 = arith.mulf %225, %226 : vector<32x32xf32>
    %228 = vector.broadcast %137 : vector<1x32xf32> to vector<32x32xf32>
    %229 = arith.addf %227, %228 : vector<32x32xf32>
    %c1_78 = arith.constant 1 : index
    %c0_79 = arith.constant 0 : index
    %c0_80 = arith.constant 0 : index
    %230 = vector.load %arg6[%c1_78, %c0_79, %c0_80] : memref<2x32x64xbf16, #tpu.memory_space<vmem>>, vector<1x32x64xbf16>
    %231 = vector.shape_cast %230 : vector<1x32x64xbf16> to vector<32x64xbf16>
    %232 = arith.truncf %229 : vector<32x32xf32> to vector<32x32xbf16>
    %cst_81 = arith.constant dense<0.000000e+00> : vector<32x64xf32>
    %233 = tpu.matmul %232, %231, %cst_81 {dimension_numbers = #tpu.dot_dimension_numbers<[1], [0], [0], [1], [0, 0, 1, 1], [], []>} : vector<32x32xbf16>, vector<32x64xbf16>, vector<32x64xf32> -> vector<32x64xf32>
    %234 = vector.broadcast %140 : vector<1x64xf32> to vector<32x64xf32>
    %235 = arith.addf %233, %234 : vector<32x64xf32>
    %cst_82 = arith.constant 5.000000e-01 : f32
    %236 = vector.broadcast %cst_82 : f32 to vector<32x64xf32>
    %237 = arith.mulf %236, %235 : vector<32x64xf32>
    %cst_83 = arith.constant 2.000000e+00 : f32
    %238 = math.sqrt %cst_83 : f32
    %239 = vector.broadcast %238 : f32 to vector<32x64xf32>
    %240 = arith.divf %235, %239 : vector<32x64xf32>
    %241 = math.erf %240 : vector<32x64xf32>
    %cst_84 = arith.constant 1.000000e+00 : f32
    %242 = vector.broadcast %cst_84 : f32 to vector<32x64xf32>
    %243 = arith.addf %242, %241 : vector<32x64xf32>
    %244 = arith.mulf %237, %243 : vector<32x64xf32>
    %c1_85 = arith.constant 1 : index
    %c0_86 = arith.constant 0 : index
    %c0_87 = arith.constant 0 : index
    %245 = vector.load %arg7[%c1_85, %c0_86, %c0_87] : memref<2x64x32xbf16, #tpu.memory_space<vmem>>, vector<1x64x32xbf16>
    %246 = vector.shape_cast %245 : vector<1x64x32xbf16> to vector<64x32xbf16>
    %247 = arith.truncf %244 : vector<32x64xf32> to vector<32x64xbf16>
    %cst_88 = arith.constant dense<0.000000e+00> : vector<32x32xf32>
    %248 = tpu.matmul %247, %246, %cst_88 {dimension_numbers = #tpu.dot_dimension_numbers<[1], [0], [0], [1], [0, 0, 1, 1], [], []>} : vector<32x64xbf16>, vector<64x32xbf16>, vector<32x32xf32> -> vector<32x32xf32>
    %249 = vector.broadcast %138 : vector<1x32xf32> to vector<32x32xf32>
    %250 = arith.addf %248, %249 : vector<32x32xf32>
    %251 = arith.addf %207, %250 : vector<32x32xf32>
    %c1_89 = arith.constant 1 : index
    %c0_90 = arith.constant 0 : index
    %c0_91 = arith.constant 0 : index
    %c0_92 = arith.constant 0 : index
    %252 = vector.load %arg11[%c1_89, %c0_90, %c0_91, %c0_92] : memref<2x1x32x32xf32, #tpu.memory_space<vmem>>, vector<1x1x32x32xf32>
    %253 = vector.shape_cast %252 : vector<1x1x32x32xf32> to vector<32x32xf32>
    %254 = vector.shape_cast %251 : vector<32x32xf32> to vector<1x1x32x32xf32>
    tpu.vector_store %arg11[%c1_89, %c0_90, %c0_91, %c0_92], %254 {strides = array<i32>} : memref<2x1x32x32xf32, #tpu.memory_space<vmem>>, vector<1x1x32x32xf32>,
    %c0_93 = arith.constant 0 : index
    %c0_94 = arith.constant 0 : index
    %255 = vector.load %arg10[%c0_93, %c0_94] : memref<2x32xf32, #tpu.memory_space<vmem>>, vector<1x32xf32>
    %c1_95 = arith.constant 1 : index
    %c0_96 = arith.constant 0 : index
    %256 = vector.load %arg10[%c1_95, %c0_96] : memref<2x32xf32, #tpu.memory_space<vmem>>, vector<1x32xf32>
    %cst_97 = arith.constant dense<0.000000e+00> : vector<32xf32>
    %257 = vector.multi_reduction <add>, %251, %cst_97 [1] : vector<32x32xf32> to vector<32xf32>
    %258 = vector.shape_cast %257 : vector<32xf32> to vector<32x1xf32>
    %cst_98 = arith.constant 3.200000e+01 : f32
    %259 = vector.broadcast %cst_98 : f32 to vector<32x1xf32>
    %260 = arith.divf %258, %259 : vector<32x1xf32>
    %261 = vector.broadcast %260 : vector<32x1xf32> to vector<32x32xf32>
    %262 = arith.subf %251, %261 : vector<32x32xf32>
    %263 = arith.mulf %262, %262 : vector<32x32xf32>
    %cst_99 = arith.constant dense<0.000000e+00> : vector<32xf32>
    %264 = vector.multi_reduction <add>, %263, %cst_99 [1] : vector<32x32xf32> to vector<32xf32>
    %265 = vector.shape_cast %264 : vector<32xf32> to vector<32x1xf32>
    %cst_100 = arith.constant 3.200000e+01 : f32
    %266 = vector.broadcast %cst_100 : f32 to vector<32x1xf32>
    %267 = arith.divf %265, %266 : vector<32x1xf32>
    %cst_101 = arith.constant 9.99999974E-6 : f32
    %268 = vector.broadcast %cst_101 : f32 to vector<32x1xf32>
    %269 = arith.addf %267, %268 : vector<32x1xf32>
    %270 = math.rsqrt %269 : vector<32x1xf32>
    %271 = vector.broadcast %260 : vector<32x1xf32> to vector<32x32xf32>
    %272 = arith.subf %251, %271 : vector<32x32xf32>
    %273 = vector.broadcast %270 : vector<32x1xf32> to vector<32x32xf32>
    %274 = arith.mulf %272, %273 : vector<32x32xf32>
    %275 = vector.broadcast %255 : vector<1x32xf32> to vector<32x32xf32>
    %276 = arith.mulf %274, %275 : vector<32x32xf32>
    %277 = vector.broadcast %256 : vector<1x32xf32> to vector<32x32xf32>
    %278 = arith.addf %276, %277 : vector<32x32xf32>
    %c0_102 = arith.constant 0 : index
    %c0_103 = arith.constant 0 : index
    %c0_104 = arith.constant 0 : index
    %279 = vector.load %arg12[%c0_102, %c0_103, %c0_104] : memref<1x32x32xf32, #tpu.memory_space<vmem>>, vector<1x32x32xf32>
    %280 = vector.shape_cast %279 : vector<1x32x32xf32> to vector<32x32xf32>
    %281 = vector.shape_cast %278 : vector<32x32xf32> to vector<1x32x32xf32>
    tpu.vector_store %arg12[%c0_102, %c0_103, %c0_104], %281 {strides = array<i32>} : memref<1x32x32xf32, #tpu.memory_space<vmem>>, vector<1x32x32xf32>,
    return
  }
  func.func @transform_0(%arg0: i32) -> (i32, i32, i32) {
    %c0_i32 = arith.constant 0 : i32
    %c0_i32_0 = arith.constant 0 : i32
    %c0_i32_1 = arith.constant 0 : i32
    return %arg0, %c0_i32, %c0_i32_0 : i32, i32, i32
  }
  func.func @transform_1(%arg0: i32) -> (i32, i32) {
    %c0_i32 = arith.constant 0 : i32
    %c0_i32_0 = arith.constant 0 : i32
    %c0_i32_1 = arith.constant 0 : i32
    return %c0_i32, %c0_i32_0 : i32, i32
  }
  func.func @transform_2(%arg0: i32) -> (i32, i32) {
    %c0_i32 = arith.constant 0 : i32
    %c0_i32_0 = arith.constant 0 : i32
    %c0_i32_1 = arith.constant 0 : i32
    return %c0_i32, %c0_i32_0 : i32, i32
  }
  func.func @transform_3(%arg0: i32) -> (i32, i32, i32) {
    %c0_i32 = arith.constant 0 : i32
    %c0_i32_0 = arith.constant 0 : i32
    %c0_i32_1 = arith.constant 0 : i32
    %c0_i32_2 = arith.constant 0 : i32
    return %c0_i32, %c0_i32_0, %c0_i32_1 : i32, i32, i32
  }
  func.func @transform_4(%arg0: i32) -> (i32, i32, i32) {
    %c0_i32 = arith.constant 0 : i32
    %c0_i32_0 = arith.constant 0 : i32
    %c0_i32_1 = arith.constant 0 : i32
    %c0_i32_2 = arith.constant 0 : i32
    return %c0_i32, %c0_i32_0, %c0_i32_1 : i32, i32, i32
  }
  func.func @transform_5(%arg0: i32) -> (i32, i32, i32) {
    %c0_i32 = arith.constant 0 : i32
    %c0_i32_0 = arith.constant 0 : i32
    %c0_i32_1 = arith.constant 0 : i32
    %c0_i32_2 = arith.constant 0 : i32
    return %c0_i32, %c0_i32_0, %c0_i32_1 : i32, i32, i32
  }
  func.func @transform_6(%arg0: i32) -> (i32, i32, i32) {
    %c0_i32 = arith.constant 0 : i32
    %c0_i32_0 = arith.constant 0 : i32
    %c0_i32_1 = arith.constant 0 : i32
    %c0_i32_2 = arith.constant 0 : i32
    return %c0_i32, %c0_i32_0, %c0_i32_1 : i32, i32, i32
  }
  func.func @transform_7(%arg0: i32) -> (i32, i32, i32) {
    %c0_i32 = arith.constant 0 : i32
    %c0_i32_0 = arith.constant 0 : i32
    %c0_i32_1 = arith.constant 0 : i32
    %c0_i32_2 = arith.constant 0 : i32
    return %c0_i32, %c0_i32_0, %c0_i32_1 : i32, i32, i32
  }
  func.func @transform_8(%arg0: i32) -> (i32, i32, i32) {
    %c0_i32 = arith.constant 0 : i32
    %c0_i32_0 = arith.constant 0 : i32
    %c0_i32_1 = arith.constant 0 : i32
    %c0_i32_2 = arith.constant 0 : i32
    return %c0_i32, %c0_i32_0, %c0_i32_1 : i32, i32, i32
  }
  func.func @transform_9(%arg0: i32) -> (i32, i32) {
    %c0_i32 = arith.constant 0 : i32
    %c0_i32_0 = arith.constant 0 : i32
    %c0_i32_1 = arith.constant 0 : i32
    return %c0_i32, %c0_i32_0 : i32, i32
  }
  func.func @transform_10(%arg0: i32) -> (i32, i32, i32, i32) {
    %c0_i32 = arith.constant 0 : i32
    %c0_i32_0 = arith.constant 0 : i32
    %c0_i32_1 = arith.constant 0 : i32
    %c0_i32_2 = arith.constant 0 : i32
    return %c0_i32, %arg0, %c0_i32_0, %c0_i32_1 : i32, i32, i32, i32
  }
  func.func @transform_11(%arg0: i32) -> (i32, i32, i32) {
    %c0_i32 = arith.constant 0 : i32
    %c0_i32_0 = arith.constant 0 : i32
    %c0_i32_1 = arith.constant 0 : i32
    return %arg0, %c0_i32, %c0_i32_0 : i32, i32, i32
  }
}

</mosaic_0001>

<llo_original>
// kernel: tpu_custom_call.1
$region0: #{tpu_custom_call.1}
  #allocation0 [shape = 'u32[]', space=smem, size = 0x4, offset = 0x4, fixed_abs, tag = 'smem constant byte address 0x4 - core index']
  #allocation1 [shape = 'u32[144,128]{1,0:T(1,128)}', space=vmem, size = 0x12000, scoped, tag = 'internal scratch']
  %s0 = inlined_call_operand.vmem [shape: f32[1,32,64], index: 0, kind: input, shape index: {}]
  %s1 = inlined_call_operand.vmem [shape: bf16[64,32], index: 1, kind: input, shape index: {}]
  %s2 = inlined_call_operand.vmem [shape: f32[32,32], index: 2, kind: input, shape index: {}]
  %s3 = inlined_call_operand.vmem [shape: bf16[2,32,96], index: 3, kind: input, shape index: {}]
  %s4 = inlined_call_operand.vmem [shape: bf16[2,32,32], index: 4, kind: input, shape index: {}]
  %s5 = inlined_call_operand.hbm [shape: bf16[2,32,64], index: 5, kind: input, shape index: {}]
  %s6 = inlined_call_operand.vmem [shape: bf16[2,64,32], index: 6, kind: input, shape index: {}]
  %s7 = inlined_call_operand.vmem [shape: f32[2,6,32], index: 7, kind: input, shape index: {}]
  %s8 = inlined_call_operand.vmem [shape: f32[2,1,64], index: 8, kind: input, shape index: {}]
  %s9 = inlined_call_operand.vmem [shape: f32[2,32], index: 9, kind: input, shape index: {}]
  %s10 = inlined_call_operand.hbm [shape: f32[2,1,32,32], index: 10, kind: output, shape index: {0}]
  %s11 = inlined_call_operand.hbm [shape: f32[1,32,32], index: 11, kind: output, shape index: {1}]
  %12 = xla_tuple %s10, %s11
  %s13 = sld [smem:[#allocation0]]
  $region62: #{tpu_custom_call.1} parent=0
    _
  %s15 = ssub.s32 1, %s13
  %s16 = scalar_select 0, %s15, %s13
  $region1: #{tpu_custom_call.1} parent=0
    #allocation2 [shape = 'u8[16384]{0}', space=vmem, size = 0x4000, scoped, tag = 'input window, operand 5, single buffered']
    #allocation3 [shape = 's32[1]{0}', space=sflag, size = 0x4, scoped, tag = 'scoped memory for tpu_custom_call.1']
    #allocation4 [shape = 's32[1]{0}', space=sflag, size = 0x4, scoped, tag = 'scoped memory for tpu_custom_call.1']
    #allocation5 [shape = 'u8[32768]{0}', space=vmem, size = 0x8000, scoped, tag = 'output window, operand 0, single buffered']
    #allocation6 [shape = 'u8[16384]{0}', space=vmem, size = 0x4000, scoped, tag = 'output window, operand 1, single buffered']
    #allocation7 [shape = 's32[1]{0}', space=sflag, size = 0x4, scoped, tag = 'scoped memory for tpu_custom_call.1']
    %17 = vsyncpa [#allocation3], 0
    %18 = vsyncpa [#allocation4], 0
    %19 = vsyncpa [#allocation7], 0
    // Predicated region
    $region2: #{tpu_custom_call.1} parent=1 // pred_check
      _
    $region3: #{tpu_custom_call.1} parent=1 // pred_check_branch
      %21 = sbr.rel (0) target = $region5
    $region4: #{tpu_custom_call.1} parent=1 // pred_region
      _
    $region5: #{tpu_custom_call.1} parent=1 // pred_fallthru
      _
    // Predicated region
    $region6: #{tpu_custom_call.1} parent=1 // pred_check
      _
    $region7: #{tpu_custom_call.1} parent=1 // pred_check_branch
      %23 = sbr.rel (0) target = $region9
    $region8: #{tpu_custom_call.1} parent=1 // pred_region
      _
    $region9: #{tpu_custom_call.1} parent=1 // pred_fallthru
      _
    // Predicated region
    $region10: #{tpu_custom_call.1} parent=1 // pred_check
      _
    $region11: #{tpu_custom_call.1} parent=1 // pred_check_branch
      %25 = sbr.rel (0) target = $region13
    $region12: #{tpu_custom_call.1} parent=1 // pred_region
      _
    $region13: #{tpu_custom_call.1} parent=1 // pred_fallthru
      _
    // Predicated region
    $region14: #{tpu_custom_call.1} parent=1 // pred_check
      _
    $region15: #{tpu_custom_call.1} parent=1 // pred_check_branch
      %27 = sbr.rel (0) target = $region17
    $region16: #{tpu_custom_call.1} parent=1 // pred_region
      _
    $region17: #{tpu_custom_call.1} parent=1 // pred_fallthru
      _
    // Predicated region
    $region18: #{tpu_custom_call.1} parent=1 // pred_check
      _
    $region19: #{tpu_custom_call.1} parent=1 // pred_check_branch
      %29 = sbr.rel (0) target = $region21
    $region20: #{tpu_custom_call.1} parent=1 // pred_region
      _
    $region21: #{tpu_custom_call.1} parent=1 // pred_fallthru
      _
    // Predicated region
    $region22: #{tpu_custom_call.1} parent=1 // pred_check
      _
    $region23: #{tpu_custom_call.1} parent=1 // pred_check_branch
      %31 = sbr.rel (0) target = $region25
    $region24: #{tpu_custom_call.1} parent=1 // pred_region
      %s33 = ssub.s32 512, 512
      %34 = vsyncadd [#allocation3], %s33
      %s35 = sshll.u32 [#allocation2], 4
      %s36 = int_to_ptr.vmem [resolvable:$true] %s35
      %41 = dma.hbm_to_vmem [thread:$0]  %s5, 512, %s36, [#allocation3], 64, 64, 4
    $region25: #{tpu_custom_call.1} parent=1 // pred_fallthru
      _
    // Predicated region
    $region26: #{tpu_custom_call.1} parent=1 // pred_check
      _
    $region27: #{tpu_custom_call.1} parent=1 // pred_check_branch
      %43 = sbr.rel (0) target = $region29
    $region28: #{tpu_custom_call.1} parent=1 // pred_region
      _
    $region29: #{tpu_custom_call.1} parent=1 // pred_fallthru
      _
    // Predicated region
    $region30: #{tpu_custom_call.1} parent=1 // pred_check
      _
    $region31: #{tpu_custom_call.1} parent=1 // pred_check_branch
      %45 = sbr.rel (0) target = $region33
    $region32: #{tpu_custom_call.1} parent=1 // pred_region
      _
    $region33: #{tpu_custom_call.1} parent=1 // pred_fallthru
      _
    // Predicated region
    $region34: #{tpu_custom_call.1} parent=1 // pred_check
      _
    $region35: #{tpu_custom_call.1} parent=1 // pred_check_branch
      %47 = sbr.rel (0) target = $region37
    $region36: #{tpu_custom_call.1} parent=1 // pred_region
      _
    $region37: #{tpu_custom_call.1} parent=1 // pred_fallthru
      _
    // Predicated region
    $region38: #{tpu_custom_call.1} parent=1 // pred_check
      _
    $region39: #{tpu_custom_call.1} parent=1 // pred_check_branch
      %49 = sbr.rel (0) target = $region41
    $region40: #{tpu_custom_call.1} parent=1 // pred_region
      _
    $region41: #{tpu_custom_call.1} parent=1 // pred_fallthru
      _
    // Predicated region
    $region42: #{tpu_custom_call.1} parent=1 // pred_check
      _
    $region43: #{tpu_custom_call.1} parent=1 // pred_check_branch
      %51 = sbr.rel (0) target = $region45
    $region44: #{tpu_custom_call.1} parent=1 // pred_region
      %52 = dma.done [#allocation3], 512
    $region45: #{tpu_custom_call.1} parent=1 // pred_fallthru
      _
    %v54 = vld [vmem:[%s0] sm:$0xff]
    %v55 = vld [vmem:[%s0 + $0x8] sm:$0xff]
    %v56 = vld [vmem:[%s0 + $0x10] sm:$0xff]
    %v57 = vld [vmem:[%s0 + $0x18] sm:$0xff]
    %v58 = vld [vmem:[%s1] sm:$0xf]
    %v59 = vld [vmem:[%s1 + $0x4] sm:$0xf]
    %v60 = vld [vmem:[%s1 + $0x8] sm:$0xf]
    %v61 = vld [vmem:[%s1 + $0xc] sm:$0xf]
    %v62 = vld [vmem:[%s1 + $0x10] sm:$0xf]
    %v63 = vld [vmem:[%s1 + $0x14] sm:$0xf]
    %v64 = vld [vmem:[%s1 + $0x18] sm:$0xf]
    %v65 = vld [vmem:[%s1 + $0x1c] sm:$0xf]
    %v66 = vpack.c.bf16 %v55, %v54
    %v67 = vpack.c.bf16 %v57, %v56
    %v68 = vld [vmem:[%s2] sm:$0xff]
    %v69 = vld [vmem:[%s2 + $0x8] sm:$0xff]
    %v70 = vld [vmem:[%s2 + $0x10] sm:$0xff]
    %v71 = vld [vmem:[%s2 + $0x18] sm:$0xff]
    %v80 = vunpack.c.l.b16 %v58
    %v81 = vunpack.c.l.b16 %v59
    %v82 = vunpack.c.l.b16 %v60
    %v83 = vunpack.c.l.b16 %v61
    %v84 = vunpack.c.l.b16 %v62
    %v85 = vunpack.c.l.b16 %v63
    %v86 = vunpack.c.l.b16 %v64
    %v87 = vunpack.c.l.b16 %v65
    %v88 = vpack.c.b16 %v81, %v80
    %v89 = vpack.c.b16 %v83, %v82
    %v90 = vpack.c.b16 %v85, %v84
    %v91 = vpack.c.b16 %v87, %v86
    %vm96 = vcmask 523264
    %v98 = vsel %vm96, %v66, 0
    %v101 = vsel %vm96, %v67, 0
    %103 = vmatprep.subr.bf16.mxu0 0
    %104 = vmatpush1.bf16.msra.mxu0 %v88
    %105 = vmatprep.subr.bf16.mxu0 0
    %106 = vmatpush1.bf16.msra.mxu0 %v89
    %107 = vmatprep.subr.bf16.mxu0 0
    %108 = vmatpush1.bf16.msra.mxu0 %v90
    %109 = vmatprep.subr.bf16.mxu0 0
    %110 = vmatpush1.bf16.msra.mxu0 %v91
    %111 = vmatprep.subr.bf16.mxu0 0
    %112 = vmatpush1.bf16.msra.mxu0 0
    %113 = vmatprep.subr.bf16.mxu0 0
    %114 = vmatpush1.bf16.msra.mxu0 0
    %115 = vmatprep.subr.bf16.mxu0 0
    %116 = vmatpush1.bf16.msra.mxu0 0
    %117 = vmatprep.subr.bf16.mxu0 0
    %118 = vmatpush1.bf16.msra.mxu0 0
    %119 = vmatprep.subr.bf16.mxu0 0
    %120 = vmatpush1.bf16.msra.mxu0 0
    %121 = vmatprep.subr.bf16.mxu0 0
    %122 = vmatpush1.bf16.msra.mxu0 0
    %123 = vmatprep.subr.bf16.mxu0 0
    %124 = vmatpush1.bf16.msra.mxu0 0
    %125 = vmatprep.subr.bf16.mxu0 0
    %126 = vmatpush1.bf16.msra.mxu0 0
    %127 = vmatprep.subr.bf16.mxu0 0
    %128 = vmatpush1.bf16.msra.mxu0 0
    %129 = vmatprep.subr.bf16.mxu0 0
    %130 = vmatpush1.bf16.msra.mxu0 0
    %131 = vmatprep.subr.bf16.mxu0 0
    %132 = vmatpush1.bf16.msra.mxu0 0
    %133 = vmatprep.subr.bf16.mxu0 0
    %134 = vmatpush1.bf16.msra.mxu0 0
    %135 = vmatprep.mubr.bf16.mxu0 0
    %136 = vmatmul.mubr.bf16.gmra.mrb[0].mxu0 %v98
    %v137 = vpop.f32.mrb[0].mxu0
    %v138 = vadd.f32 %v68, %v137
    %v139 = vpop.f32.mrb[0].mxu0
    %v140 = vpop.f32.mrb[0].mxu0
    %v141 = vadd.f32 %v69, %v140
    %v142 = vpop.f32.mrb[0].mxu0
    %143 = vmatprep.mubr.bf16.mxu0 0
    %144 = vmatmul.mubr.bf16.gmra.mrb[0].mxu0 %v101
    %v145 = vpop.f32.mrb[0].mxu0
    %v146 = vadd.f32 %v70, %v145
    %v147 = vpop.f32.mrb[0].mxu0
    %v148 = vpop.f32.mrb[0].mxu0
    %v149 = vadd.f32 %v71, %v148
    %v150 = vpop.f32.mrb[0].mxu0
    %151 = vdwg.mxu0
    %v152 = vld [vmem:[%s7] sm:$0x3f]
    %v153 = vld [vmem:[%s8] sm:$0x1]
    %vm154 = vcmask 261120
    %v155 = vsel %vm154, %v138, 0.0
    %156 = vadd.xlane.f32.xlu0 %v155
    %v157 = vpop.xlane.xlu0 %156
    %v158 = vsel %vm154, %v141, 0.0
    %159 = vadd.xlane.f32.xlu0 %v158
    %v160 = vpop.xlane.xlu0 %159
    %v161 = vsel %vm154, %v146, 0.0
    %162 = vadd.xlane.f32.xlu0 %v161
    %v163 = vpop.xlane.xlu0 %162
    %v164 = vsel %vm154, %v149, 0.0
    %165 = vadd.xlane.f32.xlu0 %v164
    %v166 = vpop.xlane.xlu0 %165
    %v167 = vrcp.pop 32.0
    %v168 = vmul.f32 %v157, %v167
    %v169 = vmul.f32 %v160, %v167
    %v170 = vmul.f32 %v163, %v167
    %v171 = vmul.f32 %v166, %v167
    %v172 = vsub.f32 %v138, %v168
    %v173 = vsub.f32 %v141, %v169
    %v174 = vsub.f32 %v146, %v170
    %v175 = vsub.f32 %v149, %v171
    %v176 = vmul.f32 %v172, %v172
    %v177 = vmul.f32 %v173, %v173
    %v178 = vmul.f32 %v174, %v174
    %v179 = vmul.f32 %v175, %v175
    %v180 = vsel %vm154, %v176, 0.0
    %181 = vadd.xlane.f32.xlu0 %v180
    %v182 = vpop.xlane.xlu0 %181
    %v183 = vsel %vm154, %v177, 0.0
    %184 = vadd.xlane.f32.xlu0 %v183
    %v185 = vpop.xlane.xlu0 %184
    %v186 = vsel %vm154, %v178, 0.0
    %187 = vadd.xlane.f32.xlu0 %v186
    %v188 = vpop.xlane.xlu0 %187
    %v189 = vsel %vm154, %v179, 0.0
    %190 = vadd.xlane.f32.xlu0 %v189
    %v191 = vpop.xlane.xlu0 %190
    %v192 = vmul.f32 %v182, %v167
    %v193 = vmul.f32 %v185, %v167
    %v194 = vmul.f32 %v188, %v167
    %v195 = vmul.f32 %v191, %v167
    %v196 = vadd.f32 %v192, 1e-05
    %v197 = vadd.f32 %v193, 1e-05
    %v198 = vadd.f32 %v194, 1e-05
    %v199 = vadd.f32 %v195, 1e-05
    %v200 = vrsqrt.pop %v196
    %v201 = vrsqrt.pop %v197
    %v202 = vrsqrt.pop %v198
    %v203 = vrsqrt.pop %v199
    %v204 = vmul.f32 %v172, %v200
    %v205 = vmul.f32 %v173, %v201
    %v206 = vmul.f32 %v174, %v202
    %v207 = vmul.f32 %v175, %v203
    %v208 = vlaneseq
    %v209 = vshrl.u32 %v208, 7
    %v210 = vsub.s32 0, %v209
    %v211 = vrot.slane %v152, %v210
    %v212 = vmul.f32 %v204, %v211
    %v213 = vmul.f32 %v205, %v211
    %v214 = vmul.f32 %v206, %v211
    %v215 = vmul.f32 %v207, %v211
    %v216 = vlaneseq
    %v217 = vshrl.u32 %v216, 7
    %v218 = vsub.s32 1, %v217
    %v219 = vrot.slane %v152, %v218
    %v220 = vadd.f32 %v212, %v219
    %v221 = vadd.f32 %v213, %v219
    %v222 = vadd.f32 %v214, %v219
    %v223 = vadd.f32 %v215, %v219
    %v224 = vld [vmem:[%s3] sm:$0xf]
    %v225 = vld [vmem:[%s3 + $0x4] sm:$0xf]
    %v226 = vld [vmem:[%s3 + $0x8] sm:$0xf]
    %v227 = vld [vmem:[%s3 + $0xc] sm:$0xf]
    %v228 = vpack.c.bf16 %v221, %v220
    %v229 = vpack.c.bf16 %v223, %v222
    %v234 = vunpack.c.l.b16 %v224
    %v235 = vunpack.c.l.b16 %v225
    %v236 = vunpack.c.l.b16 %v226
    %v237 = vunpack.c.l.b16 %v227
    %v238 = vpack.c.b16 %v235, %v234
    %v239 = vpack.c.b16 %v237, %v236
    %v243 = vsel %vm154, %v228, 0
    %v246 = vsel %vm154, %v229, 0
    %248 = vmatprep.subr.bf16.mxu0 0
    %249 = vmatpush1.bf16.msra.mxu0 %v238
    %250 = vmatprep.subr.bf16.mxu0 0
    %251 = vmatpush1.bf16.msra.mxu0 %v239
    %252 = vmatprep.subr.bf16.mxu0 0
    %253 = vmatpush1.bf16.msra.mxu0 0
    %254 = vmatprep.subr.bf16.mxu0 0
    %255 = vmatpush1.bf16.msra.mxu0 0
    %256 = vmatprep.subr.bf16.mxu0 0
    %257 = vmatpush1.bf16.msra.mxu0 0
    %258 = vmatprep.subr.bf16.mxu0 0
    %259 = vmatpush1.bf16.msra.mxu0 0
    %260 = vmatprep.subr.bf16.mxu0 0
    %261 = vmatpush1.bf16.msra.mxu0 0
    %262 = vmatprep.subr.bf16.mxu0 0
    %263 = vmatpush1.bf16.msra.mxu0 0
    %264 = vmatprep.subr.bf16.mxu0 0
    %265 = vmatpush1.bf16.msra.mxu0 0
    %266 = vmatprep.subr.bf16.mxu0 0
    %267 = vmatpush1.bf16.msra.mxu0 0
    %268 = vmatprep.subr.bf16.mxu0 0
    %269 = vmatpush1.bf16.msra.mxu0 0
    %270 = vmatprep.subr.bf16.mxu0 0
    %271 = vmatpush1.bf16.msra.mxu0 0
    %272 = vmatprep.subr.bf16.mxu0 0
    %273 = vmatpush1.bf16.msra.mxu0 0
    %274 = vmatprep.subr.bf16.mxu0 0
    %275 = vmatpush1.bf16.msra.mxu0 0
    %276 = vmatprep.subr.bf16.mxu0 0
    %277 = vmatpush1.bf16.msra.mxu0 0
    %278 = vmatprep.subr.bf16.mxu0 0
    %279 = vmatpush1.bf16.msra.mxu0 0
    %280 = vmatprep.mubr.bf16.mxu0 0
    %281 = vmatmul.mubr.bf16.gmra.mrb[0].mxu0 %v243
    %v282 = vpop.f32.mrb[0].mxu0
    %v283 = vadd.f32 0.0, %v282
    %v284 = vpop.f32.mrb[0].mxu0
    %v285 = vpop.f32.mrb[0].mxu0
    %v286 = vadd.f32 0.0, %v285
    %v287 = vpop.f32.mrb[0].mxu0
    %288 = vmatprep.mubr.bf16.mxu0 0
    %289 = vmatmul.mubr.bf16.gmra.mrb[0].mxu0 %v246
    %v290 = vpop.f32.mrb[0].mxu0
    %v291 = vadd.f32 0.0, %v290
    %v292 = vpop.f32.mrb[0].mxu0
    %v293 = vpop.f32.mrb[0].mxu0
    %v294 = vadd.f32 0.0, %v293
    %v295 = vpop.f32.mrb[0].mxu0
    %296 = vdwg.mxu0
    %297 = vxpose.xlu0.b32.start [1/16] %v283, 128
    %298 = vxpose.xlu0.b32.cont [2/16] %v286, 128
    %299 = vxpose.xlu0.b32.cont [3/16] 0.0, 128
    %300 = vxpose.xlu0.b32.cont [4/16] 0.0, 128
    %301 = vxpose.xlu0.b32.cont [5/16] 0.0, 128
    %302 = vxpose.xlu0.b32.cont [6/16] 0.0, 128
    %303 = vxpose.xlu0.b32.cont [7/16] 0.0, 128
    %304 = vxpose.xlu0.b32.cont [8/16] 0.0, 128
    %305 = vxpose.xlu0.b32.cont [9/16] 0.0, 128
    %306 = vxpose.xlu0.b32.cont [10/16] 0.0, 128
    %307 = vxpose.xlu0.b32.cont [11/16] 0.0, 128
    %308 = vxpose.xlu0.b32.cont [12/16] 0.0, 128
    %309 = vxpose.xlu0.b32.cont [13/16] 0.0, 128
    %310 = vxpose.xlu0.b32.cont [14/16] 0.0, 128
    %311 = vxpose.xlu0.b32.cont [15/16] 0.0, 128
    %312 = vxpose.xlu0.b32.end [16/16] 0.0, 128
    %v313 = vpop.trf.xlu0
    %v314 = vpop.trf.xlu0
    %v315 = vpop.trf.xlu0
    %v316 = vpop.trf.xlu0
    %v317 = vpop.trf.xlu0
    %v318 = vpop.trf.xlu0
    %v319 = vpop.trf.xlu0
    %v320 = vpop.trf.xlu0
    %v321 = vpop.trf.xlu0
    %v322 = vpop.trf.xlu0
    %v323 = vpop.trf.xlu0
    %v324 = vpop.trf.xlu0
    %v325 = vpop.trf.xlu0
    %v326 = vpop.trf.xlu0
    %v327 = vpop.trf.xlu0
    %v328 = vpop.trf.xlu0
    %329 = vxpose.xlu0.b32.start [1/16] %v291, 128
    %330 = vxpose.xlu0.b32.cont [2/16] %v294, 128
    %331 = vxpose.xlu0.b32.cont [3/16] 0.0, 128
    %332 = vxpose.xlu0.b32.cont [4/16] 0.0, 128
    %333 = vxpose.xlu0.b32.cont [5/16] 0.0, 128
    %334 = vxpose.xlu0.b32.cont [6/16] 0.0, 128
    %335 = vxpose.xlu0.b32.cont [7/16] 0.0, 128
    %336 = vxpose.xlu0.b32.cont [8/16] 0.0, 128
    %337 = vxpose.xlu0.b32.cont [9/16] 0.0, 128
    %338 = vxpose.xlu0.b32.cont [10/16] 0.0, 128
    %339 = vxpose.xlu0.b32.cont [11/16] 0.0, 128
    %340 = vxpose.xlu0.b32.cont [12/16] 0.0, 128
    %341 = vxpose.xlu0.b32.cont [13/16] 0.0, 128
    %342 = vxpose.xlu0.b32.cont [14/16] 0.0, 128
    %343 = vxpose.xlu0.b32.cont [15/16] 0.0, 128
    %344 = vxpose.xlu0.b32.end [16/16] 0.0, 128
    %v345 = vpop.trf.xlu0
    %v346 = vpop.trf.xlu0
    %v347 = vpop.trf.xlu0
    %v348 = vpop.trf.xlu0
    %v349 = vpop.trf.xlu0
    %v350 = vpop.trf.xlu0
    %v351 = vpop.trf.xlu0
    %v352 = vpop.trf.xlu0
    %v353 = vpop.trf.xlu0
    %v354 = vpop.trf.xlu0
    %v355 = vpop.trf.xlu0
    %v356 = vpop.trf.xlu0
    %v357 = vpop.trf.xlu0
    %v358 = vpop.trf.xlu0
    %v359 = vpop.trf.xlu0
    %v360 = vpop.trf.xlu0
    %365 = vrot.lane.b32.xlu0 %v283, 96
    %v366 = vpop.permute.xlu0 %365
    %367 = vrot.lane.b32.xlu0 %v286, 96
    %v368 = vpop.permute.xlu0 %367
    %369 = vrot.lane.b32.xlu0 %v291, 96
    %v370 = vpop.permute.xlu0 %369
    %371 = vrot.lane.b32.xlu0 %v294, 96
    %v372 = vpop.permute.xlu0 %371
    %377 = vxpose.xlu0.b32.start [1/16] %v366, 128
    %378 = vxpose.xlu0.b32.cont [2/16] %v368, 128
    %379 = vxpose.xlu0.b32.cont [3/16] 0.0, 128
    %380 = vxpose.xlu0.b32.cont [4/16] 0.0, 128
    %381 = vxpose.xlu0.b32.cont [5/16] 0.0, 128
    %382 = vxpose.xlu0.b32.cont [6/16] 0.0, 128
    %383 = vxpose.xlu0.b32.cont [7/16] 0.0, 128
    %384 = vxpose.xlu0.b32.cont [8/16] 0.0, 128
    %385 = vxpose.xlu0.b32.cont [9/16] 0.0, 128
    %386 = vxpose.xlu0.b32.cont [10/16] 0.0, 128
    %387 = vxpose.xlu0.b32.cont [11/16] 0.0, 128
    %388 = vxpose.xlu0.b32.cont [12/16] 0.0, 128
    %389 = vxpose.xlu0.b32.cont [13/16] 0.0, 128
    %390 = vxpose.xlu0.b32.cont [14/16] 0.0, 128
    %391 = vxpose.xlu0.b32.cont [15/16] 0.0, 128
    %392 = vxpose.xlu0.b32.end [16/16] 0.0, 128
    %v393 = vpop.trf.xlu0
    %v394 = vpop.trf.xlu0
    %v395 = vpop.trf.xlu0
    %v396 = vpop.trf.xlu0
    %v397 = vpop.trf.xlu0
    %v398 = vpop.trf.xlu0
    %v399 = vpop.trf.xlu0
    %v400 = vpop.trf.xlu0
    %v401 = vpop.trf.xlu0
    %v402 = vpop.trf.xlu0
    %v403 = vpop.trf.xlu0
    %v404 = vpop.trf.xlu0
    %v405 = vpop.trf.xlu0
    %v406 = vpop.trf.xlu0
    %v407 = vpop.trf.xlu0
    %v408 = vpop.trf.xlu0
    %409 = vxpose.xlu0.b32.start [1/16] %v370, 128
    %410 = vxpose.xlu0.b32.cont [2/16] %v372, 128
    %411 = vxpose.xlu0.b32.cont [3/16] 0.0, 128
    %412 = vxpose.xlu0.b32.cont [4/16] 0.0, 128
    %413 = vxpose.xlu0.b32.cont [5/16] 0.0, 128
    %414 = vxpose.xlu0.b32.cont [6/16] 0.0, 128
    %415 = vxpose.xlu0.b32.cont [7/16] 0.0, 128
    %416 = vxpose.xlu0.b32.cont [8/16] 0.0, 128
    %417 = vxpose.xlu0.b32.cont [9/16] 0.0, 128
    %418 = vxpose.xlu0.b32.cont [10/16] 0.0, 128
    %419 = vxpose.xlu0.b32.cont [11/16] 0.0, 128
    %420 = vxpose.xlu0.b32.cont [12/16] 0.0, 128
    %421 = vxpose.xlu0.b32.cont [13/16] 0.0, 128
    %422 = vxpose.xlu0.b32.cont [14/16] 0.0, 128
    %423 = vxpose.xlu0.b32.cont [15/16] 0.0, 128
    %424 = vxpose.xlu0.b32.end [16/16] 0.0, 128
    %v425 = vpop.trf.xlu0
    %v426 = vpop.trf.xlu0
    %v427 = vpop.trf.xlu0
    %v428 = vpop.trf.xlu0
    %v429 = vpop.trf.xlu0
    %v430 = vpop.trf.xlu0
    %v431 = vpop.trf.xlu0
    %v432 = vpop.trf.xlu0
    %v433 = vpop.trf.xlu0
    %v434 = vpop.trf.xlu0
    %v435 = vpop.trf.xlu0
    %v436 = vpop.trf.xlu0
    %v437 = vpop.trf.xlu0
    %v438 = vpop.trf.xlu0
    %v439 = vpop.trf.xlu0
    %v440 = vpop.trf.xlu0
    %441 = vrot.lane.b32.xlu0 %v283, 64
    %v442 = vpop.permute.xlu0 %441
    %443 = vrot.lane.b32.xlu0 %v286, 64
    %v444 = vpop.permute.xlu0 %443
    %445 = vrot.lane.b32.xlu0 %v291, 64
    %v446 = vpop.permute.xlu0 %445
    %447 = vrot.lane.b32.xlu0 %v294, 64
    %v448 = vpop.permute.xlu0 %447
    %453 = vxpose.xlu0.b32.start [1/16] %v442, 128
    %454 = vxpose.xlu0.b32.cont [2/16] %v444, 128
    %455 = vxpose.xlu0.b32.cont [3/16] 0.0, 128
    %456 = vxpose.xlu0.b32.cont [4/16] 0.0, 128
    %457 = vxpose.xlu0.b32.cont [5/16] 0.0, 128
    %458 = vxpose.xlu0.b32.cont [6/16] 0.0, 128
    %459 = vxpose.xlu0.b32.cont [7/16] 0.0, 128
    %460 = vxpose.xlu0.b32.cont [8/16] 0.0, 128
    %461 = vxpose.xlu0.b32.cont [9/16] 0.0, 128
    %462 = vxpose.xlu0.b32.cont [10/16] 0.0, 128
    %463 = vxpose.xlu0.b32.cont [11/16] 0.0, 128
    %464 = vxpose.xlu0.b32.cont [12/16] 0.0, 128
    %465 = vxpose.xlu0.b32.cont [13/16] 0.0, 128
    %466 = vxpose.xlu0.b32.cont [14/16] 0.0, 128
    %467 = vxpose.xlu0.b32.cont [15/16] 0.0, 128
    %468 = vxpose.xlu0.b32.end [16/16] 0.0, 128
    %v469 = vpop.trf.xlu0
    %v470 = vpop.trf.xlu0
    %v471 = vpop.trf.xlu0
    %v472 = vpop.trf.xlu0
    %v473 = vpop.trf.xlu0
    %v474 = vpop.trf.xlu0
    %v475 = vpop.trf.xlu0
    %v476 = vpop.trf.xlu0
    %v477 = vpop.trf.xlu0
    %v478 = vpop.trf.xlu0
    %v479 = vpop.trf.xlu0
    %v480 = vpop.trf.xlu0
    %v481 = vpop.trf.xlu0
    %v482 = vpop.trf.xlu0
    %v483 = vpop.trf.xlu0
    %v484 = vpop.trf.xlu0
    %485 = vxpose.xlu0.b32.start [1/16] %v446, 128
    %486 = vxpose.xlu0.b32.cont [2/16] %v448, 128
    %487 = vxpose.xlu0.b32.cont [3/16] 0.0, 128
    %488 = vxpose.xlu0.b32.cont [4/16] 0.0, 128
    %489 = vxpose.xlu0.b32.cont [5/16] 0.0, 128
    %490 = vxpose.xlu0.b32.cont [6/16] 0.0, 128
    %491 = vxpose.xlu0.b32.cont [7/16] 0.0, 128
    %492 = vxpose.xlu0.b32.cont [8/16] 0.0, 128
    %493 = vxpose.xlu0.b32.cont [9/16] 0.0, 128
    %494 = vxpose.xlu0.b32.cont [10/16] 0.0, 128
    %495 = vxpose.xlu0.b32.cont [11/16] 0.0, 128
    %496 = vxpose.xlu0.b32.cont [12/16] 0.0, 128
    %497 = vxpose.xlu0.b32.cont [13/16] 0.0, 128
    %498 = vxpose.xlu0.b32.cont [14/16] 0.0, 128
    %499 = vxpose.xlu0.b32.cont [15/16] 0.0, 128
    %500 = vxpose.xlu0.b32.end [16/16] 0.0, 128
    %v501 = vpop.trf.xlu0
    %v502 = vpop.trf.xlu0
    %v503 = vpop.trf.xlu0
    %v504 = vpop.trf.xlu0
    %v505 = vpop.trf.xlu0
    %v506 = vpop.trf.xlu0
    %v507 = vpop.trf.xlu0
    %v508 = vpop.trf.xlu0
    %v509 = vpop.trf.xlu0
    %v510 = vpop.trf.xlu0
    %v511 = vpop.trf.xlu0
    %v512 = vpop.trf.xlu0
    %v513 = vpop.trf.xlu0
    %v514 = vpop.trf.xlu0
    %v515 = vpop.trf.xlu0
    %v516 = vpop.trf.xlu0
    %v517 = vpack.c.bf16 %v313, %v313
    %v518 = vpack.c.bf16 %v314, %v314
    %v519 = vpack.c.bf16 %v315, %v315
    %v520 = vpack.c.bf16 %v316, %v316
    %v521 = vpack.c.bf16 %v345, %v345
    %v522 = vpack.c.bf16 %v346, %v346
    %v523 = vpack.c.bf16 %v347, %v347
    %v524 = vpack.c.bf16 %v348, %v348
    %v525 = vpack.c.bf16 %v393, %v393
    %v526 = vpack.c.bf16 %v394, %v394
    %v527 = vpack.c.bf16 %v395, %v395
    %v528 = vpack.c.bf16 %v396, %v396
    %v529 = vpack.c.bf16 %v425, %v425
    %v530 = vpack.c.bf16 %v426, %v426
    %v531 = vpack.c.bf16 %v427, %v427
    %v532 = vpack.c.bf16 %v428, %v428
    %533 = vxpose.xlu0.c.b16.start [1/8] %v517, 128
    %534 = vxpose.xlu0.c.b16.cont [2/8] 0, 128
    %535 = vxpose.xlu0.c.b16.cont [3/8] 0, 128
    %536 = vxpose.xlu0.c.b16.cont [4/8] 0, 128
    %537 = vxpose.xlu0.c.b16.cont [5/8] 0, 128
    %538 = vxpose.xlu0.c.b16.cont [6/8] 0, 128
    %539 = vxpose.xlu0.c.b16.cont [7/8] 0, 128
    %540 = vxpose.xlu0.c.b16.end [8/8] 0, 128
    %v541 = vpop.trf.xlu0
    %v542 = vpop.trf.xlu0
    %v543 = vpop.trf.xlu0
    %v544 = vpop.trf.xlu0
    %v545 = vpop.trf.xlu0
    %v546 = vpop.trf.xlu0
    %v547 = vpop.trf.xlu0
    %v548 = vpop.trf.xlu0
    %vm549 = vcmask 64512
    %v551 = vsel %vm549, %v541, 0
    %vm553 = vcmask 1043456
    %v555 = vsel %vm553, %v525, 0
    %557 = vmatprep.subr.bf16.mxu0 0
    %558 = vmatpush1.bf16.msra.mxu0 %v555
    %559 = vmatprep.subr.bf16.mxu0 0
    %560 = vmatpush1.bf16.msra.mxu0 0
    %561 = vmatprep.subr.bf16.mxu0 0
    %562 = vmatpush1.bf16.msra.mxu0 0
    %563 = vmatprep.subr.bf16.mxu0 0
    %564 = vmatpush1.bf16.msra.mxu0 0
    %565 = vmatprep.subr.bf16.mxu0 0
    %566 = vmatpush1.bf16.msra.mxu0 0
    %567 = vmatprep.subr.bf16.mxu0 0
    %568 = vmatpush1.bf16.msra.mxu0 0
    %569 = vmatprep.subr.bf16.mxu0 0
    %570 = vmatpush1.bf16.msra.mxu0 0
    %571 = vmatprep.subr.bf16.mxu0 0
    %572 = vmatpush1.bf16.msra.mxu0 0
    %573 = vmatprep.subr.bf16.mxu0 0
    %574 = vmatpush1.bf16.msra.mxu0 0
    %575 = vmatprep.subr.bf16.mxu0 0
    %576 = vmatpush1.bf16.msra.mxu0 0
    %577 = vmatprep.subr.bf16.mxu0 0
    %578 = vmatpush1.bf16.msra.mxu0 0
    %579 = vmatprep.subr.bf16.mxu0 0
    %580 = vmatpush1.bf16.msra.mxu0 0
    %581 = vmatprep.subr.bf16.mxu0 0
    %582 = vmatpush1.bf16.msra.mxu0 0
    %583 = vmatprep.subr.bf16.mxu0 0
    %584 = vmatpush1.bf16.msra.mxu0 0
    %585 = vmatprep.subr.bf16.mxu0 0
    %586 = vmatpush1.bf16.msra.mxu0 0
    %587 = vmatprep.subr.bf16.mxu0 0
    %588 = vmatpush1.bf16.msra.mxu0 0
    %589 = vmatprep.mubr.bf16.mxu0 0
    %590 = vmatmul.mubr.bf16.gmra.mrb[0].mxu0 %v551
    %v591 = vpop.f32.mrb[0].mxu0
    %v592 = vadd.f32 0.0, %v591
    %v593 = vpop.f32.mrb[0].mxu0
    %v594 = vpop.f32.mrb[0].mxu0
    %v595 = vadd.f32 0.0, %v594
    %v596 = vpop.f32.mrb[0].mxu0
    %597 = vdwg.mxu0
    %598 = vxpose.xlu0.c.b16.start [1/8] %v518, 128
    %599 = vxpose.xlu0.c.b16.cont [2/8] 0, 128
    %600 = vxpose.xlu0.c.b16.cont [3/8] 0, 128
    %601 = vxpose.xlu0.c.b16.cont [4/8] 0, 128
    %602 = vxpose.xlu0.c.b16.cont [5/8] 0, 128
    %603 = vxpose.xlu0.c.b16.cont [6/8] 0, 128
    %604 = vxpose.xlu0.c.b16.cont [7/8] 0, 128
    %605 = vxpose.xlu0.c.b16.end [8/8] 0, 128
    %v606 = vpop.trf.xlu0
    %v607 = vpop.trf.xlu0
    %v608 = vpop.trf.xlu0
    %v609 = vpop.trf.xlu0
    %v610 = vpop.trf.xlu0
    %v611 = vpop.trf.xlu0
    %v612 = vpop.trf.xlu0
    %v613 = vpop.trf.xlu0
    %v615 = vsel %vm549, %v606, 0
    %v618 = vsel %vm553, %v526, 0
    %620 = vmatprep.subr.bf16.mxu0 0
    %621 = vmatpush1.bf16.msra.mxu0 %v618
    %622 = vmatprep.subr.bf16.mxu0 0
    %623 = vmatpush1.bf16.msra.mxu0 0
    %624 = vmatprep.subr.bf16.mxu0 0
    %625 = vmatpush1.bf16.msra.mxu0 0
    %626 = vmatprep.subr.bf16.mxu0 0
    %627 = vmatpush1.bf16.msra.mxu0 0
    %628 = vmatprep.subr.bf16.mxu0 0
    %629 = vmatpush1.bf16.msra.mxu0 0
    %630 = vmatprep.subr.bf16.mxu0 0
    %631 = vmatpush1.bf16.msra.mxu0 0
    %632 = vmatprep.subr.bf16.mxu0 0
    %633 = vmatpush1.bf16.msra.mxu0 0
    %634 = vmatprep.subr.bf16.mxu0 0
    %635 = vmatpush1.bf16.msra.mxu0 0
    %636 = vmatprep.subr.bf16.mxu0 0
    %637 = vmatpush1.bf16.msra.mxu0 0
    %638 = vmatprep.subr.bf16.mxu0 0
    %639 = vmatpush1.bf16.msra.mxu0 0
    %640 = vmatprep.subr.bf16.mxu0 0
    %641 = vmatpush1.bf16.msra.mxu0 0
    %642 = vmatprep.subr.bf16.mxu0 0
    %643 = vmatpush1.bf16.msra.mxu0 0
    %644 = vmatprep.subr.bf16.mxu0 0
    %645 = vmatpush1.bf16.msra.mxu0 0
    %646 = vmatprep.subr.bf16.mxu0 0
    %647 = vmatpush1.bf16.msra.mxu0 0
    %648 = vmatprep.subr.bf16.mxu0 0
    %649 = vmatpush1.bf16.msra.mxu0 0
    %650 = vmatprep.subr.bf16.mxu0 0
    %651 = vmatpush1.bf16.msra.mxu0 0
    %652 = vmatprep.mubr.bf16.mxu0 0
    %653 = vmatmul.mubr.bf16.gmra.mrb[0].mxu0 %v615
    %v654 = vpop.f32.mrb[0].mxu0
    %v655 = vadd.f32 0.0, %v654
    %v656 = vpop.f32.mrb[0].mxu0
    %v657 = vpop.f32.mrb[0].mxu0
    %v658 = vadd.f32 0.0, %v657
    %v659 = vpop.f32.mrb[0].mxu0
    %660 = vdwg.mxu0
    %661 = vxpose.xlu0.c.b16.start [1/8] %v519, 128
    %662 = vxpose.xlu0.c.b16.cont [2/8] 0, 128
    %663 = vxpose.xlu0.c.b16.cont [3/8] 0, 128
    %664 = vxpose.xlu0.c.b16.cont [4/8] 0, 128
    %665 = vxpose.xlu0.c.b16.cont [5/8] 0, 128
    %666 = vxpose.xlu0.c.b16.cont [6/8] 0, 128
    %667 = vxpose.xlu0.c.b16.cont [7/8] 0, 128
    %668 = vxpose.xlu0.c.b16.end [8/8] 0, 128
    %v669 = vpop.trf.xlu0
    %v670 = vpop.trf.xlu0
    %v671 = vpop.trf.xlu0
    %v672 = vpop.trf.xlu0
    %v673 = vpop.trf.xlu0
    %v674 = vpop.trf.xlu0
    %v675 = vpop.trf.xlu0
    %v676 = vpop.trf.xlu0
    %v678 = vsel %vm549, %v669, 0
    %v681 = vsel %vm553, %v527, 0
    %683 = vmatprep.subr.bf16.mxu0 0
    %684 = vmatpush1.bf16.msra.mxu0 %v681
    %685 = vmatprep.subr.bf16.mxu0 0
    %686 = vmatpush1.bf16.msra.mxu0 0
    %687 = vmatprep.subr.bf16.mxu0 0
    %688 = vmatpush1.bf16.msra.mxu0 0
    %689 = vmatprep.subr.bf16.mxu0 0
    %690 = vmatpush1.bf16.msra.mxu0 0
    %691 = vmatprep.subr.bf16.mxu0 0
    %692 = vmatpush1.bf16.msra.mxu0 0
    %693 = vmatprep.subr.bf16.mxu0 0
    %694 = vmatpush1.bf16.msra.mxu0 0
    %695 = vmatprep.subr.bf16.mxu0 0
    %696 = vmatpush1.bf16.msra.mxu0 0
    %697 = vmatprep.subr.bf16.mxu0 0
    %698 = vmatpush1.bf16.msra.mxu0 0
    %699 = vmatprep.subr.bf16.mxu0 0
    %700 = vmatpush1.bf16.msra.mxu0 0
    %701 = vmatprep.subr.bf16.mxu0 0
    %702 = vmatpush1.bf16.msra.mxu0 0
    %703 = vmatprep.subr.bf16.mxu0 0
    %704 = vmatpush1.bf16.msra.mxu0 0
    %705 = vmatprep.subr.bf16.mxu0 0
    %706 = vmatpush1.bf16.msra.mxu0 0
    %707 = vmatprep.subr.bf16.mxu0 0
    %708 = vmatpush1.bf16.msra.mxu0 0
    %709 = vmatprep.subr.bf16.mxu0 0
    %710 = vmatpush1.bf16.msra.mxu0 0
    %711 = vmatprep.subr.bf16.mxu0 0
    %712 = vmatpush1.bf16.msra.mxu0 0
    %713 = vmatprep.subr.bf16.mxu0 0
    %714 = vmatpush1.bf16.msra.mxu0 0
    %715 = vmatprep.mubr.bf16.mxu0 0
    %716 = vmatmul.mubr.bf16.gmra.mrb[0].mxu0 %v678
    %v717 = vpop.f32.mrb[0].mxu0
    %v718 = vadd.f32 0.0, %v717
    %v719 = vpop.f32.mrb[0].mxu0
    %v720 = vpop.f32.mrb[0].mxu0
    %v721 = vadd.f32 0.0, %v720
    %v722 = vpop.f32.mrb[0].mxu0
    %723 = vdwg.mxu0
    %724 = vxpose.xlu0.c.b16.start [1/8] %v520, 128
    %725 = vxpose.xlu0.c.b16.cont [2/8] 0, 128
    %726 = vxpose.xlu0.c.b16.cont [3/8] 0, 128
    %727 = vxpose.xlu0.c.b16.cont [4/8] 0, 128
    %728 = vxpose.xlu0.c.b16.cont [5/8] 0, 128
    %729 = vxpose.xlu0.c.b16.cont [6/8] 0, 128
    %730 = vxpose.xlu0.c.b16.cont [7/8] 0, 128
    %731 = vxpose.xlu0.c.b16.end [8/8] 0, 128
    %v732 = vpop.trf.xlu0
    %v733 = vpop.trf.xlu0
    %v734 = vpop.trf.xlu0
    %v735 = vpop.trf.xlu0
    %v736 = vpop.trf.xlu0
    %v737 = vpop.trf.xlu0
    %v738 = vpop.trf.xlu0
    %v739 = vpop.trf.xlu0
    %v741 = vsel %vm549, %v732, 0
    %v744 = vsel %vm553, %v528, 0
    %746 = vmatprep.subr.bf16.mxu0 0
    %747 = vmatpush1.bf16.msra.mxu0 %v744
    %748 = vmatprep.subr.bf16.mxu0 0
    %749 = vmatpush1.bf16.msra.mxu0 0
    %750 = vmatprep.subr.bf16.mxu0 0
    %751 = vmatpush1.bf16.msra.mxu0 0
    %752 = vmatprep.subr.bf16.mxu0 0
    %753 = vmatpush1.bf16.msra.mxu0 0
    %754 = vmatprep.subr.bf16.mxu0 0
    %755 = vmatpush1.bf16.msra.mxu0 0
    %756 = vmatprep.subr.bf16.mxu0 0
    %757 = vmatpush1.bf16.msra.mxu0 0
    %758 = vmatprep.subr.bf16.mxu0 0
    %759 = vmatpush1.bf16.msra.mxu0 0
    %760 = vmatprep.subr.bf16.mxu0 0
    %761 = vmatpush1.bf16.msra.mxu0 0
    %762 = vmatprep.subr.bf16.mxu0 0
    %763 = vmatpush1.bf16.msra.mxu0 0
    %764 = vmatprep.subr.bf16.mxu0 0
    %765 = vmatpush1.bf16.msra.mxu0 0
    %766 = vmatprep.subr.bf16.mxu0 0
    %767 = vmatpush1.bf16.msra.mxu0 0
    %768 = vmatprep.subr.bf16.mxu0 0
    %769 = vmatpush1.bf16.msra.mxu0 0
    %770 = vmatprep.subr.bf16.mxu0 0
    %771 = vmatpush1.bf16.msra.mxu0 0
    %772 = vmatprep.subr.bf16.mxu0 0
    %773 = vmatpush1.bf16.msra.mxu0 0
    %774 = vmatprep.subr.bf16.mxu0 0
    %775 = vmatpush1.bf16.msra.mxu0 0
    %776 = vmatprep.subr.bf16.mxu0 0
    %777 = vmatpush1.bf16.msra.mxu0 0
    %778 = vmatprep.mubr.bf16.mxu0 0
    %779 = vmatmul.mubr.bf16.gmra.mrb[0].mxu0 %v741
    %v780 = vpop.f32.mrb[0].mxu0
    %v781 = vadd.f32 0.0, %v780
    %v782 = vpop.f32.mrb[0].mxu0
    %v783 = vpop.f32.mrb[0].mxu0
    %v784 = vadd.f32 0.0, %v783
    %v785 = vpop.f32.mrb[0].mxu0
    %786 = vdwg.mxu0
    %787 = vxpose.xlu0.c.b16.start [1/8] %v521, 128
    %788 = vxpose.xlu0.c.b16.cont [2/8] 0, 128
    %789 = vxpose.xlu0.c.b16.cont [3/8] 0, 128
    %790 = vxpose.xlu0.c.b16.cont [4/8] 0, 128
    %791 = vxpose.xlu0.c.b16.cont [5/8] 0, 128
    %792 = vxpose.xlu0.c.b16.cont [6/8] 0, 128
    %793 = vxpose.xlu0.c.b16.cont [7/8] 0, 128
    %794 = vxpose.xlu0.c.b16.end [8/8] 0, 128
    %v795 = vpop.trf.xlu0
    %v796 = vpop.trf.xlu0
    %v797 = vpop.trf.xlu0
    %v798 = vpop.trf.xlu0
    %v799 = vpop.trf.xlu0
    %v800 = vpop.trf.xlu0
    %v801 = vpop.trf.xlu0
    %v802 = vpop.trf.xlu0
    %v804 = vsel %vm549, %v795, 0
    %v807 = vsel %vm553, %v529, 0
    %809 = vmatprep.subr.bf16.mxu0 0
    %810 = vmatpush1.bf16.msra.mxu0 %v807
    %811 = vmatprep.subr.bf16.mxu0 0
    %812 = vmatpush1.bf16.msra.mxu0 0
    %813 = vmatprep.subr.bf16.mxu0 0
    %814 = vmatpush1.bf16.msra.mxu0 0
    %815 = vmatprep.subr.bf16.mxu0 0
    %816 = vmatpush1.bf16.msra.mxu0 0
    %817 = vmatprep.subr.bf16.mxu0 0
    %818 = vmatpush1.bf16.msra.mxu0 0
    %819 = vmatprep.subr.bf16.mxu0 0
    %820 = vmatpush1.bf16.msra.mxu0 0
    %821 = vmatprep.subr.bf16.mxu0 0
    %822 = vmatpush1.bf16.msra.mxu0 0
    %823 = vmatprep.subr.bf16.mxu0 0
    %824 = vmatpush1.bf16.msra.mxu0 0
    %825 = vmatprep.subr.bf16.mxu0 0
    %826 = vmatpush1.bf16.msra.mxu0 0
    %827 = vmatprep.subr.bf16.mxu0 0
    %828 = vmatpush1.bf16.msra.mxu0 0
    %829 = vmatprep.subr.bf16.mxu0 0
    %830 = vmatpush1.bf16.msra.mxu0 0
    %831 = vmatprep.subr.bf16.mxu0 0
    %832 = vmatpush1.bf16.msra.mxu0 0
    %833 = vmatprep.subr.bf16.mxu0 0
    %834 = vmatpush1.bf16.msra.mxu0 0
    %835 = vmatprep.subr.bf16.mxu0 0
    %836 = vmatpush1.bf16.msra.mxu0 0
    %837 = vmatprep.subr.bf16.mxu0 0
    %838 = vmatpush1.bf16.msra.mxu0 0
    %839 = vmatprep.subr.bf16.mxu0 0
    %840 = vmatpush1.bf16.msra.mxu0 0
    %841 = vmatprep.mubr.bf16.mxu0 0
    %842 = vmatmul.mubr.bf16.gmra.mrb[0].mxu0 %v804
    %v843 = vpop.f32.mrb[0].mxu0
    %v844 = vadd.f32 0.0, %v843
    %v845 = vpop.f32.mrb[0].mxu0
    %v846 = vpop.f32.mrb[0].mxu0
    %v847 = vadd.f32 0.0, %v846
    %v848 = vpop.f32.mrb[0].mxu0
    %849 = vdwg.mxu0
    %850 = vxpose.xlu0.c.b16.start [1/8] %v522, 128
    %851 = vxpose.xlu0.c.b16.cont [2/8] 0, 128
    %852 = vxpose.xlu0.c.b16.cont [3/8] 0, 128
    %853 = vxpose.xlu0.c.b16.cont [4/8] 0, 128
    %854 = vxpose.xlu0.c.b16.cont [5/8] 0, 128
    %855 = vxpose.xlu0.c.b16.cont [6/8] 0, 128
    %856 = vxpose.xlu0.c.b16.cont [7/8] 0, 128
    %857 = vxpose.xlu0.c.b16.end [8/8] 0, 128
    %v858 = vpop.trf.xlu0
    %v859 = vpop.trf.xlu0
    %v860 = vpop.trf.xlu0
    %v861 = vpop.trf.xlu0
    %v862 = vpop.trf.xlu0
    %v863 = vpop.trf.xlu0
    %v864 = vpop.trf.xlu0
    %v865 = vpop.trf.xlu0
    %v867 = vsel %vm549, %v858, 0
    %v870 = vsel %vm553, %v530, 0
    %872 = vmatprep.subr.bf16.mxu0 0
    %873 = vmatpush1.bf16.msra.mxu0 %v870
    %874 = vmatprep.subr.bf16.mxu0 0
    %875 = vmatpush1.bf16.msra.mxu0 0
    %876 = vmatprep.subr.bf16.mxu0 0
    %877 = vmatpush1.bf16.msra.mxu0 0
    %878 = vmatprep.subr.bf16.mxu0 0
    %879 = vmatpush1.bf16.msra.mxu0 0
    %880 = vmatprep.subr.bf16.mxu0 0
    %881 = vmatpush1.bf16.msra.mxu0 0
    %882 = vmatprep.subr.bf16.mxu0 0
    %883 = vmatpush1.bf16.msra.mxu0 0
    %884 = vmatprep.subr.bf16.mxu0 0
    %885 = vmatpush1.bf16.msra.mxu0 0
    %886 = vmatprep.subr.bf16.mxu0 0
    %887 = vmatpush1.bf16.msra.mxu0 0
    %888 = vmatprep.subr.bf16.mxu0 0
    %889 = vmatpush1.bf16.msra.mxu0 0
    %890 = vmatprep.subr.bf16.mxu0 0
    %891 = vmatpush1.bf16.msra.mxu0 0
    %892 = vmatprep.subr.bf16.mxu0 0
    %893 = vmatpush1.bf16.msra.mxu0 0
    %894 = vmatprep.subr.bf16.mxu0 0
    %895 = vmatpush1.bf16.msra.mxu0 0
    %896 = vmatprep.subr.bf16.mxu0 0
    %897 = vmatpush1.bf16.msra.mxu0 0
    %898 = vmatprep.subr.bf16.mxu0 0
    %899 = vmatpush1.bf16.msra.mxu0 0
    %900 = vmatprep.subr.bf16.mxu0 0
    %901 = vmatpush1.bf16.msra.mxu0 0
    %902 = vmatprep.subr.bf16.mxu0 0
    %903 = vmatpush1.bf16.msra.mxu0 0
    %904 = vmatprep.mubr.bf16.mxu0 0
    %905 = vmatmul.mubr.bf16.gmra.mrb[0].mxu0 %v867
    %v906 = vpop.f32.mrb[0].mxu0
    %v907 = vadd.f32 0.0, %v906
    %v908 = vpop.f32.mrb[0].mxu0
    %v909 = vpop.f32.mrb[0].mxu0
    %v910 = vadd.f32 0.0, %v909
    %v911 = vpop.f32.mrb[0].mxu0
    %912 = vdwg.mxu0
    %913 = vxpose.xlu0.c.b16.start [1/8] %v523, 128
    %914 = vxpose.xlu0.c.b16.cont [2/8] 0, 128
    %915 = vxpose.xlu0.c.b16.cont [3/8] 0, 128
    %916 = vxpose.xlu0.c.b16.cont [4/8] 0, 128
    %917 = vxpose.xlu0.c.b16.cont [5/8] 0, 128
    %918 = vxpose.xlu0.c.b16.cont [6/8] 0, 128
    %919 = vxpose.xlu0.c.b16.cont [7/8] 0, 128
    %920 = vxpose.xlu0.c.b16.end [8/8] 0, 128
    %v921 = vpop.trf.xlu0
    %v922 = vpop.trf.xlu0
    %v923 = vpop.trf.xlu0
    %v924 = vpop.trf.xlu0
    %v925 = vpop.trf.xlu0
    %v926 = vpop.trf.xlu0
    %v927 = vpop.trf.xlu0
    %v928 = vpop.trf.xlu0
    %v930 = vsel %vm549, %v921, 0
    %v933 = vsel %vm553, %v531, 0
    %935 = vmatprep.subr.bf16.mxu0 0
    %936 = vmatpush1.bf16.msra.mxu0 %v933
    %937 = vmatprep.subr.bf16.mxu0 0
    %938 = vmatpush1.bf16.msra.mxu0 0
    %939 = vmatprep.subr.bf16.mxu0 0
    %940 = vmatpush1.bf16.msra.mxu0 0
    %941 = vmatprep.subr.bf16.mxu0 0
    %942 = vmatpush1.bf16.msra.mxu0 0
    %943 = vmatprep.subr.bf16.mxu0 0
    %944 = vmatpush1.bf16.msra.mxu0 0
    %945 = vmatprep.subr.bf16.mxu0 0
    %946 = vmatpush1.bf16.msra.mxu0 0
    %947 = vmatprep.subr.bf16.mxu0 0
    %948 = vmatpush1.bf16.msra.mxu0 0
    %949 = vmatprep.subr.bf16.mxu0 0
    %950 = vmatpush1.bf16.msra.mxu0 0
    %951 = vmatprep.subr.bf16.mxu0 0
    %952 = vmatpush1.bf16.msra.mxu0 0
    %953 = vmatprep.subr.bf16.mxu0 0
    %954 = vmatpush1.bf16.msra.mxu0 0
    %955 = vmatprep.subr.bf16.mxu0 0
    %956 = vmatpush1.bf16.msra.mxu0 0
    %957 = vmatprep.subr.bf16.mxu0 0
    %958 = vmatpush1.bf16.msra.mxu0 0
    %959 = vmatprep.subr.bf16.mxu0 0
    %960 = vmatpush1.bf16.msra.mxu0 0
    %961 = vmatprep.subr.bf16.mxu0 0
    %962 = vmatpush1.bf16.msra.mxu0 0
    %963 = vmatprep.subr.bf16.mxu0 0
    %964 = vmatpush1.bf16.msra.mxu0 0
    %965 = vmatprep.subr.bf16.mxu0 0
    %966 = vmatpush1.bf16.msra.mxu0 0
    %967 = vmatprep.mubr.bf16.mxu0 0
    %968 = vmatmul.mubr.bf16.gmra.mrb[0].mxu0 %v930
    %v969 = vpop.f32.mrb[0].mxu0
    %v970 = vadd.f32 0.0, %v969
    %v971 = vpop.f32.mrb[0].mxu0
    %v972 = vpop.f32.mrb[0].mxu0
    %v973 = vadd.f32 0.0, %v972
    %v974 = vpop.f32.mrb[0].mxu0
    %975 = vdwg.mxu0
    %976 = vxpose.xlu0.c.b16.start [1/8] %v524, 128
    %977 = vxpose.xlu0.c.b16.cont [2/8] 0, 128
    %978 = vxpose.xlu0.c.b16.cont [3/8] 0, 128
    %979 = vxpose.xlu0.c.b16.cont [4/8] 0, 128
    %980 = vxpose.xlu0.c.b16.cont [5/8] 0, 128
    %981 = vxpose.xlu0.c.b16.cont [6/8] 0, 128
    %982 = vxpose.xlu0.c.b16.cont [7/8] 0, 128
    %983 = vxpose.xlu0.c.b16.end [8/8] 0, 128
    %v984 = vpop.trf.xlu0
    %v985 = vpop.trf.xlu0
    %v986 = vpop.trf.xlu0
    %v987 = vpop.trf.xlu0
    %v988 = vpop.trf.xlu0
    %v989 = vpop.trf.xlu0
    %v990 = vpop.trf.xlu0
    %v991 = vpop.trf.xlu0
    %v993 = vsel %vm549, %v984, 0
    %v996 = vsel %vm553, %v532, 0
    %998 = vmatprep.subr.bf16.mxu0 0
    %999 = vmatpush1.bf16.msra.mxu0 %v996
    %1000 = vmatprep.subr.bf16.mxu0 0
    %1001 = vmatpush1.bf16.msra.mxu0 0
    %1002 = vmatprep.subr.bf16.mxu0 0
    %1003 = vmatpush1.bf16.msra.mxu0 0
    %1004 = vmatprep.subr.bf16.mxu0 0
    %1005 = vmatpush1.bf16.msra.mxu0 0
    %1006 = vmatprep.subr.bf16.mxu0 0
    %1007 = vmatpush1.bf16.msra.mxu0 0
    %1008 = vmatprep.subr.bf16.mxu0 0
    %1009 = vmatpush1.bf16.msra.mxu0 0
    %1010 = vmatprep.subr.bf16.mxu0 0
    %1011 = vmatpush1.bf16.msra.mxu0 0
    %1012 = vmatprep.subr.bf16.mxu0 0
    %1013 = vmatpush1.bf16.msra.mxu0 0
    %1014 = vmatprep.subr.bf16.mxu0 0
    %1015 = vmatpush1.bf16.msra.mxu0 0
    %1016 = vmatprep.subr.bf16.mxu0 0
    %1017 = vmatpush1.bf16.msra.mxu0 0
    %1018 = vmatprep.subr.bf16.mxu0 0
    %1019 = vmatpush1.bf16.msra.mxu0 0
    %1020 = vmatprep.subr.bf16.mxu0 0
    %1021 = vmatpush1.bf16.msra.mxu0 0
    %1022 = vmatprep.subr.bf16.mxu0 0
    %1023 = vmatpush1.bf16.msra.mxu0 0
    %1024 = vmatprep.subr.bf16.mxu0 0
    %1025 = vmatpush1.bf16.msra.mxu0 0
    %1026 = vmatprep.subr.bf16.mxu0 0
    %1027 = vmatpush1.bf16.msra.mxu0 0
    %1028 = vmatprep.subr.bf16.mxu0 0
    %1029 = vmatpush1.bf16.msra.mxu0 0
    %1030 = vmatprep.mubr.bf16.mxu0 0
    %1031 = vmatmul.mubr.bf16.gmra.mrb[0].mxu0 %v993
    %v1032 = vpop.f32.mrb[0].mxu0
    %v1033 = vadd.f32 0.0, %v1032
    %v1034 = vpop.f32.mrb[0].mxu0
    %v1035 = vpop.f32.mrb[0].mxu0
    %v1036 = vadd.f32 0.0, %v1035
    %v1037 = vpop.f32.mrb[0].mxu0
    %1038 = vdwg.mxu0
    %v1039 = vmul.f32 %v592, 0.35355338
    %v1040 = vmul.f32 %v595, 0.35355338
    %v1041 = vmul.f32 %v655, 0.35355338
    %v1042 = vmul.f32 %v658, 0.35355338
    %v1043 = vmul.f32 %v718, 0.35355338
    %v1044 = vmul.f32 %v721, 0.35355338
    %v1045 = vmul.f32 %v781, 0.35355338
    %v1046 = vmul.f32 %v784, 0.35355338
    %v1047 = vmul.f32 %v844, 0.35355338
    %v1048 = vmul.f32 %v847, 0.35355338
    %v1049 = vmul.f32 %v907, 0.35355338
    %v1050 = vmul.f32 %v910, 0.35355338
    %v1051 = vmul.f32 %v970, 0.35355338
    %v1052 = vmul.f32 %v973, 0.35355338
    %v1053 = vmul.f32 %v1033, 0.35355338
    %v1054 = vmul.f32 %v1036, 0.35355338
    %vm1055 = vcmask 130048
    %v1056 = vsel %vm1055, %v1039, -inf
    %1057 = vmax.xlane.f32.xlu0 %v1056
    %v1058 = vpop.xlane.xlu0 %1057
    %v1059 = vsel %vm1055, %v1040, -inf
    %1060 = vmax.xlane.f32.xlu0 %v1059
    %v1061 = vpop.xlane.xlu0 %1060
    %v1062 = vsel %vm1055, %v1041, -inf
    %1063 = vmax.xlane.f32.xlu0 %v1062
    %v1064 = vpop.xlane.xlu0 %1063
    %v1065 = vsel %vm1055, %v1042, -inf
    %1066 = vmax.xlane.f32.xlu0 %v1065
    %v1067 = vpop.xlane.xlu0 %1066
    %v1068 = vsel %vm1055, %v1043, -inf
    %1069 = vmax.xlane.f32.xlu0 %v1068
    %v1070 = vpop.xlane.xlu0 %1069
    %v1071 = vsel %vm1055, %v1044, -inf
    %1072 = vmax.xlane.f32.xlu0 %v1071
    %v1073 = vpop.xlane.xlu0 %1072
    %v1074 = vsel %vm1055, %v1045, -inf
    %1075 = vmax.xlane.f32.xlu0 %v1074
    %v1076 = vpop.xlane.xlu0 %1075
    %v1077 = vsel %vm1055, %v1046, -inf
    %1078 = vmax.xlane.f32.xlu0 %v1077
    %v1079 = vpop.xlane.xlu0 %1078
    %v1080 = vsel %vm1055, %v1047, -inf
    %1081 = vmax.xlane.f32.xlu0 %v1080
    %v1082 = vpop.xlane.xlu0 %1081
    %v1083 = vsel %vm1055, %v1048, -inf
    %1084 = vmax.xlane.f32.xlu0 %v1083
    %v1085 = vpop.xlane.xlu0 %1084
    %v1086 = vsel %vm1055, %v1049, -inf
    %1087 = vmax.xlane.f32.xlu0 %v1086
    %v1088 = vpop.xlane.xlu0 %1087
    %v1089 = vsel %vm1055, %v1050, -inf
    %1090 = vmax.xlane.f32.xlu0 %v1089
    %v1091 = vpop.xlane.xlu0 %1090
    %v1092 = vsel %vm1055, %v1051, -inf
    %1093 = vmax.xlane.f32.xlu0 %v1092
    %v1094 = vpop.xlane.xlu0 %1093
    %v1095 = vsel %vm1055, %v1052, -inf
    %1096 = vmax.xlane.f32.xlu0 %v1095
    %v1097 = vpop.xlane.xlu0 %1096
    %v1098 = vsel %vm1055, %v1053, -inf
    %1099 = vmax.xlane.f32.xlu0 %v1098
    %v1100 = vpop.xlane.xlu0 %1099
    %v1101 = vsel %vm1055, %v1054, -inf
    %1102 = vmax.xlane.f32.xlu0 %v1101
    %v1103 = vpop.xlane.xlu0 %1102
    %v1104 = vsub.f32 %v1039, %v1058
    %v1105 = vsub.f32 %v1040, %v1061
    %v1106 = vsub.f32 %v1041, %v1064
    %v1107 = vsub.f32 %v1042, %v1067
    %v1108 = vsub.f32 %v1043, %v1070
    %v1109 = vsub.f32 %v1044, %v1073
    %v1110 = vsub.f32 %v1045, %v1076
    %v1111 = vsub.f32 %v1046, %v1079
    %v1112 = vsub.f32 %v1047, %v1082
    %v1113 = vsub.f32 %v1048, %v1085
    %v1114 = vsub.f32 %v1049, %v1088
    %v1115 = vsub.f32 %v1050, %v1091
    %v1116 = vsub.f32 %v1051, %v1094
    %v1117 = vsub.f32 %v1052, %v1097
    %v1118 = vsub.f32 %v1053, %v1100
    %v1119 = vsub.f32 %v1054, %v1103
    %v1120 = vmul.f32 %v1104, 1.442695
    %v1121 = vpow.pop %v1120
    %v1122 = vmul.f32 %v1105, 1.442695
    %v1123 = vpow.pop %v1122
    %v1124 = vmul.f32 %v1106, 1.442695
    %v1125 = vpow.pop %v1124
    %v1126 = vmul.f32 %v1107, 1.442695
    %v1127 = vpow.pop %v1126
    %v1128 = vmul.f32 %v1108, 1.442695
    %v1129 = vpow.pop %v1128
    %v1130 = vmul.f32 %v1109, 1.442695
    %v1131 = vpow.pop %v1130
    %v1132 = vmul.f32 %v1110, 1.442695
    %v1133 = vpow.pop %v1132
    %v1134 = vmul.f32 %v1111, 1.442695
    %v1135 = vpow.pop %v1134
    %v1136 = vmul.f32 %v1112, 1.442695
    %v1137 = vpow.pop %v1136
    %v1138 = vmul.f32 %v1113, 1.442695
    %v1139 = vpow.pop %v1138
    %v1140 = vmul.f32 %v1114, 1.442695
    %v1141 = vpow.pop %v1140
    %v1142 = vmul.f32 %v1115, 1.442695
    %v1143 = vpow.pop %v1142
    %v1144 = vmul.f32 %v1116, 1.442695
    %v1145 = vpow.pop %v1144
    %v1146 = vmul.f32 %v1117, 1.442695
    %v1147 = vpow.pop %v1146
    %v1148 = vmul.f32 %v1118, 1.442695
    %v1149 = vpow.pop %v1148
    %v1150 = vmul.f32 %v1119, 1.442695
    %v1151 = vpow.pop %v1150
    %v1152 = vsel %vm1055, %v1121, 0.0
    %1153 = vadd.xlane.f32.xlu0 %v1152
    %v1154 = vpop.xlane.xlu0 %1153
    %v1155 = vsel %vm1055, %v1123, 0.0
    %1156 = vadd.xlane.f32.xlu0 %v1155
    %v1157 = vpop.xlane.xlu0 %1156
    %v1158 = vsel %vm1055, %v1125, 0.0
    %1159 = vadd.xlane.f32.xlu0 %v1158
    %v1160 = vpop.xlane.xlu0 %1159
    %v1161 = vsel %vm1055, %v1127, 0.0
    %1162 = vadd.xlane.f32.xlu0 %v1161
    %v1163 = vpop.xlane.xlu0 %1162
    %v1164 = vsel %vm1055, %v1129, 0.0
    %1165 = vadd.xlane.f32.xlu0 %v1164
    %v1166 = vpop.xlane.xlu0 %1165
    %v1167 = vsel %vm1055, %v1131, 0.0
    %1168 = vadd.xlane.f32.xlu0 %v1167
    %v1169 = vpop.xlane.xlu0 %1168
    %v1170 = vsel %vm1055, %v1133, 0.0
    %1171 = vadd.xlane.f32.xlu0 %v1170
    %v1172 = vpop.xlane.xlu0 %1171
    %v1173 = vsel %vm1055, %v1135, 0.0
    %1174 = vadd.xlane.f32.xlu0 %v1173
    %v1175 = vpop.xlane.xlu0 %1174
    %v1176 = vsel %vm1055, %v1137, 0.0
    %1177 = vadd.xlane.f32.xlu0 %v1176
    %v1178 = vpop.xlane.xlu0 %1177
    %v1179 = vsel %vm1055, %v1139, 0.0
    %1180 = vadd.xlane.f32.xlu0 %v1179
    %v1181 = vpop.xlane.xlu0 %1180
    %v1182 = vsel %vm1055, %v1141, 0.0
    %1183 = vadd.xlane.f32.xlu0 %v1182
    %v1184 = vpop.xlane.xlu0 %1183
    %v1185 = vsel %vm1055, %v1143, 0.0
    %1186 = vadd.xlane.f32.xlu0 %v1185
    %v1187 = vpop.xlane.xlu0 %1186
    %v1188 = vsel %vm1055, %v1145, 0.0
    %1189 = vadd.xlane.f32.xlu0 %v1188
    %v1190 = vpop.xlane.xlu0 %1189
    %v1191 = vsel %vm1055, %v1147, 0.0
    %1192 = vadd.xlane.f32.xlu0 %v1191
    %v1193 = vpop.xlane.xlu0 %1192
    %v1194 = vsel %vm1055, %v1149, 0.0
    %1195 = vadd.xlane.f32.xlu0 %v1194
    %v1196 = vpop.xlane.xlu0 %1195
    %v1197 = vsel %vm1055, %v1151, 0.0
    %1198 = vadd.xlane.f32.xlu0 %v1197
    %v1199 = vpop.xlane.xlu0 %1198
    %v1200 = vrcp.pop %v1154
    %v1201 = vrcp.pop %v1157
    %v1202 = vrcp.pop %v1160
    %v1203 = vrcp.pop %v1163
    %v1204 = vrcp.pop %v1166
    %v1205 = vrcp.pop %v1169
    %v1206 = vrcp.pop %v1172
    %v1207 = vrcp.pop %v1175
    %v1208 = vrcp.pop %v1178
    %v1209 = vrcp.pop %v1181
    %v1210 = vrcp.pop %v1184
    %v1211 = vrcp.pop %v1187
    %v1212 = vrcp.pop %v1190
    %v1213 = vrcp.pop %v1193
    %v1214 = vrcp.pop %v1196
    %v1215 = vrcp.pop %v1199
    %v1216 = vmul.f32 %v1121, %v1200
    %v1217 = vmul.f32 %v1123, %v1201
    %v1218 = vmul.f32 %v1125, %v1202
    %v1219 = vmul.f32 %v1127, %v1203
    %v1220 = vmul.f32 %v1129, %v1204
    %v1221 = vmul.f32 %v1131, %v1205
    %v1222 = vmul.f32 %v1133, %v1206
    %v1223 = vmul.f32 %v1135, %v1207
    %v1224 = vmul.f32 %v1137, %v1208
    %v1225 = vmul.f32 %v1139, %v1209
    %v1226 = vmul.f32 %v1141, %v1210
    %v1227 = vmul.f32 %v1143, %v1211
    %v1228 = vmul.f32 %v1145, %v1212
    %v1229 = vmul.f32 %v1147, %v1213
    %v1230 = vmul.f32 %v1149, %v1214
    %v1231 = vmul.f32 %v1151, %v1215
    %v1232 = vpack.c.bf16 %v1217, %v1216
    %v1233 = vpack.c.bf16 %v1219, %v1218
    %v1234 = vpack.c.bf16 %v1221, %v1220
    %v1235 = vpack.c.bf16 %v1223, %v1222
    %v1236 = vpack.c.bf16 %v1225, %v1224
    %v1237 = vpack.c.bf16 %v1227, %v1226
    %v1238 = vpack.c.bf16 %v1229, %v1228
    %v1239 = vpack.c.bf16 %v1231, %v1230
    %v1240 = vpack.c.bf16 %v469, %v469
    %v1241 = vpack.c.bf16 %v470, %v470
    %v1242 = vpack.c.bf16 %v471, %v471
    %v1243 = vpack.c.bf16 %v472, %v472
    %v1244 = vpack.c.bf16 %v501, %v501
    %v1245 = vpack.c.bf16 %v502, %v502
    %v1246 = vpack.c.bf16 %v503, %v503
    %v1247 = vpack.c.bf16 %v504, %v504
    %v1249 = vsel %vm1055, %v1232, 0
    %v1252 = vsel %vm1055, %v1240, 0
    %1254 = vmatprep.subr.bf16.mxu0 0
    %1255 = vmatpush1.bf16.xpose.msra.mxu0 %v1252
    %1256 = vmatprep.subr.bf16.mxu0 0
    %1257 = vmatpush1.bf16.xpose.msra.mxu0 0
    %1258 = vmatprep.subr.bf16.mxu0 0
    %1259 = vmatpush1.bf16.xpose.msra.mxu0 0
    %1260 = vmatprep.subr.bf16.mxu0 0
    %1261 = vmatpush1.bf16.xpose.msra.mxu0 0
    %1262 = vmatprep.subr.bf16.mxu0 0
    %1263 = vmatpush1.bf16.xpose.msra.mxu0 0
    %1264 = vmatprep.subr.bf16.mxu0 0
    %1265 = vmatpush1.bf16.xpose.msra.mxu0 0
    %1266 = vmatprep.subr.bf16.mxu0 0
    %1267 = vmatpush1.bf16.xpose.msra.mxu0 0
    %1268 = vmatprep.subr.bf16.mxu0 0
    %1269 = vmatpush1.bf16.xpose.msra.mxu0 0
    %1270 = vmatprep.subr.bf16.mxu0 0
    %1271 = vmatpush1.bf16.xpose.msra.mxu0 0
    %1272 = vmatprep.subr.bf16.mxu0 0
    %1273 = vmatpush1.bf16.xpose.msra.mxu0 0
    %1274 = vmatprep.subr.bf16.mxu0 0
    %1275 = vmatpush1.bf16.xpose.msra.mxu0 0
    %1276 = vmatprep.subr.bf16.mxu0 0
    %1277 = vmatpush1.bf16.xpose.msra.mxu0 0
    %1278 = vmatprep.subr.bf16.mxu0 0
    %1279 = vmatpush1.bf16.xpose.msra.mxu0 0
    %1280 = vmatprep.subr.bf16.mxu0 0
    %1281 = vmatpush1.bf16.xpose.msra.mxu0 0
    %1282 = vmatprep.subr.bf16.mxu0 0
    %1283 = vmatpush1.bf16.xpose.msra.mxu0 0
    %1284 = vmatprep.subr.bf16.mxu0 0
    %1285 = vmatpush1.bf16.xpose.msra.mxu0 0
    %1286 = vmatprep.mubr.bf16.mxu0 0
    %1287 = vmatmul.mubr.bf16.gmra.mrb[0].mxu0 %v1249
    %v1288 = vpop.f32.mrb[0].mxu0
    %v1289 = vadd.f32 0.0, %v1288
    %v1290 = vpop.f32.mrb[0].mxu0
    %v1291 = vpop.f32.mrb[0].mxu0
    %v1292 = vadd.f32 0.0, %v1291
    %v1293 = vpop.f32.mrb[0].mxu0
    %1294 = vdwg.mxu0
    %v1296 = vsel %vm1055, %v1233, 0
    %v1299 = vsel %vm1055, %v1241, 0
    %1301 = vmatprep.subr.bf16.mxu0 0
    %1302 = vmatpush1.bf16.xpose.msra.mxu0 %v1299
    %1303 = vmatprep.subr.bf16.mxu0 0
    %1304 = vmatpush1.bf16.xpose.msra.mxu0 0
    %1305 = vmatprep.subr.bf16.mxu0 0
    %1306 = vmatpush1.bf16.xpose.msra.mxu0 0
    %1307 = vmatprep.subr.bf16.mxu0 0
    %1308 = vmatpush1.bf16.xpose.msra.mxu0 0
    %1309 = vmatprep.subr.bf16.mxu0 0
    %1310 = vmatpush1.bf16.xpose.msra.mxu0 0
    %1311 = vmatprep.subr.bf16.mxu0 0
    %1312 = vmatpush1.bf16.xpose.msra.mxu0 0
    %1313 = vmatprep.subr.bf16.mxu0 0
    %1314 = vmatpush1.bf16.xpose.msra.mxu0 0
    %1315 = vmatprep.subr.bf16.mxu0 0
    %1316 = vmatpush1.bf16.xpose.msra.mxu0 0
    %1317 = vmatprep.subr.bf16.mxu0 0
    %1318 = vmatpush1.bf16.xpose.msra.mxu0 0
    %1319 = vmatprep.subr.bf16.mxu0 0
    %1320 = vmatpush1.bf16.xpose.msra.mxu0 0
    %1321 = vmatprep.subr.bf16.mxu0 0
    %1322 = vmatpush1.bf16.xpose.msra.mxu0 0
    %1323 = vmatprep.subr.bf16.mxu0 0
    %1324 = vmatpush1.bf16.xpose.msra.mxu0 0
    %1325 = vmatprep.subr.bf16.mxu0 0
    %1326 = vmatpush1.bf16.xpose.msra.mxu0 0
    %1327 = vmatprep.subr.bf16.mxu0 0
    %1328 = vmatpush1.bf16.xpose.msra.mxu0 0
    %1329 = vmatprep.subr.bf16.mxu0 0
    %1330 = vmatpush1.bf16.xpose.msra.mxu0 0
    %1331 = vmatprep.subr.bf16.mxu0 0
    %1332 = vmatpush1.bf16.xpose.msra.mxu0 0
    %1333 = vmatprep.mubr.bf16.mxu0 0
    %1334 = vmatmul.mubr.bf16.gmra.mrb[0].mxu0 %v1296
    %v1335 = vpop.f32.mrb[0].mxu0
    %v1336 = vadd.f32 0.0, %v1335
    %v1337 = vpop.f32.mrb[0].mxu0
    %v1338 = vpop.f32.mrb[0].mxu0
    %v1339 = vadd.f32 0.0, %v1338
    %v1340 = vpop.f32.mrb[0].mxu0
    %1341 = vdwg.mxu0
    %v1343 = vsel %vm1055, %v1234, 0
    %v1346 = vsel %vm1055, %v1242, 0
    %1348 = vmatprep.subr.bf16.mxu0 0
    %1349 = vmatpush1.bf16.xpose.msra.mxu0 %v1346
    %1350 = vmatprep.subr.bf16.mxu0 0
    %1351 = vmatpush1.bf16.xpose.msra.mxu0 0
    %1352 = vmatprep.subr.bf16.mxu0 0
    %1353 = vmatpush1.bf16.xpose.msra.mxu0 0
    %1354 = vmatprep.subr.bf16.mxu0 0
    %1355 = vmatpush1.bf16.xpose.msra.mxu0 0
    %1356 = vmatprep.subr.bf16.mxu0 0
    %1357 = vmatpush1.bf16.xpose.msra.mxu0 0
    %1358 = vmatprep.subr.bf16.mxu0 0
    %1359 = vmatpush1.bf16.xpose.msra.mxu0 0
    %1360 = vmatprep.subr.bf16.mxu0 0
    %1361 = vmatpush1.bf16.xpose.msra.mxu0 0
    %1362 = vmatprep.subr.bf16.mxu0 0
    %1363 = vmatpush1.bf16.xpose.msra.mxu0 0
    %1364 = vmatprep.subr.bf16.mxu0 0
    %1365 = vmatpush1.bf16.xpose.msra.mxu0 0
    %1366 = vmatprep.subr.bf16.mxu0 0
    %1367 = vmatpush1.bf16.xpose.msra.mxu0 0
    %1368 = vmatprep.subr.bf16.mxu0 0
    %1369 = vmatpush1.bf16.xpose.msra.mxu0 0
    %1370 = vmatprep.subr.bf16.mxu0 0
    %1371 = vmatpush1.bf16.xpose.msra.mxu0 0
    %1372 = vmatprep.subr.bf16.mxu0 0
    %1373 = vmatpush1.bf16.xpose.msra.mxu0 0
    %1374 = vmatprep.subr.bf16.mxu0 0
    %1375 = vmatpush1.bf16.xpose.msra.mxu0 0
    %1376 = vmatprep.subr.bf16.mxu0 0
    %1377 = vmatpush1.bf16.xpose.msra.mxu0 0
    %1378 = vmatprep.subr.bf16.mxu0 0
    %1379 = vmatpush1.bf16.xpose.msra.mxu0 0
    %1380 = vmatprep.mubr.bf16.mxu0 0
    %1381 = vmatmul.mubr.bf16.gmra.mrb[0].mxu0 %v1343
    %v1382 = vpop.f32.mrb[0].mxu0
    %v1383 = vadd.f32 0.0, %v1382
    %v1384 = vpop.f32.mrb[0].mxu0
    %v1385 = vpop.f32.mrb[0].mxu0
    %v1386 = vadd.f32 0.0, %v1385
    %v1387 = vpop.f32.mrb[0].mxu0
    %1388 = vdwg.mxu0
    %v1390 = vsel %vm1055, %v1235, 0
    %v1393 = vsel %vm1055, %v1243, 0
    %1395 = vmatprep.subr.bf16.mxu0 0
    %1396 = vmatpush1.bf16.xpose.msra.mxu0 %v1393
    %1397 = vmatprep.subr.bf16.mxu0 0
    %1398 = vmatpush1.bf16.xpose.msra.mxu0 0
    %1399 = vmatprep.subr.bf16.mxu0 0
    %1400 = vmatpush1.bf16.xpose.msra.mxu0 0
    %1401 = vmatprep.subr.bf16.mxu0 0
    %1402 = vmatpush1.bf16.xpose.msra.mxu0 0
    %1403 = vmatprep.subr.bf16.mxu0 0
    %1404 = vmatpush1.bf16.xpose.msra.mxu0 0
    %1405 = vmatprep.subr.bf16.mxu0 0
    %1406 = vmatpush1.bf16.xpose.msra.mxu0 0
    %1407 = vmatprep.subr.bf16.mxu0 0
    %1408 = vmatpush1.bf16.xpose.msra.mxu0 0
    %1409 = vmatprep.subr.bf16.mxu0 0
    %1410 = vmatpush1.bf16.xpose.msra.mxu0 0
    %1411 = vmatprep.subr.bf16.mxu0 0
    %1412 = vmatpush1.bf16.xpose.msra.mxu0 0
    %1413 = vmatprep.subr.bf16.mxu0 0
    %1414 = vmatpush1.bf16.xpose.msra.mxu0 0
    %1415 = vmatprep.subr.bf16.mxu0 0
    %1416 = vmatpush1.bf16.xpose.msra.mxu0 0
    %1417 = vmatprep.subr.bf16.mxu0 0
    %1418 = vmatpush1.bf16.xpose.msra.mxu0 0
    %1419 = vmatprep.subr.bf16.mxu0 0
    %1420 = vmatpush1.bf16.xpose.msra.mxu0 0
    %1421 = vmatprep.subr.bf16.mxu0 0
    %1422 = vmatpush1.bf16.xpose.msra.mxu0 0
    %1423 = vmatprep.subr.bf16.mxu0 0
    %1424 = vmatpush1.bf16.xpose.msra.mxu0 0
    %1425 = vmatprep.subr.bf16.mxu0 0
    %1426 = vmatpush1.bf16.xpose.msra.mxu0 0
    %1427 = vmatprep.mubr.bf16.mxu0 0
    %1428 = vmatmul.mubr.bf16.gmra.mrb[0].mxu0 %v1390
    %v1429 = vpop.f32.mrb[0].mxu0
    %v1430 = vadd.f32 0.0, %v1429
    %v1431 = vpop.f32.mrb[0].mxu0
    %v1432 = vpop.f32.mrb[0].mxu0
    %v1433 = vadd.f32 0.0, %v1432
    %v1434 = vpop.f32.mrb[0].mxu0
    %1435 = vdwg.mxu0
    %v1437 = vsel %vm1055, %v1236, 0
    %v1440 = vsel %vm1055, %v1244, 0
    %1442 = vmatprep.subr.bf16.mxu0 0
    %1443 = vmatpush1.bf16.xpose.msra.mxu0 %v1440
    %1444 = vmatprep.subr.bf16.mxu0 0
    %1445 = vmatpush1.bf16.xpose.msra.mxu0 0
    %1446 = vmatprep.subr.bf16.mxu0 0
    %1447 = vmatpush1.bf16.xpose.msra.mxu0 0
    %1448 = vmatprep.subr.bf16.mxu0 0
    %1449 = vmatpush1.bf16.xpose.msra.mxu0 0
    %1450 = vmatprep.subr.bf16.mxu0 0
    %1451 = vmatpush1.bf16.xpose.msra.mxu0 0
    %1452 = vmatprep.subr.bf16.mxu0 0
    %1453 = vmatpush1.bf16.xpose.msra.mxu0 0
    %1454 = vmatprep.subr.bf16.mxu0 0
    %1455 = vmatpush1.bf16.xpose.msra.mxu0 0
    %1456 = vmatprep.subr.bf16.mxu0 0
    %1457 = vmatpush1.bf16.xpose.msra.mxu0 0
    %1458 = vmatprep.subr.bf16.mxu0 0
    %1459 = vmatpush1.bf16.xpose.msra.mxu0 0
    %1460 = vmatprep.subr.bf16.mxu0 0
    %1461 = vmatpush1.bf16.xpose.msra.mxu0 0
    %1462 = vmatprep.subr.bf16.mxu0 0
    %1463 = vmatpush1.bf16.xpose.msra.mxu0 0
    %1464 = vmatprep.subr.bf16.mxu0 0
    %1465 = vmatpush1.bf16.xpose.msra.mxu0 0
    %1466 = vmatprep.subr.bf16.mxu0 0
    %1467 = vmatpush1.bf16.xpose.msra.mxu0 0
    %1468 = vmatprep.subr.bf16.mxu0 0
    %1469 = vmatpush1.bf16.xpose.msra.mxu0 0
    %1470 = vmatprep.subr.bf16.mxu0 0
    %1471 = vmatpush1.bf16.xpose.msra.mxu0 0
    %1472 = vmatprep.subr.bf16.mxu0 0
    %1473 = vmatpush1.bf16.xpose.msra.mxu0 0
    %1474 = vmatprep.mubr.bf16.mxu0 0
    %1475 = vmatmul.mubr.bf16.gmra.mrb[0].mxu0 %v1437
    %v1476 = vpop.f32.mrb[0].mxu0
    %v1477 = vadd.f32 0.0, %v1476
    %v1478 = vpop.f32.mrb[0].mxu0
    %v1479 = vpop.f32.mrb[0].mxu0
    %v1480 = vadd.f32 0.0, %v1479
    %v1481 = vpop.f32.mrb[0].mxu0
    %1482 = vdwg.mxu0
    %v1484 = vsel %vm1055, %v1237, 0
    %v1487 = vsel %vm1055, %v1245, 0
    %1489 = vmatprep.subr.bf16.mxu0 0
    %1490 = vmatpush1.bf16.xpose.msra.mxu0 %v1487
    %1491 = vmatprep.subr.bf16.mxu0 0
    %1492 = vmatpush1.bf16.xpose.msra.mxu0 0
    %1493 = vmatprep.subr.bf16.mxu0 0
    %1494 = vmatpush1.bf16.xpose.msra.mxu0 0
    %1495 = vmatprep.subr.bf16.mxu0 0
    %1496 = vmatpush1.bf16.xpose.msra.mxu0 0
    %1497 = vmatprep.subr.bf16.mxu0 0
    %1498 = vmatpush1.bf16.xpose.msra.mxu0 0
    %1499 = vmatprep.subr.bf16.mxu0 0
    %1500 = vmatpush1.bf16.xpose.msra.mxu0 0
    %1501 = vmatprep.subr.bf16.mxu0 0
    %1502 = vmatpush1.bf16.xpose.msra.mxu0 0
    %1503 = vmatprep.subr.bf16.mxu0 0
    %1504 = vmatpush1.bf16.xpose.msra.mxu0 0
    %1505 = vmatprep.subr.bf16.mxu0 0
    %1506 = vmatpush1.bf16.xpose.msra.mxu0 0
    %1507 = vmatprep.subr.bf16.mxu0 0
    %1508 = vmatpush1.bf16.xpose.msra.mxu0 0
    %1509 = vmatprep.subr.bf16.mxu0 0
    %1510 = vmatpush1.bf16.xpose.msra.mxu0 0
    %1511 = vmatprep.subr.bf16.mxu0 0
    %1512 = vmatpush1.bf16.xpose.msra.mxu0 0
    %1513 = vmatprep.subr.bf16.mxu0 0
    %1514 = vmatpush1.bf16.xpose.msra.mxu0 0
    %1515 = vmatprep.subr.bf16.mxu0 0
    %1516 = vmatpush1.bf16.xpose.msra.mxu0 0
    %1517 = vmatprep.subr.bf16.mxu0 0
    %1518 = vmatpush1.bf16.xpose.msra.mxu0 0
    %1519 = vmatprep.subr.bf16.mxu0 0
    %1520 = vmatpush1.bf16.xpose.msra.mxu0 0
    %1521 = vmatprep.mubr.bf16.mxu0 0
    %1522 = vmatmul.mubr.bf16.gmra.mrb[0].mxu0 %v1484
    %v1523 = vpop.f32.mrb[0].mxu0
    %v1524 = vadd.f32 0.0, %v1523
    %v1525 = vpop.f32.mrb[0].mxu0
    %v1526 = vpop.f32.mrb[0].mxu0
    %v1527 = vadd.f32 0.0, %v1526
    %v1528 = vpop.f32.mrb[0].mxu0
    %1529 = vdwg.mxu0
    %v1531 = vsel %vm1055, %v1238, 0
    %v1534 = vsel %vm1055, %v1246, 0
    %1536 = vmatprep.subr.bf16.mxu0 0
    %1537 = vmatpush1.bf16.xpose.msra.mxu0 %v1534
    %1538 = vmatprep.subr.bf16.mxu0 0
    %1539 = vmatpush1.bf16.xpose.msra.mxu0 0
    %1540 = vmatprep.subr.bf16.mxu0 0
    %1541 = vmatpush1.bf16.xpose.msra.mxu0 0
    %1542 = vmatprep.subr.bf16.mxu0 0
    %1543 = vmatpush1.bf16.xpose.msra.mxu0 0
    %1544 = vmatprep.subr.bf16.mxu0 0
    %1545 = vmatpush1.bf16.xpose.msra.mxu0 0
    %1546 = vmatprep.subr.bf16.mxu0 0
    %1547 = vmatpush1.bf16.xpose.msra.mxu0 0
    %1548 = vmatprep.subr.bf16.mxu0 0
    %1549 = vmatpush1.bf16.xpose.msra.mxu0 0
    %1550 = vmatprep.subr.bf16.mxu0 0
    %1551 = vmatpush1.bf16.xpose.msra.mxu0 0
    %1552 = vmatprep.subr.bf16.mxu0 0
    %1553 = vmatpush1.bf16.xpose.msra.mxu0 0
    %1554 = vmatprep.subr.bf16.mxu0 0
    %1555 = vmatpush1.bf16.xpose.msra.mxu0 0
    %1556 = vmatprep.subr.bf16.mxu0 0
    %1557 = vmatpush1.bf16.xpose.msra.mxu0 0
    %1558 = vmatprep.subr.bf16.mxu0 0
    %1559 = vmatpush1.bf16.xpose.msra.mxu0 0
    %1560 = vmatprep.subr.bf16.mxu0 0
    %1561 = vmatpush1.bf16.xpose.msra.mxu0 0
    %1562 = vmatprep.subr.bf16.mxu0 0
    %1563 = vmatpush1.bf16.xpose.msra.mxu0 0
    %1564 = vmatprep.subr.bf16.mxu0 0
    %1565 = vmatpush1.bf16.xpose.msra.mxu0 0
    %1566 = vmatprep.subr.bf16.mxu0 0
    %1567 = vmatpush1.bf16.xpose.msra.mxu0 0
    %1568 = vmatprep.mubr.bf16.mxu0 0
    %1569 = vmatmul.mubr.bf16.gmra.mrb[0].mxu0 %v1531
    %v1570 = vpop.f32.mrb[0].mxu0
    %v1571 = vadd.f32 0.0, %v1570
    %v1572 = vpop.f32.mrb[0].mxu0
    %v1573 = vpop.f32.mrb[0].mxu0
    %v1574 = vadd.f32 0.0, %v1573
    %v1575 = vpop.f32.mrb[0].mxu0
    %1576 = vdwg.mxu0
    %v1578 = vsel %vm1055, %v1239, 0
    %v1581 = vsel %vm1055, %v1247, 0
    %1583 = vmatprep.subr.bf16.mxu0 0
    %1584 = vmatpush1.bf16.xpose.msra.mxu0 %v1581
    %1585 = vmatprep.subr.bf16.mxu0 0
    %1586 = vmatpush1.bf16.xpose.msra.mxu0 0
    %1587 = vmatprep.subr.bf16.mxu0 0
    %1588 = vmatpush1.bf16.xpose.msra.mxu0 0
    %1589 = vmatprep.subr.bf16.mxu0 0
    %1590 = vmatpush1.bf16.xpose.msra.mxu0 0
    %1591 = vmatprep.subr.bf16.mxu0 0
    %1592 = vmatpush1.bf16.xpose.msra.mxu0 0
    %1593 = vmatprep.subr.bf16.mxu0 0
    %1594 = vmatpush1.bf16.xpose.msra.mxu0 0
    %1595 = vmatprep.subr.bf16.mxu0 0
    %1596 = vmatpush1.bf16.xpose.msra.mxu0 0
    %1597 = vmatprep.subr.bf16.mxu0 0
    %1598 = vmatpush1.bf16.xpose.msra.mxu0 0
    %1599 = vmatprep.subr.bf16.mxu0 0
    %1600 = vmatpush1.bf16.xpose.msra.mxu0 0
    %1601 = vmatprep.subr.bf16.mxu0 0
    %1602 = vmatpush1.bf16.xpose.msra.mxu0 0
    %1603 = vmatprep.subr.bf16.mxu0 0
    %1604 = vmatpush1.bf16.xpose.msra.mxu0 0
    %1605 = vmatprep.subr.bf16.mxu0 0
    %1606 = vmatpush1.bf16.xpose.msra.mxu0 0
    %1607 = vmatprep.subr.bf16.mxu0 0
    %1608 = vmatpush1.bf16.xpose.msra.mxu0 0
    %1609 = vmatprep.subr.bf16.mxu0 0
    %1610 = vmatpush1.bf16.xpose.msra.mxu0 0
    %1611 = vmatprep.subr.bf16.mxu0 0
    %1612 = vmatpush1.bf16.xpose.msra.mxu0 0
    %1613 = vmatprep.subr.bf16.mxu0 0
    %1614 = vmatpush1.bf16.xpose.msra.mxu0 0
    %1615 = vmatprep.mubr.bf16.mxu0 0
    %1616 = vmatmul.mubr.bf16.gmra.mrb[0].mxu0 %v1578
    %v1617 = vpop.f32.mrb[0].mxu0
    %v1618 = vadd.f32 0.0, %v1617
    %v1619 = vpop.f32.mrb[0].mxu0
    %v1620 = vpop.f32.mrb[0].mxu0
    %v1621 = vadd.f32 0.0, %v1620
    %v1622 = vpop.f32.mrb[0].mxu0
    %1623 = vdwg.mxu0
    %1624 = vxpose.xlu0.b32.start [1/16] %v1289, 128
    %1625 = vxpose.xlu0.b32.cont [2/16] %v1292, 128
    %1626 = vxpose.xlu0.b32.cont [3/16] 0.0, 128
    %1627 = vxpose.xlu0.b32.cont [4/16] 0.0, 128
    %1628 = vxpose.xlu0.b32.cont [5/16] 0.0, 128
    %1629 = vxpose.xlu0.b32.cont [6/16] 0.0, 128
    %1630 = vxpose.xlu0.b32.cont [7/16] 0.0, 128
    %1631 = vxpose.xlu0.b32.cont [8/16] 0.0, 128
    %1632 = vxpose.xlu0.b32.cont [9/16] 0.0, 128
    %1633 = vxpose.xlu0.b32.cont [10/16] 0.0, 128
    %1634 = vxpose.xlu0.b32.cont [11/16] 0.0, 128
    %1635 = vxpose.xlu0.b32.cont [12/16] 0.0, 128
    %1636 = vxpose.xlu0.b32.cont [13/16] 0.0, 128
    %1637 = vxpose.xlu0.b32.cont [14/16] 0.0, 128
    %1638 = vxpose.xlu0.b32.cont [15/16] 0.0, 128
    %1639 = vxpose.xlu0.b32.end [16/16] 0.0, 128
    %v1640 = vpop.trf.xlu0
    %v1641 = vpop.trf.xlu0
    %v1642 = vpop.trf.xlu0
    %v1643 = vpop.trf.xlu0
    %v1644 = vpop.trf.xlu0
    %v1645 = vpop.trf.xlu0
    %v1646 = vpop.trf.xlu0
    %v1647 = vpop.trf.xlu0
    %v1648 = vpop.trf.xlu0
    %v1649 = vpop.trf.xlu0
    %v1650 = vpop.trf.xlu0
    %v1651 = vpop.trf.xlu0
    %v1652 = vpop.trf.xlu0
    %v1653 = vpop.trf.xlu0
    %v1654 = vpop.trf.xlu0
    %v1655 = vpop.trf.xlu0
    %1656 = vxpose.xlu0.b32.start [1/16] %v1336, 128
    %1657 = vxpose.xlu0.b32.cont [2/16] %v1339, 128
    %1658 = vxpose.xlu0.b32.cont [3/16] 0.0, 128
    %1659 = vxpose.xlu0.b32.cont [4/16] 0.0, 128
    %1660 = vxpose.xlu0.b32.cont [5/16] 0.0, 128
    %1661 = vxpose.xlu0.b32.cont [6/16] 0.0, 128
    %1662 = vxpose.xlu0.b32.cont [7/16] 0.0, 128
    %1663 = vxpose.xlu0.b32.cont [8/16] 0.0, 128
    %1664 = vxpose.xlu0.b32.cont [9/16] 0.0, 128
    %1665 = vxpose.xlu0.b32.cont [10/16] 0.0, 128
    %1666 = vxpose.xlu0.b32.cont [11/16] 0.0, 128
    %1667 = vxpose.xlu0.b32.cont [12/16] 0.0, 128
    %1668 = vxpose.xlu0.b32.cont [13/16] 0.0, 128
    %1669 = vxpose.xlu0.b32.cont [14/16] 0.0, 128
    %1670 = vxpose.xlu0.b32.cont [15/16] 0.0, 128
    %1671 = vxpose.xlu0.b32.end [16/16] 0.0, 128
    %v1672 = vpop.trf.xlu0
    %v1673 = vpop.trf.xlu0
    %v1674 = vpop.trf.xlu0
    %v1675 = vpop.trf.xlu0
    %v1676 = vpop.trf.xlu0
    %v1677 = vpop.trf.xlu0
    %v1678 = vpop.trf.xlu0
    %v1679 = vpop.trf.xlu0
    %v1680 = vpop.trf.xlu0
    %v1681 = vpop.trf.xlu0
    %v1682 = vpop.trf.xlu0
    %v1683 = vpop.trf.xlu0
    %v1684 = vpop.trf.xlu0
    %v1685 = vpop.trf.xlu0
    %v1686 = vpop.trf.xlu0
    %v1687 = vpop.trf.xlu0
    %1688 = vxpose.xlu0.b32.start [1/16] %v1383, 128
    %1689 = vxpose.xlu0.b32.cont [2/16] %v1386, 128
    %1690 = vxpose.xlu0.b32.cont [3/16] 0.0, 128
    %1691 = vxpose.xlu0.b32.cont [4/16] 0.0, 128
    %1692 = vxpose.xlu0.b32.cont [5/16] 0.0, 128
    %1693 = vxpose.xlu0.b32.cont [6/16] 0.0, 128
    %1694 = vxpose.xlu0.b32.cont [7/16] 0.0, 128
    %1695 = vxpose.xlu0.b32.cont [8/16] 0.0, 128
    %1696 = vxpose.xlu0.b32.cont [9/16] 0.0, 128
    %1697 = vxpose.xlu0.b32.cont [10/16] 0.0, 128
    %1698 = vxpose.xlu0.b32.cont [11/16] 0.0, 128
    %1699 = vxpose.xlu0.b32.cont [12/16] 0.0, 128
    %1700 = vxpose.xlu0.b32.cont [13/16] 0.0, 128
    %1701 = vxpose.xlu0.b32.cont [14/16] 0.0, 128
    %1702 = vxpose.xlu0.b32.cont [15/16] 0.0, 128
    %1703 = vxpose.xlu0.b32.end [16/16] 0.0, 128
    %v1704 = vpop.trf.xlu0
    %v1705 = vpop.trf.xlu0
    %v1706 = vpop.trf.xlu0
    %v1707 = vpop.trf.xlu0
    %v1708 = vpop.trf.xlu0
    %v1709 = vpop.trf.xlu0
    %v1710 = vpop.trf.xlu0
    %v1711 = vpop.trf.xlu0
    %v1712 = vpop.trf.xlu0
    %v1713 = vpop.trf.xlu0
    %v1714 = vpop.trf.xlu0
    %v1715 = vpop.trf.xlu0
    %v1716 = vpop.trf.xlu0
    %v1717 = vpop.trf.xlu0
    %v1718 = vpop.trf.xlu0
    %v1719 = vpop.trf.xlu0
    %1720 = vxpose.xlu0.b32.start [1/16] %v1430, 128
    %1721 = vxpose.xlu0.b32.cont [2/16] %v1433, 128
    %1722 = vxpose.xlu0.b32.cont [3/16] 0.0, 128
    %1723 = vxpose.xlu0.b32.cont [4/16] 0.0, 128
    %1724 = vxpose.xlu0.b32.cont [5/16] 0.0, 128
    %1725 = vxpose.xlu0.b32.cont [6/16] 0.0, 128
    %1726 = vxpose.xlu0.b32.cont [7/16] 0.0, 128
    %1727 = vxpose.xlu0.b32.cont [8/16] 0.0, 128
    %1728 = vxpose.xlu0.b32.cont [9/16] 0.0, 128
    %1729 = vxpose.xlu0.b32.cont [10/16] 0.0, 128
    %1730 = vxpose.xlu0.b32.cont [11/16] 0.0, 128
    %1731 = vxpose.xlu0.b32.cont [12/16] 0.0, 128
    %1732 = vxpose.xlu0.b32.cont [13/16] 0.0, 128
    %1733 = vxpose.xlu0.b32.cont [14/16] 0.0, 128
    %1734 = vxpose.xlu0.b32.cont [15/16] 0.0, 128
    %1735 = vxpose.xlu0.b32.end [16/16] 0.0, 128
    %v1736 = vpop.trf.xlu0
    %v1737 = vpop.trf.xlu0
    %v1738 = vpop.trf.xlu0
    %v1739 = vpop.trf.xlu0
    %v1740 = vpop.trf.xlu0
    %v1741 = vpop.trf.xlu0
    %v1742 = vpop.trf.xlu0
    %v1743 = vpop.trf.xlu0
    %v1744 = vpop.trf.xlu0
    %v1745 = vpop.trf.xlu0
    %v1746 = vpop.trf.xlu0
    %v1747 = vpop.trf.xlu0
    %v1748 = vpop.trf.xlu0
    %v1749 = vpop.trf.xlu0
    %v1750 = vpop.trf.xlu0
    %v1751 = vpop.trf.xlu0
    %1752 = vxpose.xlu0.b32.start [1/16] %v1477, 128
    %1753 = vxpose.xlu0.b32.cont [2/16] %v1480, 128
    %1754 = vxpose.xlu0.b32.cont [3/16] 0.0, 128
    %1755 = vxpose.xlu0.b32.cont [4/16] 0.0, 128
    %1756 = vxpose.xlu0.b32.cont [5/16] 0.0, 128
    %1757 = vxpose.xlu0.b32.cont [6/16] 0.0, 128
    %1758 = vxpose.xlu0.b32.cont [7/16] 0.0, 128
    %1759 = vxpose.xlu0.b32.cont [8/16] 0.0, 128
    %1760 = vxpose.xlu0.b32.cont [9/16] 0.0, 128
    %1761 = vxpose.xlu0.b32.cont [10/16] 0.0, 128
    %1762 = vxpose.xlu0.b32.cont [11/16] 0.0, 128
    %1763 = vxpose.xlu0.b32.cont [12/16] 0.0, 128
    %1764 = vxpose.xlu0.b32.cont [13/16] 0.0, 128
    %1765 = vxpose.xlu0.b32.cont [14/16] 0.0, 128
    %1766 = vxpose.xlu0.b32.cont [15/16] 0.0, 128
    %1767 = vxpose.xlu0.b32.end [16/16] 0.0, 128
    %v1768 = vpop.trf.xlu0
    %v1769 = vpop.trf.xlu0
    %v1770 = vpop.trf.xlu0
    %v1771 = vpop.trf.xlu0
    %v1772 = vpop.trf.xlu0
    %v1773 = vpop.trf.xlu0
    %v1774 = vpop.trf.xlu0
    %v1775 = vpop.trf.xlu0
    %v1776 = vpop.trf.xlu0
    %v1777 = vpop.trf.xlu0
    %v1778 = vpop.trf.xlu0
    %v1779 = vpop.trf.xlu0
    %v1780 = vpop.trf.xlu0
    %v1781 = vpop.trf.xlu0
    %v1782 = vpop.trf.xlu0
    %v1783 = vpop.trf.xlu0
    %1784 = vxpose.xlu0.b32.start [1/16] %v1524, 128
    %1785 = vxpose.xlu0.b32.cont [2/16] %v1527, 128
    %1786 = vxpose.xlu0.b32.cont [3/16] 0.0, 128
    %1787 = vxpose.xlu0.b32.cont [4/16] 0.0, 128
    %1788 = vxpose.xlu0.b32.cont [5/16] 0.0, 128
    %1789 = vxpose.xlu0.b32.cont [6/16] 0.0, 128
    %1790 = vxpose.xlu0.b32.cont [7/16] 0.0, 128
    %1791 = vxpose.xlu0.b32.cont [8/16] 0.0, 128
    %1792 = vxpose.xlu0.b32.cont [9/16] 0.0, 128
    %1793 = vxpose.xlu0.b32.cont [10/16] 0.0, 128
    %1794 = vxpose.xlu0.b32.cont [11/16] 0.0, 128
    %1795 = vxpose.xlu0.b32.cont [12/16] 0.0, 128
    %1796 = vxpose.xlu0.b32.cont [13/16] 0.0, 128
    %1797 = vxpose.xlu0.b32.cont [14/16] 0.0, 128
    %1798 = vxpose.xlu0.b32.cont [15/16] 0.0, 128
    %1799 = vxpose.xlu0.b32.end [16/16] 0.0, 128
    %v1800 = vpop.trf.xlu0
    %v1801 = vpop.trf.xlu0
    %v1802 = vpop.trf.xlu0
    %v1803 = vpop.trf.xlu0
    %v1804 = vpop.trf.xlu0
    %v1805 = vpop.trf.xlu0
    %v1806 = vpop.trf.xlu0
    %v1807 = vpop.trf.xlu0
    %v1808 = vpop.trf.xlu0
    %v1809 = vpop.trf.xlu0
    %v1810 = vpop.trf.xlu0
    %v1811 = vpop.trf.xlu0
    %v1812 = vpop.trf.xlu0
    %v1813 = vpop.trf.xlu0
    %v1814 = vpop.trf.xlu0
    %v1815 = vpop.trf.xlu0
    %1816 = vxpose.xlu0.b32.start [1/16] %v1571, 128
    %1817 = vxpose.xlu0.b32.cont [2/16] %v1574, 128
    %1818 = vxpose.xlu0.b32.cont [3/16] 0.0, 128
    %1819 = vxpose.xlu0.b32.cont [4/16] 0.0, 128
    %1820 = vxpose.xlu0.b32.cont [5/16] 0.0, 128
    %1821 = vxpose.xlu0.b32.cont [6/16] 0.0, 128
    %1822 = vxpose.xlu0.b32.cont [7/16] 0.0, 128
    %1823 = vxpose.xlu0.b32.cont [8/16] 0.0, 128
    %1824 = vxpose.xlu0.b32.cont [9/16] 0.0, 128
    %1825 = vxpose.xlu0.b32.cont [10/16] 0.0, 128
    %1826 = vxpose.xlu0.b32.cont [11/16] 0.0, 128
    %1827 = vxpose.xlu0.b32.cont [12/16] 0.0, 128
    %1828 = vxpose.xlu0.b32.cont [13/16] 0.0, 128
    %1829 = vxpose.xlu0.b32.cont [14/16] 0.0, 128
    %1830 = vxpose.xlu0.b32.cont [15/16] 0.0, 128
    %1831 = vxpose.xlu0.b32.end [16/16] 0.0, 128
    %v1832 = vpop.trf.xlu0
    %v1833 = vpop.trf.xlu0
    %v1834 = vpop.trf.xlu0
    %v1835 = vpop.trf.xlu0
    %v1836 = vpop.trf.xlu0
    %v1837 = vpop.trf.xlu0
    %v1838 = vpop.trf.xlu0
    %v1839 = vpop.trf.xlu0
    %v1840 = vpop.trf.xlu0
    %v1841 = vpop.trf.xlu0
    %v1842 = vpop.trf.xlu0
    %v1843 = vpop.trf.xlu0
    %v1844 = vpop.trf.xlu0
    %v1845 = vpop.trf.xlu0
    %v1846 = vpop.trf.xlu0
    %v1847 = vpop.trf.xlu0
    %1848 = vxpose.xlu0.b32.start [1/16] %v1618, 128
    %1849 = vxpose.xlu0.b32.cont [2/16] %v1621, 128
    %1850 = vxpose.xlu0.b32.cont [3/16] 0.0, 128
    %1851 = vxpose.xlu0.b32.cont [4/16] 0.0, 128
    %1852 = vxpose.xlu0.b32.cont [5/16] 0.0, 128
    %1853 = vxpose.xlu0.b32.cont [6/16] 0.0, 128
    %1854 = vxpose.xlu0.b32.cont [7/16] 0.0, 128
    %1855 = vxpose.xlu0.b32.cont [8/16] 0.0, 128
    %1856 = vxpose.xlu0.b32.cont [9/16] 0.0, 128
    %1857 = vxpose.xlu0.b32.cont [10/16] 0.0, 128
    %1858 = vxpose.xlu0.b32.cont [11/16] 0.0, 128
    %1859 = vxpose.xlu0.b32.cont [12/16] 0.0, 128
    %1860 = vxpose.xlu0.b32.cont [13/16] 0.0, 128
    %1861 = vxpose.xlu0.b32.cont [14/16] 0.0, 128
    %1862 = vxpose.xlu0.b32.cont [15/16] 0.0, 128
    %1863 = vxpose.xlu0.b32.end [16/16] 0.0, 128
    %v1864 = vpop.trf.xlu0
    %v1865 = vpop.trf.xlu0
    %v1866 = vpop.trf.xlu0
    %v1867 = vpop.trf.xlu0
    %v1868 = vpop.trf.xlu0
    %v1869 = vpop.trf.xlu0
    %v1870 = vpop.trf.xlu0
    %v1871 = vpop.trf.xlu0
    %v1872 = vpop.trf.xlu0
    %v1873 = vpop.trf.xlu0
    %v1874 = vpop.trf.xlu0
    %v1875 = vpop.trf.xlu0
    %v1876 = vpop.trf.xlu0
    %v1877 = vpop.trf.xlu0
    %v1878 = vpop.trf.xlu0
    %v1879 = vpop.trf.xlu0
    %1880 = vxpose.xlu0.b32.start [1/16] %v1640, 128
    %1881 = vxpose.xlu0.b32.cont [2/16] %v1672, 128
    %1882 = vxpose.xlu0.b32.cont [3/16] %v1704, 128
    %1883 = vxpose.xlu0.b32.cont [4/16] %v1736, 128
    %1884 = vxpose.xlu0.b32.cont [5/16] 0.0, 128
    %1885 = vxpose.xlu0.b32.cont [6/16] 0.0, 128
    %1886 = vxpose.xlu0.b32.cont [7/16] 0.0, 128
    %1887 = vxpose.xlu0.b32.cont [8/16] 0.0, 128
    %1888 = vxpose.xlu0.b32.cont [9/16] 0.0, 128
    %1889 = vxpose.xlu0.b32.cont [10/16] 0.0, 128
    %1890 = vxpose.xlu0.b32.cont [11/16] 0.0, 128
    %1891 = vxpose.xlu0.b32.cont [12/16] 0.0, 128
    %1892 = vxpose.xlu0.b32.cont [13/16] 0.0, 128
    %1893 = vxpose.xlu0.b32.cont [14/16] 0.0, 128
    %1894 = vxpose.xlu0.b32.cont [15/16] 0.0, 128
    %1895 = vxpose.xlu0.b32.end [16/16] 0.0, 128
    %v1896 = vpop.trf.xlu0
    %v1897 = vpop.trf.xlu0
    %v1898 = vpop.trf.xlu0
    %v1899 = vpop.trf.xlu0
    %v1900 = vpop.trf.xlu0
    %v1901 = vpop.trf.xlu0
    %v1902 = vpop.trf.xlu0
    %v1903 = vpop.trf.xlu0
    %v1904 = vpop.trf.xlu0
    %v1905 = vpop.trf.xlu0
    %v1906 = vpop.trf.xlu0
    %v1907 = vpop.trf.xlu0
    %v1908 = vpop.trf.xlu0
    %v1909 = vpop.trf.xlu0
    %v1910 = vpop.trf.xlu0
    %v1911 = vpop.trf.xlu0
    %1912 = vxpose.xlu0.b32.start [1/16] %v1768, 128
    %1913 = vxpose.xlu0.b32.cont [2/16] %v1800, 128
    %1914 = vxpose.xlu0.b32.cont [3/16] %v1832, 128
    %1915 = vxpose.xlu0.b32.cont [4/16] %v1864, 128
    %1916 = vxpose.xlu0.b32.cont [5/16] 0.0, 128
    %1917 = vxpose.xlu0.b32.cont [6/16] 0.0, 128
    %1918 = vxpose.xlu0.b32.cont [7/16] 0.0, 128
    %1919 = vxpose.xlu0.b32.cont [8/16] 0.0, 128
    %1920 = vxpose.xlu0.b32.cont [9/16] 0.0, 128
    %1921 = vxpose.xlu0.b32.cont [10/16] 0.0, 128
    %1922 = vxpose.xlu0.b32.cont [11/16] 0.0, 128
    %1923 = vxpose.xlu0.b32.cont [12/16] 0.0, 128
    %1924 = vxpose.xlu0.b32.cont [13/16] 0.0, 128
    %1925 = vxpose.xlu0.b32.cont [14/16] 0.0, 128
    %1926 = vxpose.xlu0.b32.cont [15/16] 0.0, 128
    %1927 = vxpose.xlu0.b32.end [16/16] 0.0, 128
    %v1928 = vpop.trf.xlu0
    %v1929 = vpop.trf.xlu0
    %v1930 = vpop.trf.xlu0
    %v1931 = vpop.trf.xlu0
    %v1932 = vpop.trf.xlu0
    %v1933 = vpop.trf.xlu0
    %v1934 = vpop.trf.xlu0
    %v1935 = vpop.trf.xlu0
    %v1936 = vpop.trf.xlu0
    %v1937 = vpop.trf.xlu0
    %v1938 = vpop.trf.xlu0
    %v1939 = vpop.trf.xlu0
    %v1940 = vpop.trf.xlu0
    %v1941 = vpop.trf.xlu0
    %v1942 = vpop.trf.xlu0
    %v1943 = vpop.trf.xlu0
    %v1944 = vld [vmem:[%s4] sm:$0xf]
    %v1945 = vld [vmem:[%s4 + $0x4] sm:$0xf]
    %v1946 = vld [vmem:[%s4 + $0x8] sm:$0xf]
    %v1947 = vld [vmem:[%s4 + $0xc] sm:$0xf]
    %v1948 = vpack.c.bf16 %v1897, %v1896
    %v1949 = vpack.c.bf16 %v1929, %v1928
    %v1950 = vlaneseq
    %v1951 = vshrl.u32 %v1950, 7
    %v1952 = vsub.s32 2, %v1951
    %v1953 = vrot.slane %v152, %v1952
    %v1958 = vunpack.c.l.b16 %v1944
    %v1959 = vunpack.c.l.b16 %v1945
    %v1960 = vunpack.c.l.b16 %v1946
    %v1961 = vunpack.c.l.b16 %v1947
    %v1962 = vpack.c.b16 %v1959, %v1958
    %v1963 = vpack.c.b16 %v1961, %v1960
    %v1967 = vsel %vm154, %v1948, 0
    %v1970 = vsel %vm154, %v1949, 0
    %1972 = vmatprep.subr.bf16.mxu0 0
    %1973 = vmatpush1.bf16.msra.mxu0 %v1962
    %1974 = vmatprep.subr.bf16.mxu0 0
    %1975 = vmatpush1.bf16.msra.mxu0 %v1963
    %1976 = vmatprep.subr.bf16.mxu0 0
    %1977 = vmatpush1.bf16.msra.mxu0 0
    %1978 = vmatprep.subr.bf16.mxu0 0
    %1979 = vmatpush1.bf16.msra.mxu0 0
    %1980 = vmatprep.subr.bf16.mxu0 0
    %1981 = vmatpush1.bf16.msra.mxu0 0
    %1982 = vmatprep.subr.bf16.mxu0 0
    %1983 = vmatpush1.bf16.msra.mxu0 0
    %1984 = vmatprep.subr.bf16.mxu0 0
    %1985 = vmatpush1.bf16.msra.mxu0 0
    %1986 = vmatprep.subr.bf16.mxu0 0
    %1987 = vmatpush1.bf16.msra.mxu0 0
    %1988 = vmatprep.subr.bf16.mxu0 0
    %1989 = vmatpush1.bf16.msra.mxu0 0
    %1990 = vmatprep.subr.bf16.mxu0 0
    %1991 = vmatpush1.bf16.msra.mxu0 0
    %1992 = vmatprep.subr.bf16.mxu0 0
    %1993 = vmatpush1.bf16.msra.mxu0 0
    %1994 = vmatprep.subr.bf16.mxu0 0
    %1995 = vmatpush1.bf16.msra.mxu0 0
    %1996 = vmatprep.subr.bf16.mxu0 0
    %1997 = vmatpush1.bf16.msra.mxu0 0
    %1998 = vmatprep.subr.bf16.mxu0 0
    %1999 = vmatpush1.bf16.msra.mxu0 0
    %2000 = vmatprep.subr.bf16.mxu0 0
    %2001 = vmatpush1.bf16.msra.mxu0 0
    %2002 = vmatprep.subr.bf16.mxu0 0
    %2003 = vmatpush1.bf16.msra.mxu0 0
    %2004 = vmatprep.mubr.bf16.mxu0 0
    %2005 = vmatmul.mubr.bf16.gmra.mrb[0].mxu0 %v1967
    %v2006 = vpop.f32.mrb[0].mxu0
    %v2007 = vadd.f32 %v1953, %v2006
    %v2008 = vpop.f32.mrb[0].mxu0
    %v2009 = vpop.f32.mrb[0].mxu0
    %v2010 = vadd.f32 %v1953, %v2009
    %v2011 = vpop.f32.mrb[0].mxu0
    %2012 = vmatprep.mubr.bf16.mxu0 0
    %2013 = vmatmul.mubr.bf16.gmra.mrb[0].mxu0 %v1970
    %v2014 = vpop.f32.mrb[0].mxu0
    %v2015 = vadd.f32 %v1953, %v2014
    %v2016 = vpop.f32.mrb[0].mxu0
    %v2017 = vpop.f32.mrb[0].mxu0
    %v2018 = vadd.f32 %v1953, %v2017
    %v2019 = vpop.f32.mrb[0].mxu0
    %2020 = vdwg.mxu0
    %v2021 = vadd.f32 %v138, %v2007
    %v2022 = vadd.f32 %v141, %v2010
    %v2023 = vadd.f32 %v146, %v2015
    %v2024 = vadd.f32 %v149, %v2018
    %v2025 = vsel %vm154, %v2021, 0.0
    %2026 = vadd.xlane.f32.xlu0 %v2025
    %v2027 = vpop.xlane.xlu0 %2026
    %v2028 = vsel %vm154, %v2022, 0.0
    %2029 = vadd.xlane.f32.xlu0 %v2028
    %v2030 = vpop.xlane.xlu0 %2029
    %v2031 = vsel %vm154, %v2023, 0.0
    %2032 = vadd.xlane.f32.xlu0 %v2031
    %v2033 = vpop.xlane.xlu0 %2032
    %v2034 = vsel %vm154, %v2024, 0.0
    %2035 = vadd.xlane.f32.xlu0 %v2034
    %v2036 = vpop.xlane.xlu0 %2035
    %v2037 = vmul.f32 %v2027, %v167
    %v2038 = vmul.f32 %v2030, %v167
    %v2039 = vmul.f32 %v2033, %v167
    %v2040 = vmul.f32 %v2036, %v167
    %v2041 = vsub.f32 %v2021, %v2037
    %v2042 = vsub.f32 %v2022, %v2038
    %v2043 = vsub.f32 %v2023, %v2039
    %v2044 = vsub.f32 %v2024, %v2040
    %v2045 = vmul.f32 %v2041, %v2041
    %v2046 = vmul.f32 %v2042, %v2042
    %v2047 = vmul.f32 %v2043, %v2043
    %v2048 = vmul.f32 %v2044, %v2044
    %v2049 = vsel %vm154, %v2045, 0.0
    %2050 = vadd.xlane.f32.xlu0 %v2049
    %v2051 = vpop.xlane.xlu0 %2050
    %v2052 = vsel %vm154, %v2046, 0.0
    %2053 = vadd.xlane.f32.xlu0 %v2052
    %v2054 = vpop.xlane.xlu0 %2053
    %v2055 = vsel %vm154, %v2047, 0.0
    %2056 = vadd.xlane.f32.xlu0 %v2055
    %v2057 = vpop.xlane.xlu0 %2056
    %v2058 = vsel %vm154, %v2048, 0.0
    %2059 = vadd.xlane.f32.xlu0 %v2058
    %v2060 = vpop.xlane.xlu0 %2059
    %v2061 = vmul.f32 %v2051, %v167
    %v2062 = vmul.f32 %v2054, %v167
    %v2063 = vmul.f32 %v2057, %v167
    %v2064 = vmul.f32 %v2060, %v167
    %v2065 = vadd.f32 %v2061, 1e-05
    %v2066 = vadd.f32 %v2062, 1e-05
    %v2067 = vadd.f32 %v2063, 1e-05
    %v2068 = vadd.f32 %v2064, 1e-05
    %v2069 = vrsqrt.pop %v2065
    %v2070 = vrsqrt.pop %v2066
    %v2071 = vrsqrt.pop %v2067
    %v2072 = vrsqrt.pop %v2068
    %v2073 = vmul.f32 %v2041, %v2069
    %v2074 = vmul.f32 %v2042, %v2070
    %v2075 = vmul.f32 %v2043, %v2071
    %v2076 = vmul.f32 %v2044, %v2072
    %v2077 = vlaneseq
    %v2078 = vshrl.u32 %v2077, 7
    %v2079 = vsub.s32 3, %v2078
    %v2080 = vrot.slane %v152, %v2079
    %v2081 = vmul.f32 %v2073, %v2080
    %v2082 = vmul.f32 %v2074, %v2080
    %v2083 = vmul.f32 %v2075, %v2080
    %v2084 = vmul.f32 %v2076, %v2080
    %v2085 = vlaneseq
    %v2086 = vshrl.u32 %v2085, 7
    %v2087 = vsub.s32 4, %v2086
    %v2088 = vrot.slane %v152, %v2087
    %v2089 = vadd.f32 %v2081, %v2088
    %v2090 = vadd.f32 %v2082, %v2088
    %v2091 = vadd.f32 %v2083, %v2088
    %v2092 = vadd.f32 %v2084, %v2088
    %v2093 = vld [vmem:[#allocation2] sm:$0xf]
    %v2094 = vld [vmem:[#allocation2 + $0x4] sm:$0xf]
    %v2095 = vld [vmem:[#allocation2 + $0x8] sm:$0xf]
    %v2096 = vld [vmem:[#allocation2 + $0xc] sm:$0xf]
    %v2097 = vpack.c.bf16 %v2090, %v2089
    %v2098 = vpack.c.bf16 %v2092, %v2091
    %v2100 = vlaneseq
    %v2101 = vshrl.u32 %v2100, 7
    %v2102 = vsub.s32 0, %v2101
    %v2103 = vrot.slane %v153, %v2102
    %v2109 = vunpack.c.l.b16 %v2093
    %v2110 = vunpack.c.l.b16 %v2094
    %v2111 = vunpack.c.l.b16 %v2095
    %v2112 = vunpack.c.l.b16 %v2096
    %v2113 = vpack.c.b16 %v2110, %v2109
    %v2114 = vpack.c.b16 %v2112, %v2111
    %v2118 = vsel %vm154, %v2097, 0
    %v2121 = vsel %vm154, %v2098, 0
    %2123 = vmatprep.subr.bf16.mxu0 0
    %2124 = vmatpush1.bf16.msra.mxu0 %v2113
    %2125 = vmatprep.subr.bf16.mxu0 0
    %2126 = vmatpush1.bf16.msra.mxu0 %v2114
    %2127 = vmatprep.subr.bf16.mxu0 0
    %2128 = vmatpush1.bf16.msra.mxu0 0
    %2129 = vmatprep.subr.bf16.mxu0 0
    %2130 = vmatpush1.bf16.msra.mxu0 0
    %2131 = vmatprep.subr.bf16.mxu0 0
    %2132 = vmatpush1.bf16.msra.mxu0 0
    %2133 = vmatprep.subr.bf16.mxu0 0
    %2134 = vmatpush1.bf16.msra.mxu0 0
    %2135 = vmatprep.subr.bf16.mxu0 0
    %2136 = vmatpush1.bf16.msra.mxu0 0
    %2137 = vmatprep.subr.bf16.mxu0 0
    %2138 = vmatpush1.bf16.msra.mxu0 0
    %2139 = vmatprep.subr.bf16.mxu0 0
    %2140 = vmatpush1.bf16.msra.mxu0 0
    %2141 = vmatprep.subr.bf16.mxu0 0
    %2142 = vmatpush1.bf16.msra.mxu0 0
    %2143 = vmatprep.subr.bf16.mxu0 0
    %2144 = vmatpush1.bf16.msra.mxu0 0
    %2145 = vmatprep.subr.bf16.mxu0 0
    %2146 = vmatpush1.bf16.msra.mxu0 0
    %2147 = vmatprep.subr.bf16.mxu0 0
    %2148 = vmatpush1.bf16.msra.mxu0 0
    %2149 = vmatprep.subr.bf16.mxu0 0
    %2150 = vmatpush1.bf16.msra.mxu0 0
    %2151 = vmatprep.subr.bf16.mxu0 0
    %2152 = vmatpush1.bf16.msra.mxu0 0
    %2153 = vmatprep.subr.bf16.mxu0 0
    %2154 = vmatpush1.bf16.msra.mxu0 0
    %2155 = vmatprep.mubr.bf16.mxu0 0
    %2156 = vmatmul.mubr.bf16.gmra.mrb[0].mxu0 %v2118
    %v2157 = vpop.f32.mrb[0].mxu0
    %v2158 = vadd.f32 %v2103, %v2157
    %v2159 = vpop.f32.mrb[0].mxu0
    %v2160 = vpop.f32.mrb[0].mxu0
    %v2161 = vadd.f32 %v2103, %v2160
    %v2162 = vpop.f32.mrb[0].mxu0
    %2163 = vmatprep.mubr.bf16.mxu0 0
    %2164 = vmatmul.mubr.bf16.gmra.mrb[0].mxu0 %v2121
    %v2165 = vpop.f32.mrb[0].mxu0
    %v2166 = vadd.f32 %v2103, %v2165
    %v2167 = vpop.f32.mrb[0].mxu0
    %v2168 = vpop.f32.mrb[0].mxu0
    %v2169 = vadd.f32 %v2103, %v2168
    %v2170 = vpop.f32.mrb[0].mxu0
    %2171 = vdwg.mxu0
    %v2172 = vmul.f32 %v2158, 0.5
    %v2173 = vmul.f32 %v2161, 0.5
    %v2174 = vmul.f32 %v2166, 0.5
    %v2175 = vmul.f32 %v2169, 0.5
    %v2176 = vrcp.pop 1.4142135
    %v2177 = vmul.f32 %v2158, %v2176
    %v2178 = vmul.f32 %v2161, %v2176
    %v2179 = vmul.f32 %v2166, %v2176
    %v2180 = vmul.f32 %v2169, %v2176
    %v2181 = verf.f32.pop %v2177
    %v2182 = verf.f32.pop %v2178
    %v2183 = verf.f32.pop %v2179
    %v2184 = verf.f32.pop %v2180
    %v2185 = vadd.f32 %v2181, 1.0
    %v2186 = vadd.f32 %v2182, 1.0
    %v2187 = vadd.f32 %v2183, 1.0
    %v2188 = vadd.f32 %v2184, 1.0
    %v2189 = vmul.f32 %v2172, %v2185
    %v2190 = vmul.f32 %v2173, %v2186
    %v2191 = vmul.f32 %v2174, %v2187
    %v2192 = vmul.f32 %v2175, %v2188
    %v2193 = vld [vmem:[%s6] sm:$0xf]
    %v2194 = vld [vmem:[%s6 + $0x4] sm:$0xf]
    %v2195 = vld [vmem:[%s6 + $0x8] sm:$0xf]
    %v2196 = vld [vmem:[%s6 + $0xc] sm:$0xf]
    %v2197 = vld [vmem:[%s6 + $0x10] sm:$0xf]
    %v2198 = vld [vmem:[%s6 + $0x14] sm:$0xf]
    %v2199 = vld [vmem:[%s6 + $0x18] sm:$0xf]
    %v2200 = vld [vmem:[%s6 + $0x1c] sm:$0xf]
    %v2201 = vpack.c.bf16 %v2190, %v2189
    %v2202 = vpack.c.bf16 %v2192, %v2191
    %v2203 = vlaneseq
    %v2204 = vshrl.u32 %v2203, 7
    %v2205 = vsub.s32 5, %v2204
    %v2206 = vrot.slane %v152, %v2205
    %v2215 = vunpack.c.l.b16 %v2193
    %v2216 = vunpack.c.l.b16 %v2194
    %v2217 = vunpack.c.l.b16 %v2195
    %v2218 = vunpack.c.l.b16 %v2196
    %v2219 = vunpack.c.l.b16 %v2197
    %v2220 = vunpack.c.l.b16 %v2198
    %v2221 = vunpack.c.l.b16 %v2199
    %v2222 = vunpack.c.l.b16 %v2200
    %v2223 = vpack.c.b16 %v2216, %v2215
    %v2224 = vpack.c.b16 %v2218, %v2217
    %v2225 = vpack.c.b16 %v2220, %v2219
    %v2226 = vpack.c.b16 %v2222, %v2221
    %v2232 = vsel %vm96, %v2201, 0
    %v2235 = vsel %vm96, %v2202, 0
    %2237 = vmatprep.subr.bf16.mxu0 0
    %2238 = vmatpush1.bf16.msra.mxu0 %v2223
    %2239 = vmatprep.subr.bf16.mxu0 0
    %2240 = vmatpush1.bf16.msra.mxu0 %v2224
    %2241 = vmatprep.subr.bf16.mxu0 0
    %2242 = vmatpush1.bf16.msra.mxu0 %v2225
    %2243 = vmatprep.subr.bf16.mxu0 0
    %2244 = vmatpush1.bf16.msra.mxu0 %v2226
    %2245 = vmatprep.subr.bf16.mxu0 0
    %2246 = vmatpush1.bf16.msra.mxu0 0
    %2247 = vmatprep.subr.bf16.mxu0 0
    %2248 = vmatpush1.bf16.msra.mxu0 0
    %2249 = vmatprep.subr.bf16.mxu0 0
    %2250 = vmatpush1.bf16.msra.mxu0 0
    %2251 = vmatprep.subr.bf16.mxu0 0
    %2252 = vmatpush1.bf16.msra.mxu0 0
    %2253 = vmatprep.subr.bf16.mxu0 0
    %2254 = vmatpush1.bf16.msra.mxu0 0
    %2255 = vmatprep.subr.bf16.mxu0 0
    %2256 = vmatpush1.bf16.msra.mxu0 0
    %2257 = vmatprep.subr.bf16.mxu0 0
    %2258 = vmatpush1.bf16.msra.mxu0 0
    %2259 = vmatprep.subr.bf16.mxu0 0
    %2260 = vmatpush1.bf16.msra.mxu0 0
    %2261 = vmatprep.subr.bf16.mxu0 0
    %2262 = vmatpush1.bf16.msra.mxu0 0
    %2263 = vmatprep.subr.bf16.mxu0 0
    %2264 = vmatpush1.bf16.msra.mxu0 0
    %2265 = vmatprep.subr.bf16.mxu0 0
    %2266 = vmatpush1.bf16.msra.mxu0 0
    %2267 = vmatprep.subr.bf16.mxu0 0
    %2268 = vmatpush1.bf16.msra.mxu0 0
    %2269 = vmatprep.mubr.bf16.mxu0 0
    %2270 = vmatmul.mubr.bf16.gmra.mrb[0].mxu0 %v2232
    %v2271 = vpop.f32.mrb[0].mxu0
    %v2272 = vadd.f32 %v2206, %v2271
    %v2273 = vpop.f32.mrb[0].mxu0
    %v2274 = vpop.f32.mrb[0].mxu0
    %v2275 = vadd.f32 %v2206, %v2274
    %v2276 = vpop.f32.mrb[0].mxu0
    %2277 = vmatprep.mubr.bf16.mxu0 0
    %2278 = vmatmul.mubr.bf16.gmra.mrb[0].mxu0 %v2235
    %v2279 = vpop.f32.mrb[0].mxu0
    %v2280 = vadd.f32 %v2206, %v2279
    %v2281 = vpop.f32.mrb[0].mxu0
    %v2282 = vpop.f32.mrb[0].mxu0
    %v2283 = vadd.f32 %v2206, %v2282
    %v2284 = vpop.f32.mrb[0].mxu0
    %2285 = vdwg.mxu0
    %v2286 = vadd.f32 %v2021, %v2272
    %v2287 = vadd.f32 %v2022, %v2275
    %v2288 = vadd.f32 %v2023, %v2280
    %v2289 = vadd.f32 %v2024, %v2283
    %2290 = vst.msk [vmem:[#allocation5] sm:$0xff] %vm154, %v2286
    %2291 = vst.msk [vmem:[#allocation5 + $0x8] sm:$0xff] %vm154, %v2287
    %2292 = vst.msk [vmem:[#allocation5 + $0x10] sm:$0xff] %vm154, %v2288
    %2293 = vst.msk [vmem:[#allocation5 + $0x18] sm:$0xff] %vm154, %v2289
    %s2294 = scalar_lea.vmem %s7, 8
    %v2295 = vld [vmem:[%s2294] sm:$0x3f]
    %s2296 = scalar_lea.vmem %s8, 1
    %v2297 = vld [vmem:[%s2296] sm:$0x1]
    %v2298 = vsel %vm154, %v2286, 0.0
    %2299 = vadd.xlane.f32.xlu0 %v2298
    %v2300 = vpop.xlane.xlu0 %2299
    %v2301 = vsel %vm154, %v2287, 0.0
    %2302 = vadd.xlane.f32.xlu0 %v2301
    %v2303 = vpop.xlane.xlu0 %2302
    %v2304 = vsel %vm154, %v2288, 0.0
    %2305 = vadd.xlane.f32.xlu0 %v2304
    %v2306 = vpop.xlane.xlu0 %2305
    %v2307 = vsel %vm154, %v2289, 0.0
    %2308 = vadd.xlane.f32.xlu0 %v2307
    %v2309 = vpop.xlane.xlu0 %2308
    %v2310 = vmul.f32 %v2300, %v167
    %v2311 = vmul.f32 %v2303, %v167
    %v2312 = vmul.f32 %v2306, %v167
    %v2313 = vmul.f32 %v2309, %v167
    %v2314 = vsub.f32 %v2286, %v2310
    %v2315 = vsub.f32 %v2287, %v2311
    %v2316 = vsub.f32 %v2288, %v2312
    %v2317 = vsub.f32 %v2289, %v2313
    %v2318 = vmul.f32 %v2314, %v2314
    %v2319 = vmul.f32 %v2315, %v2315
    %v2320 = vmul.f32 %v2316, %v2316
    %v2321 = vmul.f32 %v2317, %v2317
    %v2322 = vsel %vm154, %v2318, 0.0
    %2323 = vadd.xlane.f32.xlu0 %v2322
    %v2324 = vpop.xlane.xlu0 %2323
    %v2325 = vsel %vm154, %v2319, 0.0
    %2326 = vadd.xlane.f32.xlu0 %v2325
    %v2327 = vpop.xlane.xlu0 %2326
    %v2328 = vsel %vm154, %v2320, 0.0
    %2329 = vadd.xlane.f32.xlu0 %v2328
    %v2330 = vpop.xlane.xlu0 %2329
    %v2331 = vsel %vm154, %v2321, 0.0
    %2332 = vadd.xlane.f32.xlu0 %v2331
    %v2333 = vpop.xlane.xlu0 %2332
    %v2334 = vmul.f32 %v2324, %v167
    %v2335 = vmul.f32 %v2327, %v167
    %v2336 = vmul.f32 %v2330, %v167
    %v2337 = vmul.f32 %v2333, %v167
    %v2338 = vadd.f32 %v2334, 1e-05
    %v2339 = vadd.f32 %v2335, 1e-05
    %v2340 = vadd.f32 %v2336, 1e-05
    %v2341 = vadd.f32 %v2337, 1e-05
    %v2342 = vrsqrt.pop %v2338
    %v2343 = vrsqrt.pop %v2339
    %v2344 = vrsqrt.pop %v2340
    %v2345 = vrsqrt.pop %v2341
    %v2346 = vmul.f32 %v2314, %v2342
    %v2347 = vmul.f32 %v2315, %v2343
    %v2348 = vmul.f32 %v2316, %v2344
    %v2349 = vmul.f32 %v2317, %v2345
    %v2350 = vlaneseq
    %v2351 = vshrl.u32 %v2350, 7
    %v2352 = vsub.s32 0, %v2351
    %v2353 = vrot.slane %v2295, %v2352
    %v2354 = vmul.f32 %v2346, %v2353
    %v2355 = vmul.f32 %v2347, %v2353
    %v2356 = vmul.f32 %v2348, %v2353
    %v2357 = vmul.f32 %v2349, %v2353
    %v2358 = vlaneseq
    %v2359 = vshrl.u32 %v2358, 7
    %v2360 = vsub.s32 1, %v2359
    %v2361 = vrot.slane %v2295, %v2360
    %v2362 = vadd.f32 %v2354, %v2361
    %v2363 = vadd.f32 %v2355, %v2361
    %v2364 = vadd.f32 %v2356, %v2361
    %v2365 = vadd.f32 %v2357, %v2361
    %s2366 = scalar_lea.vmem %s3, 16
    %v2367 = vld [vmem:[%s2366] sm:$0xf]
    %v2368 = vld [vmem:[%s2366 + $0x4] sm:$0xf]
    %v2369 = vld [vmem:[%s2366 + $0x8] sm:$0xf]
    %v2370 = vld [vmem:[%s2366 + $0xc] sm:$0xf]
    %v2371 = vpack.c.bf16 %v2363, %v2362
    %v2372 = vpack.c.bf16 %v2365, %v2364
    %v2377 = vunpack.c.l.b16 %v2367
    %v2378 = vunpack.c.l.b16 %v2368
    %v2379 = vunpack.c.l.b16 %v2369
    %v2380 = vunpack.c.l.b16 %v2370
    %v2381 = vpack.c.b16 %v2378, %v2377
    %v2382 = vpack.c.b16 %v2380, %v2379
    %v2386 = vsel %vm154, %v2371, 0
    %v2389 = vsel %vm154, %v2372, 0
    %2391 = vmatprep.subr.bf16.mxu0 0
    %2392 = vmatpush1.bf16.msra.mxu0 %v2381
    %2393 = vmatprep.subr.bf16.mxu0 0
    %2394 = vmatpush1.bf16.msra.mxu0 %v2382
    %2395 = vmatprep.subr.bf16.mxu0 0
    %2396 = vmatpush1.bf16.msra.mxu0 0
    %2397 = vmatprep.subr.bf16.mxu0 0
    %2398 = vmatpush1.bf16.msra.mxu0 0
    %2399 = vmatprep.subr.bf16.mxu0 0
    %2400 = vmatpush1.bf16.msra.mxu0 0
    %2401 = vmatprep.subr.bf16.mxu0 0
    %2402 = vmatpush1.bf16.msra.mxu0 0
    %2403 = vmatprep.subr.bf16.mxu0 0
    %2404 = vmatpush1.bf16.msra.mxu0 0
    %2405 = vmatprep.subr.bf16.mxu0 0
    %2406 = vmatpush1.bf16.msra.mxu0 0
    %2407 = vmatprep.subr.bf16.mxu0 0
    %2408 = vmatpush1.bf16.msra.mxu0 0
    %2409 = vmatprep.subr.bf16.mxu0 0
    %2410 = vmatpush1.bf16.msra.mxu0 0
    %2411 = vmatprep.subr.bf16.mxu0 0
    %2412 = vmatpush1.bf16.msra.mxu0 0
    %2413 = vmatprep.subr.bf16.mxu0 0
    %2414 = vmatpush1.bf16.msra.mxu0 0
    %2415 = vmatprep.subr.bf16.mxu0 0
    %2416 = vmatpush1.bf16.msra.mxu0 0
    %2417 = vmatprep.subr.bf16.mxu0 0
    %2418 = vmatpush1.bf16.msra.mxu0 0
    %2419 = vmatprep.subr.bf16.mxu0 0
    %2420 = vmatpush1.bf16.msra.mxu0 0
    %2421 = vmatprep.subr.bf16.mxu0 0
    %2422 = vmatpush1.bf16.msra.mxu0 0
    %2423 = vmatprep.mubr.bf16.mxu0 0
    %2424 = vmatmul.mubr.bf16.gmra.mrb[0].mxu0 %v2386
    %v2425 = vpop.f32.mrb[0].mxu0
    %v2426 = vadd.f32 0.0, %v2425
    %v2427 = vpop.f32.mrb[0].mxu0
    %v2428 = vpop.f32.mrb[0].mxu0
    %v2429 = vadd.f32 0.0, %v2428
    %v2430 = vpop.f32.mrb[0].mxu0
    %2431 = vmatprep.mubr.bf16.mxu0 0
    %2432 = vmatmul.mubr.bf16.gmra.mrb[0].mxu0 %v2389
    %v2433 = vpop.f32.mrb[0].mxu0
    %v2434 = vadd.f32 0.0, %v2433
    %v2435 = vpop.f32.mrb[0].mxu0
    %v2436 = vpop.f32.mrb[0].mxu0
    %v2437 = vadd.f32 0.0, %v2436
    %v2438 = vpop.f32.mrb[0].mxu0
    %2439 = vdwg.mxu0
    %2440 = vxpose.xlu0.b32.start [1/16] %v2426, 128
    %2441 = vxpose.xlu0.b32.cont [2/16] %v2429, 128
    %2442 = vxpose.xlu0.b32.cont [3/16] 0.0, 128
    %2443 = vxpose.xlu0.b32.cont [4/16] 0.0, 128
    %2444 = vxpose.xlu0.b32.cont [5/16] 0.0, 128
    %2445 = vxpose.xlu0.b32.cont [6/16] 0.0, 128
    %2446 = vxpose.xlu0.b32.cont [7/16] 0.0, 128
    %2447 = vxpose.xlu0.b32.cont [8/16] 0.0, 128
    %2448 = vxpose.xlu0.b32.cont [9/16] 0.0, 128
    %2449 = vxpose.xlu0.b32.cont [10/16] 0.0, 128
    %2450 = vxpose.xlu0.b32.cont [11/16] 0.0, 128
    %2451 = vxpose.xlu0.b32.cont [12/16] 0.0, 128
    %2452 = vxpose.xlu0.b32.cont [13/16] 0.0, 128
    %2453 = vxpose.xlu0.b32.cont [14/16] 0.0, 128
    %2454 = vxpose.xlu0.b32.cont [15/16] 0.0, 128
    %2455 = vxpose.xlu0.b32.end [16/16] 0.0, 128
    %v2456 = vpop.trf.xlu0
    %v2457 = vpop.trf.xlu0
    %v2458 = vpop.trf.xlu0
    %v2459 = vpop.trf.xlu0
    %v2460 = vpop.trf.xlu0
    %v2461 = vpop.trf.xlu0
    %v2462 = vpop.trf.xlu0
    %v2463 = vpop.trf.xlu0
    %v2464 = vpop.trf.xlu0
    %v2465 = vpop.trf.xlu0
    %v2466 = vpop.trf.xlu0
    %v2467 = vpop.trf.xlu0
    %v2468 = vpop.trf.xlu0
    %v2469 = vpop.trf.xlu0
    %v2470 = vpop.trf.xlu0
    %v2471 = vpop.trf.xlu0
    %2472 = vxpose.xlu0.b32.start [1/16] %v2434, 128
    %2473 = vxpose.xlu0.b32.cont [2/16] %v2437, 128
    %2474 = vxpose.xlu0.b32.cont [3/16] 0.0, 128
    %2475 = vxpose.xlu0.b32.cont [4/16] 0.0, 128
    %2476 = vxpose.xlu0.b32.cont [5/16] 0.0, 128
    %2477 = vxpose.xlu0.b32.cont [6/16] 0.0, 128
    %2478 = vxpose.xlu0.b32.cont [7/16] 0.0, 128
    %2479 = vxpose.xlu0.b32.cont [8/16] 0.0, 128
    %2480 = vxpose.xlu0.b32.cont [9/16] 0.0, 128
    %2481 = vxpose.xlu0.b32.cont [10/16] 0.0, 128
    %2482 = vxpose.xlu0.b32.cont [11/16] 0.0, 128
    %2483 = vxpose.xlu0.b32.cont [12/16] 0.0, 128
    %2484 = vxpose.xlu0.b32.cont [13/16] 0.0, 128
    %2485 = vxpose.xlu0.b32.cont [14/16] 0.0, 128
    %2486 = vxpose.xlu0.b32.cont [15/16] 0.0, 128
    %2487 = vxpose.xlu0.b32.end [16/16] 0.0, 128
    %v2488 = vpop.trf.xlu0
    %v2489 = vpop.trf.xlu0
    %v2490 = vpop.trf.xlu0
    %v2491 = vpop.trf.xlu0
    %v2492 = vpop.trf.xlu0
    %v2493 = vpop.trf.xlu0
    %v2494 = vpop.trf.xlu0
    %v2495 = vpop.trf.xlu0
    %v2496 = vpop.trf.xlu0
    %v2497 = vpop.trf.xlu0
    %v2498 = vpop.trf.xlu0
    %v2499 = vpop.trf.xlu0
    %v2500 = vpop.trf.xlu0
    %v2501 = vpop.trf.xlu0
    %v2502 = vpop.trf.xlu0
    %v2503 = vpop.trf.xlu0
    %2508 = vrot.lane.b32.xlu0 %v2426, 96
    %v2509 = vpop.permute.xlu0 %2508
    %2510 = vrot.lane.b32.xlu0 %v2429, 96
    %v2511 = vpop.permute.xlu0 %2510
    %2512 = vrot.lane.b32.xlu0 %v2434, 96
    %v2513 = vpop.permute.xlu0 %2512
    %2514 = vrot.lane.b32.xlu0 %v2437, 96
    %v2515 = vpop.permute.xlu0 %2514
    %2520 = vxpose.xlu0.b32.start [1/16] %v2509, 128
    %2521 = vxpose.xlu0.b32.cont [2/16] %v2511, 128
    %2522 = vxpose.xlu0.b32.cont [3/16] 0.0, 128
    %2523 = vxpose.xlu0.b32.cont [4/16] 0.0, 128
    %2524 = vxpose.xlu0.b32.cont [5/16] 0.0, 128
    %2525 = vxpose.xlu0.b32.cont [6/16] 0.0, 128
    %2526 = vxpose.xlu0.b32.cont [7/16] 0.0, 128
    %2527 = vxpose.xlu0.b32.cont [8/16] 0.0, 128
    %2528 = vxpose.xlu0.b32.cont [9/16] 0.0, 128
    %2529 = vxpose.xlu0.b32.cont [10/16] 0.0, 128
    %2530 = vxpose.xlu0.b32.cont [11/16] 0.0, 128
    %2531 = vxpose.xlu0.b32.cont [12/16] 0.0, 128
    %2532 = vxpose.xlu0.b32.cont [13/16] 0.0, 128
    %2533 = vxpose.xlu0.b32.cont [14/16] 0.0, 128
    %2534 = vxpose.xlu0.b32.cont [15/16] 0.0, 128
    %2535 = vxpose.xlu0.b32.end [16/16] 0.0, 128
    %v2536 = vpop.trf.xlu0
    %v2537 = vpop.trf.xlu0
    %v2538 = vpop.trf.xlu0
    %v2539 = vpop.trf.xlu0
    %v2540 = vpop.trf.xlu0
    %v2541 = vpop.trf.xlu0
    %v2542 = vpop.trf.xlu0
    %v2543 = vpop.trf.xlu0
    %v2544 = vpop.trf.xlu0
    %v2545 = vpop.trf.xlu0
    %v2546 = vpop.trf.xlu0
    %v2547 = vpop.trf.xlu0
    %v2548 = vpop.trf.xlu0
    %v2549 = vpop.trf.xlu0
    %v2550 = vpop.trf.xlu0
    %v2551 = vpop.trf.xlu0
    %2552 = vxpose.xlu0.b32.start [1/16] %v2513, 128
    %2553 = vxpose.xlu0.b32.cont [2/16] %v2515, 128
    %2554 = vxpose.xlu0.b32.cont [3/16] 0.0, 128
    %2555 = vxpose.xlu0.b32.cont [4/16] 0.0, 128
    %2556 = vxpose.xlu0.b32.cont [5/16] 0.0, 128
    %2557 = vxpose.xlu0.b32.cont [6/16] 0.0, 128
    %2558 = vxpose.xlu0.b32.cont [7/16] 0.0, 128
    %2559 = vxpose.xlu0.b32.cont [8/16] 0.0, 128
    %2560 = vxpose.xlu0.b32.cont [9/16] 0.0, 128
    %2561 = vxpose.xlu0.b32.cont [10/16] 0.0, 128
    %2562 = vxpose.xlu0.b32.cont [11/16] 0.0, 128
    %2563 = vxpose.xlu0.b32.cont [12/16] 0.0, 128
    %2564 = vxpose.xlu0.b32.cont [13/16] 0.0, 128
    %2565 = vxpose.xlu0.b32.cont [14/16] 0.0, 128
    %2566 = vxpose.xlu0.b32.cont [15/16] 0.0, 128
    %2567 = vxpose.xlu0.b32.end [16/16] 0.0, 128
    %v2568 = vpop.trf.xlu0
    %v2569 = vpop.trf.xlu0
    %v2570 = vpop.trf.xlu0
    %v2571 = vpop.trf.xlu0
    %v2572 = vpop.trf.xlu0
    %v2573 = vpop.trf.xlu0
    %v2574 = vpop.trf.xlu0
    %v2575 = vpop.trf.xlu0
    %v2576 = vpop.trf.xlu0
    %v2577 = vpop.trf.xlu0
    %v2578 = vpop.trf.xlu0
    %v2579 = vpop.trf.xlu0
    %v2580 = vpop.trf.xlu0
    %v2581 = vpop.trf.xlu0
    %v2582 = vpop.trf.xlu0
    %v2583 = vpop.trf.xlu0
    %2584 = vrot.lane.b32.xlu0 %v2426, 64
    %v2585 = vpop.permute.xlu0 %2584
    %2586 = vrot.lane.b32.xlu0 %v2429, 64
    %v2587 = vpop.permute.xlu0 %2586
    %2588 = vrot.lane.b32.xlu0 %v2434, 64
    %v2589 = vpop.permute.xlu0 %2588
    %2590 = vrot.lane.b32.xlu0 %v2437, 64
    %v2591 = vpop.permute.xlu0 %2590
    %2596 = vxpose.xlu0.b32.start [1/16] %v2585, 128
    %2597 = vxpose.xlu0.b32.cont [2/16] %v2587, 128
    %2598 = vxpose.xlu0.b32.cont [3/16] 0.0, 128
    %2599 = vxpose.xlu0.b32.cont [4/16] 0.0, 128
    %2600 = vxpose.xlu0.b32.cont [5/16] 0.0, 128
    %2601 = vxpose.xlu0.b32.cont [6/16] 0.0, 128
    %2602 = vxpose.xlu0.b32.cont [7/16] 0.0, 128
    %2603 = vxpose.xlu0.b32.cont [8/16] 0.0, 128
    %2604 = vxpose.xlu0.b32.cont [9/16] 0.0, 128
    %2605 = vxpose.xlu0.b32.cont [10/16] 0.0, 128
    %2606 = vxpose.xlu0.b32.cont [11/16] 0.0, 128
    %2607 = vxpose.xlu0.b32.cont [12/16] 0.0, 128
    %2608 = vxpose.xlu0.b32.cont [13/16] 0.0, 128
    %2609 = vxpose.xlu0.b32.cont [14/16] 0.0, 128
    %2610 = vxpose.xlu0.b32.cont [15/16] 0.0, 128
    %2611 = vxpose.xlu0.b32.end [16/16] 0.0, 128
    %v2612 = vpop.trf.xlu0
    %v2613 = vpop.trf.xlu0
    %v2614 = vpop.trf.xlu0
    %v2615 = vpop.trf.xlu0
    %v2616 = vpop.trf.xlu0
    %v2617 = vpop.trf.xlu0
    %v2618 = vpop.trf.xlu0
    %v2619 = vpop.trf.xlu0
    %v2620 = vpop.trf.xlu0
    %v2621 = vpop.trf.xlu0
    %v2622 = vpop.trf.xlu0
    %v2623 = vpop.trf.xlu0
    %v2624 = vpop.trf.xlu0
    %v2625 = vpop.trf.xlu0
    %v2626 = vpop.trf.xlu0
    %v2627 = vpop.trf.xlu0
    %2628 = vxpose.xlu0.b32.start [1/16] %v2589, 128
    %2629 = vxpose.xlu0.b32.cont [2/16] %v2591, 128
    %2630 = vxpose.xlu0.b32.cont [3/16] 0.0, 128
    %2631 = vxpose.xlu0.b32.cont [4/16] 0.0, 128
    %2632 = vxpose.xlu0.b32.cont [5/16] 0.0, 128
    %2633 = vxpose.xlu0.b32.cont [6/16] 0.0, 128
    %2634 = vxpose.xlu0.b32.cont [7/16] 0.0, 128
    %2635 = vxpose.xlu0.b32.cont [8/16] 0.0, 128
    %2636 = vxpose.xlu0.b32.cont [9/16] 0.0, 128
    %2637 = vxpose.xlu0.b32.cont [10/16] 0.0, 128
    %2638 = vxpose.xlu0.b32.cont [11/16] 0.0, 128
    %2639 = vxpose.xlu0.b32.cont [12/16] 0.0, 128
    %2640 = vxpose.xlu0.b32.cont [13/16] 0.0, 128
    %2641 = vxpose.xlu0.b32.cont [14/16] 0.0, 128
    %2642 = vxpose.xlu0.b32.cont [15/16] 0.0, 128
    %2643 = vxpose.xlu0.b32.end [16/16] 0.0, 128
    %v2644 = vpop.trf.xlu0
    %v2645 = vpop.trf.xlu0
    %v2646 = vpop.trf.xlu0
    %v2647 = vpop.trf.xlu0
    %v2648 = vpop.trf.xlu0
    %v2649 = vpop.trf.xlu0
    %v2650 = vpop.trf.xlu0
    %v2651 = vpop.trf.xlu0
    %v2652 = vpop.trf.xlu0
    %v2653 = vpop.trf.xlu0
    %v2654 = vpop.trf.xlu0
    %v2655 = vpop.trf.xlu0
    %v2656 = vpop.trf.xlu0
    %v2657 = vpop.trf.xlu0
    %v2658 = vpop.trf.xlu0
    %v2659 = vpop.trf.xlu0
    %v2660 = vpack.c.bf16 %v2456, %v2456
    %v2661 = vpack.c.bf16 %v2457, %v2457
    %v2662 = vpack.c.bf16 %v2458, %v2458
    %v2663 = vpack.c.bf16 %v2459, %v2459
    %v2664 = vpack.c.bf16 %v2488, %v2488
    %v2665 = vpack.c.bf16 %v2489, %v2489
    %v2666 = vpack.c.bf16 %v2490, %v2490
    %v2667 = vpack.c.bf16 %v2491, %v2491
    %v2668 = vpack.c.bf16 %v2536, %v2536
    %v2669 = vpack.c.bf16 %v2537, %v2537
    %v2670 = vpack.c.bf16 %v2538, %v2538
    %v2671 = vpack.c.bf16 %v2539, %v2539
    %v2672 = vpack.c.bf16 %v2568, %v2568
    %v2673 = vpack.c.bf16 %v2569, %v2569
    %v2674 = vpack.c.bf16 %v2570, %v2570
    %v2675 = vpack.c.bf16 %v2571, %v2571
    %2676 = vxpose.xlu0.c.b16.start [1/8] %v2660, 128
    %2677 = vxpose.xlu0.c.b16.cont [2/8] 0, 128
    %2678 = vxpose.xlu0.c.b16.cont [3/8] 0, 128
    %2679 = vxpose.xlu0.c.b16.cont [4/8] 0, 128
    %2680 = vxpose.xlu0.c.b16.cont [5/8] 0, 128
    %2681 = vxpose.xlu0.c.b16.cont [6/8] 0, 128
    %2682 = vxpose.xlu0.c.b16.cont [7/8] 0, 128
    %2683 = vxpose.xlu0.c.b16.end [8/8] 0, 128
    %v2684 = vpop.trf.xlu0
    %v2685 = vpop.trf.xlu0
    %v2686 = vpop.trf.xlu0
    %v2687 = vpop.trf.xlu0
    %v2688 = vpop.trf.xlu0
    %v2689 = vpop.trf.xlu0
    %v2690 = vpop.trf.xlu0
    %v2691 = vpop.trf.xlu0
    %v2693 = vsel %vm549, %v2684, 0
    %v2696 = vsel %vm553, %v2668, 0
    %2698 = vmatprep.subr.bf16.mxu0 0
    %2699 = vmatpush1.bf16.msra.mxu0 %v2696
    %2700 = vmatprep.subr.bf16.mxu0 0
    %2701 = vmatpush1.bf16.msra.mxu0 0
    %2702 = vmatprep.subr.bf16.mxu0 0
    %2703 = vmatpush1.bf16.msra.mxu0 0
    %2704 = vmatprep.subr.bf16.mxu0 0
    %2705 = vmatpush1.bf16.msra.mxu0 0
    %2706 = vmatprep.subr.bf16.mxu0 0
    %2707 = vmatpush1.bf16.msra.mxu0 0
    %2708 = vmatprep.subr.bf16.mxu0 0
    %2709 = vmatpush1.bf16.msra.mxu0 0
    %2710 = vmatprep.subr.bf16.mxu0 0
    %2711 = vmatpush1.bf16.msra.mxu0 0
    %2712 = vmatprep.subr.bf16.mxu0 0
    %2713 = vmatpush1.bf16.msra.mxu0 0
    %2714 = vmatprep.subr.bf16.mxu0 0
    %2715 = vmatpush1.bf16.msra.mxu0 0
    %2716 = vmatprep.subr.bf16.mxu0 0
    %2717 = vmatpush1.bf16.msra.mxu0 0
    %2718 = vmatprep.subr.bf16.mxu0 0
    %2719 = vmatpush1.bf16.msra.mxu0 0
    %2720 = vmatprep.subr.bf16.mxu0 0
    %2721 = vmatpush1.bf16.msra.mxu0 0
    %2722 = vmatprep.subr.bf16.mxu0 0
    %2723 = vmatpush1.bf16.msra.mxu0 0
    %2724 = vmatprep.subr.bf16.mxu0 0
    %2725 = vmatpush1.bf16.msra.mxu0 0
    %2726 = vmatprep.subr.bf16.mxu0 0
    %2727 = vmatpush1.bf16.msra.mxu0 0
    %2728 = vmatprep.subr.bf16.mxu0 0
    %2729 = vmatpush1.bf16.msra.mxu0 0
    %2730 = vmatprep.mubr.bf16.mxu0 0
    %2731 = vmatmul.mubr.bf16.gmra.mrb[0].mxu0 %v2693
    %v2732 = vpop.f32.mrb[0].mxu0
    %v2733 = vadd.f32 0.0, %v2732
    %v2734 = vpop.f32.mrb[0].mxu0
    %v2735 = vpop.f32.mrb[0].mxu0
    %v2736 = vadd.f32 0.0, %v2735
    %v2737 = vpop.f32.mrb[0].mxu0
    %2738 = vdwg.mxu0
    %2739 = vxpose.xlu0.c.b16.start [1/8] %v2661, 128
    %2740 = vxpose.xlu0.c.b16.cont [2/8] 0, 128
    %2741 = vxpose.xlu0.c.b16.cont [3/8] 0, 128
    %2742 = vxpose.xlu0.c.b16.cont [4/8] 0, 128
    %2743 = vxpose.xlu0.c.b16.cont [5/8] 0, 128
    %2744 = vxpose.xlu0.c.b16.cont [6/8] 0, 128
    %2745 = vxpose.xlu0.c.b16.cont [7/8] 0, 128
    %2746 = vxpose.xlu0.c.b16.end [8/8] 0, 128
    %v2747 = vpop.trf.xlu0
    %v2748 = vpop.trf.xlu0
    %v2749 = vpop.trf.xlu0
    %v2750 = vpop.trf.xlu0
    %v2751 = vpop.trf.xlu0
    %v2752 = vpop.trf.xlu0
    %v2753 = vpop.trf.xlu0
    %v2754 = vpop.trf.xlu0
    %v2756 = vsel %vm549, %v2747, 0
    %v2759 = vsel %vm553, %v2669, 0
    %2761 = vmatprep.subr.bf16.mxu0 0
    %2762 = vmatpush1.bf16.msra.mxu0 %v2759
    %2763 = vmatprep.subr.bf16.mxu0 0
    %2764 = vmatpush1.bf16.msra.mxu0 0
    %2765 = vmatprep.subr.bf16.mxu0 0
    %2766 = vmatpush1.bf16.msra.mxu0 0
    %2767 = vmatprep.subr.bf16.mxu0 0
    %2768 = vmatpush1.bf16.msra.mxu0 0
    %2769 = vmatprep.subr.bf16.mxu0 0
    %2770 = vmatpush1.bf16.msra.mxu0 0
    %2771 = vmatprep.subr.bf16.mxu0 0
    %2772 = vmatpush1.bf16.msra.mxu0 0
    %2773 = vmatprep.subr.bf16.mxu0 0
    %2774 = vmatpush1.bf16.msra.mxu0 0
    %2775 = vmatprep.subr.bf16.mxu0 0
    %2776 = vmatpush1.bf16.msra.mxu0 0
    %2777 = vmatprep.subr.bf16.mxu0 0
    %2778 = vmatpush1.bf16.msra.mxu0 0
    %2779 = vmatprep.subr.bf16.mxu0 0
    %2780 = vmatpush1.bf16.msra.mxu0 0
    %2781 = vmatprep.subr.bf16.mxu0 0
    %2782 = vmatpush1.bf16.msra.mxu0 0
    %2783 = vmatprep.subr.bf16.mxu0 0
    %2784 = vmatpush1.bf16.msra.mxu0 0
    %2785 = vmatprep.subr.bf16.mxu0 0
    %2786 = vmatpush1.bf16.msra.mxu0 0
    %2787 = vmatprep.subr.bf16.mxu0 0
    %2788 = vmatpush1.bf16.msra.mxu0 0
    %2789 = vmatprep.subr.bf16.mxu0 0
    %2790 = vmatpush1.bf16.msra.mxu0 0
    %2791 = vmatprep.subr.bf16.mxu0 0
    %2792 = vmatpush1.bf16.msra.mxu0 0
    %2793 = vmatprep.mubr.bf16.mxu0 0
    %2794 = vmatmul.mubr.bf16.gmra.mrb[0].mxu0 %v2756
    %v2795 = vpop.f32.mrb[0].mxu0
    %v2796 = vadd.f32 0.0, %v2795
    %v2797 = vpop.f32.mrb[0].mxu0
    %v2798 = vpop.f32.mrb[0].mxu0
    %v2799 = vadd.f32 0.0, %v2798
    %v2800 = vpop.f32.mrb[0].mxu0
    %2801 = vdwg.mxu0
    %2802 = vxpose.xlu0.c.b16.start [1/8] %v2662, 128
    %2803 = vxpose.xlu0.c.b16.cont [2/8] 0, 128
    %2804 = vxpose.xlu0.c.b16.cont [3/8] 0, 128
    %2805 = vxpose.xlu0.c.b16.cont [4/8] 0, 128
    %2806 = vxpose.xlu0.c.b16.cont [5/8] 0, 128
    %2807 = vxpose.xlu0.c.b16.cont [6/8] 0, 128
    %2808 = vxpose.xlu0.c.b16.cont [7/8] 0, 128
    %2809 = vxpose.xlu0.c.b16.end [8/8] 0, 128
    %v2810 = vpop.trf.xlu0
    %v2811 = vpop.trf.xlu0
    %v2812 = vpop.trf.xlu0
    %v2813 = vpop.trf.xlu0
    %v2814 = vpop.trf.xlu0
    %v2815 = vpop.trf.xlu0
    %v2816 = vpop.trf.xlu0
    %v2817 = vpop.trf.xlu0
    %v2819 = vsel %vm549, %v2810, 0
    %v2822 = vsel %vm553, %v2670, 0
    %2824 = vmatprep.subr.bf16.mxu0 0
    %2825 = vmatpush1.bf16.msra.mxu0 %v2822
    %2826 = vmatprep.subr.bf16.mxu0 0
    %2827 = vmatpush1.bf16.msra.mxu0 0
    %2828 = vmatprep.subr.bf16.mxu0 0
    %2829 = vmatpush1.bf16.msra.mxu0 0
    %2830 = vmatprep.subr.bf16.mxu0 0
    %2831 = vmatpush1.bf16.msra.mxu0 0
    %2832 = vmatprep.subr.bf16.mxu0 0
    %2833 = vmatpush1.bf16.msra.mxu0 0
    %2834 = vmatprep.subr.bf16.mxu0 0
    %2835 = vmatpush1.bf16.msra.mxu0 0
    %2836 = vmatprep.subr.bf16.mxu0 0
    %2837 = vmatpush1.bf16.msra.mxu0 0
    %2838 = vmatprep.subr.bf16.mxu0 0
    %2839 = vmatpush1.bf16.msra.mxu0 0
    %2840 = vmatprep.subr.bf16.mxu0 0
    %2841 = vmatpush1.bf16.msra.mxu0 0
    %2842 = vmatprep.subr.bf16.mxu0 0
    %2843 = vmatpush1.bf16.msra.mxu0 0
    %2844 = vmatprep.subr.bf16.mxu0 0
    %2845 = vmatpush1.bf16.msra.mxu0 0
    %2846 = vmatprep.subr.bf16.mxu0 0
    %2847 = vmatpush1.bf16.msra.mxu0 0
    %2848 = vmatprep.subr.bf16.mxu0 0
    %2849 = vmatpush1.bf16.msra.mxu0 0
    %2850 = vmatprep.subr.bf16.mxu0 0
    %2851 = vmatpush1.bf16.msra.mxu0 0
    %2852 = vmatprep.subr.bf16.mxu0 0
    %2853 = vmatpush1.bf16.msra.mxu0 0
    %2854 = vmatprep.subr.bf16.mxu0 0
    %2855 = vmatpush1.bf16.msra.mxu0 0
    %2856 = vmatprep.mubr.bf16.mxu0 0
    %2857 = vmatmul.mubr.bf16.gmra.mrb[0].mxu0 %v2819
    %v2858 = vpop.f32.mrb[0].mxu0
    %v2859 = vadd.f32 0.0, %v2858
    %v2860 = vpop.f32.mrb[0].mxu0
    %v2861 = vpop.f32.mrb[0].mxu0
    %v2862 = vadd.f32 0.0, %v2861
    %v2863 = vpop.f32.mrb[0].mxu0
    %2864 = vdwg.mxu0
    %2865 = vxpose.xlu0.c.b16.start [1/8] %v2663, 128
    %2866 = vxpose.xlu0.c.b16.cont [2/8] 0, 128
    %2867 = vxpose.xlu0.c.b16.cont [3/8] 0, 128
    %2868 = vxpose.xlu0.c.b16.cont [4/8] 0, 128
    %2869 = vxpose.xlu0.c.b16.cont [5/8] 0, 128
    %2870 = vxpose.xlu0.c.b16.cont [6/8] 0, 128
    %2871 = vxpose.xlu0.c.b16.cont [7/8] 0, 128
    %2872 = vxpose.xlu0.c.b16.end [8/8] 0, 128
    %v2873 = vpop.trf.xlu0
    %v2874 = vpop.trf.xlu0
    %v2875 = vpop.trf.xlu0
    %v2876 = vpop.trf.xlu0
    %v2877 = vpop.trf.xlu0
    %v2878 = vpop.trf.xlu0
    %v2879 = vpop.trf.xlu0
    %v2880 = vpop.trf.xlu0
    %v2882 = vsel %vm549, %v2873, 0
    %v2885 = vsel %vm553, %v2671, 0
    %2887 = vmatprep.subr.bf16.mxu0 0
    %2888 = vmatpush1.bf16.msra.mxu0 %v2885
    %2889 = vmatprep.subr.bf16.mxu0 0
    %2890 = vmatpush1.bf16.msra.mxu0 0
    %2891 = vmatprep.subr.bf16.mxu0 0
    %2892 = vmatpush1.bf16.msra.mxu0 0
    %2893 = vmatprep.subr.bf16.mxu0 0
    %2894 = vmatpush1.bf16.msra.mxu0 0
    %2895 = vmatprep.subr.bf16.mxu0 0
    %2896 = vmatpush1.bf16.msra.mxu0 0
    %2897 = vmatprep.subr.bf16.mxu0 0
    %2898 = vmatpush1.bf16.msra.mxu0 0
    %2899 = vmatprep.subr.bf16.mxu0 0
    %2900 = vmatpush1.bf16.msra.mxu0 0
    %2901 = vmatprep.subr.bf16.mxu0 0
    %2902 = vmatpush1.bf16.msra.mxu0 0
    %2903 = vmatprep.subr.bf16.mxu0 0
    %2904 = vmatpush1.bf16.msra.mxu0 0
    %2905 = vmatprep.subr.bf16.mxu0 0
    %2906 = vmatpush1.bf16.msra.mxu0 0
    %2907 = vmatprep.subr.bf16.mxu0 0
    %2908 = vmatpush1.bf16.msra.mxu0 0
    %2909 = vmatprep.subr.bf16.mxu0 0
    %2910 = vmatpush1.bf16.msra.mxu0 0
    %2911 = vmatprep.subr.bf16.mxu0 0
    %2912 = vmatpush1.bf16.msra.mxu0 0
    %2913 = vmatprep.subr.bf16.mxu0 0
    %2914 = vmatpush1.bf16.msra.mxu0 0
    %2915 = vmatprep.subr.bf16.mxu0 0
    %2916 = vmatpush1.bf16.msra.mxu0 0
    %2917 = vmatprep.subr.bf16.mxu0 0
    %2918 = vmatpush1.bf16.msra.mxu0 0
    %2919 = vmatprep.mubr.bf16.mxu0 0
    %2920 = vmatmul.mubr.bf16.gmra.mrb[0].mxu0 %v2882
    %v2921 = vpop.f32.mrb[0].mxu0
    %v2922 = vadd.f32 0.0, %v2921
    %v2923 = vpop.f32.mrb[0].mxu0
    %v2924 = vpop.f32.mrb[0].mxu0
    %v2925 = vadd.f32 0.0, %v2924
    %v2926 = vpop.f32.mrb[0].mxu0
    %2927 = vdwg.mxu0
    %2928 = vxpose.xlu0.c.b16.start [1/8] %v2664, 128
    %2929 = vxpose.xlu0.c.b16.cont [2/8] 0, 128
    %2930 = vxpose.xlu0.c.b16.cont [3/8] 0, 128
    %2931 = vxpose.xlu0.c.b16.cont [4/8] 0, 128
    %2932 = vxpose.xlu0.c.b16.cont [5/8] 0, 128
    %2933 = vxpose.xlu0.c.b16.cont [6/8] 0, 128
    %2934 = vxpose.xlu0.c.b16.cont [7/8] 0, 128
    %2935 = vxpose.xlu0.c.b16.end [8/8] 0, 128
    %v2936 = vpop.trf.xlu0
    %v2937 = vpop.trf.xlu0
    %v2938 = vpop.trf.xlu0
    %v2939 = vpop.trf.xlu0
    %v2940 = vpop.trf.xlu0
    %v2941 = vpop.trf.xlu0
    %v2942 = vpop.trf.xlu0
    %v2943 = vpop.trf.xlu0
    %v2945 = vsel %vm549, %v2936, 0
    %v2948 = vsel %vm553, %v2672, 0
    %2950 = vmatprep.subr.bf16.mxu0 0
    %2951 = vmatpush1.bf16.msra.mxu0 %v2948
    %2952 = vmatprep.subr.bf16.mxu0 0
    %2953 = vmatpush1.bf16.msra.mxu0 0
    %2954 = vmatprep.subr.bf16.mxu0 0
    %2955 = vmatpush1.bf16.msra.mxu0 0
    %2956 = vmatprep.subr.bf16.mxu0 0
    %2957 = vmatpush1.bf16.msra.mxu0 0
    %2958 = vmatprep.subr.bf16.mxu0 0
    %2959 = vmatpush1.bf16.msra.mxu0 0
    %2960 = vmatprep.subr.bf16.mxu0 0
    %2961 = vmatpush1.bf16.msra.mxu0 0
    %2962 = vmatprep.subr.bf16.mxu0 0
    %2963 = vmatpush1.bf16.msra.mxu0 0
    %2964 = vmatprep.subr.bf16.mxu0 0
    %2965 = vmatpush1.bf16.msra.mxu0 0
    %2966 = vmatprep.subr.bf16.mxu0 0
    %2967 = vmatpush1.bf16.msra.mxu0 0
    %2968 = vmatprep.subr.bf16.mxu0 0
    %2969 = vmatpush1.bf16.msra.mxu0 0
    %2970 = vmatprep.subr.bf16.mxu0 0
    %2971 = vmatpush1.bf16.msra.mxu0 0
    %2972 = vmatprep.subr.bf16.mxu0 0
    %2973 = vmatpush1.bf16.msra.mxu0 0
    %2974 = vmatprep.subr.bf16.mxu0 0
    %2975 = vmatpush1.bf16.msra.mxu0 0
    %2976 = vmatprep.subr.bf16.mxu0 0
    %2977 = vmatpush1.bf16.msra.mxu0 0
    %2978 = vmatprep.subr.bf16.mxu0 0
    %2979 = vmatpush1.bf16.msra.mxu0 0
    %2980 = vmatprep.subr.bf16.mxu0 0
    %2981 = vmatpush1.bf16.msra.mxu0 0
    %2982 = vmatprep.mubr.bf16.mxu0 0
    %2983 = vmatmul.mubr.bf16.gmra.mrb[0].mxu0 %v2945
    %v2984 = vpop.f32.mrb[0].mxu0
    %v2985 = vadd.f32 0.0, %v2984
    %v2986 = vpop.f32.mrb[0].mxu0
    %v2987 = vpop.f32.mrb[0].mxu0
    %v2988 = vadd.f32 0.0, %v2987
    %v2989 = vpop.f32.mrb[0].mxu0
    %2990 = vdwg.mxu0
    %2991 = vxpose.xlu0.c.b16.start [1/8] %v2665, 128
    %2992 = vxpose.xlu0.c.b16.cont [2/8] 0, 128
    %2993 = vxpose.xlu0.c.b16.cont [3/8] 0, 128
    %2994 = vxpose.xlu0.c.b16.cont [4/8] 0, 128
    %2995 = vxpose.xlu0.c.b16.cont [5/8] 0, 128
    %2996 = vxpose.xlu0.c.b16.cont [6/8] 0, 128
    %2997 = vxpose.xlu0.c.b16.cont [7/8] 0, 128
    %2998 = vxpose.xlu0.c.b16.end [8/8] 0, 128
    %v2999 = vpop.trf.xlu0
    %v3000 = vpop.trf.xlu0
    %v3001 = vpop.trf.xlu0
    %v3002 = vpop.trf.xlu0
    %v3003 = vpop.trf.xlu0
    %v3004 = vpop.trf.xlu0
    %v3005 = vpop.trf.xlu0
    %v3006 = vpop.trf.xlu0
    %v3008 = vsel %vm549, %v2999, 0
    %v3011 = vsel %vm553, %v2673, 0
    %3013 = vmatprep.subr.bf16.mxu0 0
    %3014 = vmatpush1.bf16.msra.mxu0 %v3011
    %3015 = vmatprep.subr.bf16.mxu0 0
    %3016 = vmatpush1.bf16.msra.mxu0 0
    %3017 = vmatprep.subr.bf16.mxu0 0
    %3018 = vmatpush1.bf16.msra.mxu0 0
    %3019 = vmatprep.subr.bf16.mxu0 0
    %3020 = vmatpush1.bf16.msra.mxu0 0
    %3021 = vmatprep.subr.bf16.mxu0 0
    %3022 = vmatpush1.bf16.msra.mxu0 0
    %3023 = vmatprep.subr.bf16.mxu0 0
    %3024 = vmatpush1.bf16.msra.mxu0 0
    %3025 = vmatprep.subr.bf16.mxu0 0
    %3026 = vmatpush1.bf16.msra.mxu0 0
    %3027 = vmatprep.subr.bf16.mxu0 0
    %3028 = vmatpush1.bf16.msra.mxu0 0
    %3029 = vmatprep.subr.bf16.mxu0 0
    %3030 = vmatpush1.bf16.msra.mxu0 0
    %3031 = vmatprep.subr.bf16.mxu0 0
    %3032 = vmatpush1.bf16.msra.mxu0 0
    %3033 = vmatprep.subr.bf16.mxu0 0
    %3034 = vmatpush1.bf16.msra.mxu0 0
    %3035 = vmatprep.subr.bf16.mxu0 0
    %3036 = vmatpush1.bf16.msra.mxu0 0
    %3037 = vmatprep.subr.bf16.mxu0 0
    %3038 = vmatpush1.bf16.msra.mxu0 0
    %3039 = vmatprep.subr.bf16.mxu0 0
    %3040 = vmatpush1.bf16.msra.mxu0 0
    %3041 = vmatprep.subr.bf16.mxu0 0
    %3042 = vmatpush1.bf16.msra.mxu0 0
    %3043 = vmatprep.subr.bf16.mxu0 0
    %3044 = vmatpush1.bf16.msra.mxu0 0
    %3045 = vmatprep.mubr.bf16.mxu0 0
    %3046 = vmatmul.mubr.bf16.gmra.mrb[0].mxu0 %v3008
    %v3047 = vpop.f32.mrb[0].mxu0
    %v3048 = vadd.f32 0.0, %v3047
    %v3049 = vpop.f32.mrb[0].mxu0
    %v3050 = vpop.f32.mrb[0].mxu0
    %v3051 = vadd.f32 0.0, %v3050
    %v3052 = vpop.f32.mrb[0].mxu0
    %3053 = vdwg.mxu0
    %3054 = vxpose.xlu0.c.b16.start [1/8] %v2666, 128
    %3055 = vxpose.xlu0.c.b16.cont [2/8] 0, 128
    %3056 = vxpose.xlu0.c.b16.cont [3/8] 0, 128
    %3057 = vxpose.xlu0.c.b16.cont [4/8] 0, 128
    %3058 = vxpose.xlu0.c.b16.cont [5/8] 0, 128
    %3059 = vxpose.xlu0.c.b16.cont [6/8] 0, 128
    %3060 = vxpose.xlu0.c.b16.cont [7/8] 0, 128
    %3061 = vxpose.xlu0.c.b16.end [8/8] 0, 128
    %v3062 = vpop.trf.xlu0
    %v3063 = vpop.trf.xlu0
    %v3064 = vpop.trf.xlu0
    %v3065 = vpop.trf.xlu0
    %v3066 = vpop.trf.xlu0
    %v3067 = vpop.trf.xlu0
    %v3068 = vpop.trf.xlu0
    %v3069 = vpop.trf.xlu0
    %v3071 = vsel %vm549, %v3062, 0
    %v3074 = vsel %vm553, %v2674, 0
    %3076 = vmatprep.subr.bf16.mxu0 0
    %3077 = vmatpush1.bf16.msra.mxu0 %v3074
    %3078 = vmatprep.subr.bf16.mxu0 0
    %3079 = vmatpush1.bf16.msra.mxu0 0
    %3080 = vmatprep.subr.bf16.mxu0 0
    %3081 = vmatpush1.bf16.msra.mxu0 0
    %3082 = vmatprep.subr.bf16.mxu0 0
    %3083 = vmatpush1.bf16.msra.mxu0 0
    %3084 = vmatprep.subr.bf16.mxu0 0
    %3085 = vmatpush1.bf16.msra.mxu0 0
    %3086 = vmatprep.subr.bf16.mxu0 0
    %3087 = vmatpush1.bf16.msra.mxu0 0
    %3088 = vmatprep.subr.bf16.mxu0 0
    %3089 = vmatpush1.bf16.msra.mxu0 0
    %3090 = vmatprep.subr.bf16.mxu0 0
    %3091 = vmatpush1.bf16.msra.mxu0 0
    %3092 = vmatprep.subr.bf16.mxu0 0
    %3093 = vmatpush1.bf16.msra.mxu0 0
    %3094 = vmatprep.subr.bf16.mxu0 0
    %3095 = vmatpush1.bf16.msra.mxu0 0
    %3096 = vmatprep.subr.bf16.mxu0 0
    %3097 = vmatpush1.bf16.msra.mxu0 0
    %3098 = vmatprep.subr.bf16.mxu0 0
    %3099 = vmatpush1.bf16.msra.mxu0 0
    %3100 = vmatprep.subr.bf16.mxu0 0
    %3101 = vmatpush1.bf16.msra.mxu0 0
    %3102 = vmatprep.subr.bf16.mxu0 0
    %3103 = vmatpush1.bf16.msra.mxu0 0
    %3104 = vmatprep.subr.bf16.mxu0 0
    %3105 = vmatpush1.bf16.msra.mxu0 0
    %3106 = vmatprep.subr.bf16.mxu0 0
    %3107 = vmatpush1.bf16.msra.mxu0 0
    %3108 = vmatprep.mubr.bf16.mxu0 0
    %3109 = vmatmul.mubr.bf16.gmra.mrb[0].mxu0 %v3071
    %v3110 = vpop.f32.mrb[0].mxu0
    %v3111 = vadd.f32 0.0, %v3110
    %v3112 = vpop.f32.mrb[0].mxu0
    %v3113 = vpop.f32.mrb[0].mxu0
    %v3114 = vadd.f32 0.0, %v3113
    %v3115 = vpop.f32.mrb[0].mxu0
    %3116 = vdwg.mxu0
    %3117 = vxpose.xlu0.c.b16.start [1/8] %v2667, 128
    %3118 = vxpose.xlu0.c.b16.cont [2/8] 0, 128
    %3119 = vxpose.xlu0.c.b16.cont [3/8] 0, 128
    %3120 = vxpose.xlu0.c.b16.cont [4/8] 0, 128
    %3121 = vxpose.xlu0.c.b16.cont [5/8] 0, 128
    %3122 = vxpose.xlu0.c.b16.cont [6/8] 0, 128
    %3123 = vxpose.xlu0.c.b16.cont [7/8] 0, 128
    %3124 = vxpose.xlu0.c.b16.end [8/8] 0, 128
    %v3125 = vpop.trf.xlu0
    %v3126 = vpop.trf.xlu0
    %v3127 = vpop.trf.xlu0
    %v3128 = vpop.trf.xlu0
    %v3129 = vpop.trf.xlu0
    %v3130 = vpop.trf.xlu0
    %v3131 = vpop.trf.xlu0
    %v3132 = vpop.trf.xlu0
    %v3134 = vsel %vm549, %v3125, 0
    %v3137 = vsel %vm553, %v2675, 0
    %3139 = vmatprep.subr.bf16.mxu0 0
    %3140 = vmatpush1.bf16.msra.mxu0 %v3137
    %3141 = vmatprep.subr.bf16.mxu0 0
    %3142 = vmatpush1.bf16.msra.mxu0 0
    %3143 = vmatprep.subr.bf16.mxu0 0
    %3144 = vmatpush1.bf16.msra.mxu0 0
    %3145 = vmatprep.subr.bf16.mxu0 0
    %3146 = vmatpush1.bf16.msra.mxu0 0
    %3147 = vmatprep.subr.bf16.mxu0 0
    %3148 = vmatpush1.bf16.msra.mxu0 0
    %3149 = vmatprep.subr.bf16.mxu0 0
    %3150 = vmatpush1.bf16.msra.mxu0 0
    %3151 = vmatprep.subr.bf16.mxu0 0
    %3152 = vmatpush1.bf16.msra.mxu0 0
    %3153 = vmatprep.subr.bf16.mxu0 0
    %3154 = vmatpush1.bf16.msra.mxu0 0
    %3155 = vmatprep.subr.bf16.mxu0 0
    %3156 = vmatpush1.bf16.msra.mxu0 0
    %3157 = vmatprep.subr.bf16.mxu0 0
    %3158 = vmatpush1.bf16.msra.mxu0 0
    %3159 = vmatprep.subr.bf16.mxu0 0
    %3160 = vmatpush1.bf16.msra.mxu0 0
    %3161 = vmatprep.subr.bf16.mxu0 0
    %3162 = vmatpush1.bf16.msra.mxu0 0
    %3163 = vmatprep.subr.bf16.mxu0 0
    %3164 = vmatpush1.bf16.msra.mxu0 0
    %3165 = vmatprep.subr.bf16.mxu0 0
    %3166 = vmatpush1.bf16.msra.mxu0 0
    %3167 = vmatprep.subr.bf16.mxu0 0
    %3168 = vmatpush1.bf16.msra.mxu0 0
    %3169 = vmatprep.subr.bf16.mxu0 0
    %3170 = vmatpush1.bf16.msra.mxu0 0
    %3171 = vmatprep.mubr.bf16.mxu0 0
    %3172 = vmatmul.mubr.bf16.gmra.mrb[0].mxu0 %v3134
    %v3173 = vpop.f32.mrb[0].mxu0
    %v3174 = vadd.f32 0.0, %v3173
    %v3175 = vpop.f32.mrb[0].mxu0
    %v3176 = vpop.f32.mrb[0].mxu0
    %v3177 = vadd.f32 0.0, %v3176
    %v3178 = vpop.f32.mrb[0].mxu0
    %3179 = vdwg.mxu0
    %v3180 = vmul.f32 %v2733, 0.35355338
    %v3181 = vmul.f32 %v2736, 0.35355338
    %v3182 = vmul.f32 %v2796, 0.35355338
    %v3183 = vmul.f32 %v2799, 0.35355338
    %v3184 = vmul.f32 %v2859, 0.35355338
    %v3185 = vmul.f32 %v2862, 0.35355338
    %v3186 = vmul.f32 %v2922, 0.35355338
    %v3187 = vmul.f32 %v2925, 0.35355338
    %v3188 = vmul.f32 %v2985, 0.35355338
    %v3189 = vmul.f32 %v2988, 0.35355338
    %v3190 = vmul.f32 %v3048, 0.35355338
    %v3191 = vmul.f32 %v3051, 0.35355338
    %v3192 = vmul.f32 %v3111, 0.35355338
    %v3193 = vmul.f32 %v3114, 0.35355338
    %v3194 = vmul.f32 %v3174, 0.35355338
    %v3195 = vmul.f32 %v3177, 0.35355338
    %v3196 = vsel %vm1055, %v3180, -inf
    %3197 = vmax.xlane.f32.xlu0 %v3196
    %v3198 = vpop.xlane.xlu0 %3197
    %v3199 = vsel %vm1055, %v3181, -inf
    %3200 = vmax.xlane.f32.xlu0 %v3199
    %v3201 = vpop.xlane.xlu0 %3200
    %v3202 = vsel %vm1055, %v3182, -inf
    %3203 = vmax.xlane.f32.xlu0 %v3202
    %v3204 = vpop.xlane.xlu0 %3203
    %v3205 = vsel %vm1055, %v3183, -inf
    %3206 = vmax.xlane.f32.xlu0 %v3205
    %v3207 = vpop.xlane.xlu0 %3206
    %v3208 = vsel %vm1055, %v3184, -inf
    %3209 = vmax.xlane.f32.xlu0 %v3208
    %v3210 = vpop.xlane.xlu0 %3209
    %v3211 = vsel %vm1055, %v3185, -inf
    %3212 = vmax.xlane.f32.xlu0 %v3211
    %v3213 = vpop.xlane.xlu0 %3212
    %v3214 = vsel %vm1055, %v3186, -inf
    %3215 = vmax.xlane.f32.xlu0 %v3214
    %v3216 = vpop.xlane.xlu0 %3215
    %v3217 = vsel %vm1055, %v3187, -inf
    %3218 = vmax.xlane.f32.xlu0 %v3217
    %v3219 = vpop.xlane.xlu0 %3218
    %v3220 = vsel %vm1055, %v3188, -inf
    %3221 = vmax.xlane.f32.xlu0 %v3220
    %v3222 = vpop.xlane.xlu0 %3221
    %v3223 = vsel %vm1055, %v3189, -inf
    %3224 = vmax.xlane.f32.xlu0 %v3223
    %v3225 = vpop.xlane.xlu0 %3224
    %v3226 = vsel %vm1055, %v3190, -inf
    %3227 = vmax.xlane.f32.xlu0 %v3226
    %v3228 = vpop.xlane.xlu0 %3227
    %v3229 = vsel %vm1055, %v3191, -inf
    %3230 = vmax.xlane.f32.xlu0 %v3229
    %v3231 = vpop.xlane.xlu0 %3230
    %v3232 = vsel %vm1055, %v3192, -inf
    %3233 = vmax.xlane.f32.xlu0 %v3232
    %v3234 = vpop.xlane.xlu0 %3233
    %v3235 = vsel %vm1055, %v3193, -inf
    %3236 = vmax.xlane.f32.xlu0 %v3235
    %v3237 = vpop.xlane.xlu0 %3236
    %v3238 = vsel %vm1055, %v3194, -inf
    %3239 = vmax.xlane.f32.xlu0 %v3238
    %v3240 = vpop.xlane.xlu0 %3239
    %v3241 = vsel %vm1055, %v3195, -inf
    %3242 = vmax.xlane.f32.xlu0 %v3241
    %v3243 = vpop.xlane.xlu0 %3242
    %v3244 = vsub.f32 %v3180, %v3198
    %v3245 = vsub.f32 %v3181, %v3201
    %v3246 = vsub.f32 %v3182, %v3204
    %v3247 = vsub.f32 %v3183, %v3207
    %v3248 = vsub.f32 %v3184, %v3210
    %v3249 = vsub.f32 %v3185, %v3213
    %v3250 = vsub.f32 %v3186, %v3216
    %v3251 = vsub.f32 %v3187, %v3219
    %v3252 = vsub.f32 %v3188, %v3222
    %v3253 = vsub.f32 %v3189, %v3225
    %v3254 = vsub.f32 %v3190, %v3228
    %v3255 = vsub.f32 %v3191, %v3231
    %v3256 = vsub.f32 %v3192, %v3234
    %v3257 = vsub.f32 %v3193, %v3237
    %v3258 = vsub.f32 %v3194, %v3240
    %v3259 = vsub.f32 %v3195, %v3243
    %v3260 = vmul.f32 %v3244, 1.442695
    %v3261 = vpow.pop %v3260
    %v3262 = vmul.f32 %v3245, 1.442695
    %v3263 = vpow.pop %v3262
    %v3264 = vmul.f32 %v3246, 1.442695
    %v3265 = vpow.pop %v3264
    %v3266 = vmul.f32 %v3247, 1.442695
    %v3267 = vpow.pop %v3266
    %v3268 = vmul.f32 %v3248, 1.442695
    %v3269 = vpow.pop %v3268
    %v3270 = vmul.f32 %v3249, 1.442695
    %v3271 = vpow.pop %v3270
    %v3272 = vmul.f32 %v3250, 1.442695
    %v3273 = vpow.pop %v3272
    %v3274 = vmul.f32 %v3251, 1.442695
    %v3275 = vpow.pop %v3274
    %v3276 = vmul.f32 %v3252, 1.442695
    %v3277 = vpow.pop %v3276
    %v3278 = vmul.f32 %v3253, 1.442695
    %v3279 = vpow.pop %v3278
    %v3280 = vmul.f32 %v3254, 1.442695
    %v3281 = vpow.pop %v3280
    %v3282 = vmul.f32 %v3255, 1.442695
    %v3283 = vpow.pop %v3282
    %v3284 = vmul.f32 %v3256, 1.442695
    %v3285 = vpow.pop %v3284
    %v3286 = vmul.f32 %v3257, 1.442695
    %v3287 = vpow.pop %v3286
    %v3288 = vmul.f32 %v3258, 1.442695
    %v3289 = vpow.pop %v3288
    %v3290 = vmul.f32 %v3259, 1.442695
    %v3291 = vpow.pop %v3290
    %v3292 = vsel %vm1055, %v3261, 0.0
    %3293 = vadd.xlane.f32.xlu0 %v3292
    %v3294 = vpop.xlane.xlu0 %3293
    %v3295 = vsel %vm1055, %v3263, 0.0
    %3296 = vadd.xlane.f32.xlu0 %v3295
    %v3297 = vpop.xlane.xlu0 %3296
    %v3298 = vsel %vm1055, %v3265, 0.0
    %3299 = vadd.xlane.f32.xlu0 %v3298
    %v3300 = vpop.xlane.xlu0 %3299
    %v3301 = vsel %vm1055, %v3267, 0.0
    %3302 = vadd.xlane.f32.xlu0 %v3301
    %v3303 = vpop.xlane.xlu0 %3302
    %v3304 = vsel %vm1055, %v3269, 0.0
    %3305 = vadd.xlane.f32.xlu0 %v3304
    %v3306 = vpop.xlane.xlu0 %3305
    %v3307 = vsel %vm1055, %v3271, 0.0
    %3308 = vadd.xlane.f32.xlu0 %v3307
    %v3309 = vpop.xlane.xlu0 %3308
    %v3310 = vsel %vm1055, %v3273, 0.0
    %3311 = vadd.xlane.f32.xlu0 %v3310
    %v3312 = vpop.xlane.xlu0 %3311
    %v3313 = vsel %vm1055, %v3275, 0.0
    %3314 = vadd.xlane.f32.xlu0 %v3313
    %v3315 = vpop.xlane.xlu0 %3314
    %v3316 = vsel %vm1055, %v3277, 0.0
    %3317 = vadd.xlane.f32.xlu0 %v3316
    %v3318 = vpop.xlane.xlu0 %3317
    %v3319 = vsel %vm1055, %v3279, 0.0
    %3320 = vadd.xlane.f32.xlu0 %v3319
    %v3321 = vpop.xlane.xlu0 %3320
    %v3322 = vsel %vm1055, %v3281, 0.0
    %3323 = vadd.xlane.f32.xlu0 %v3322
    %v3324 = vpop.xlane.xlu0 %3323
    %v3325 = vsel %vm1055, %v3283, 0.0
    %3326 = vadd.xlane.f32.xlu0 %v3325
    %v3327 = vpop.xlane.xlu0 %3326
    %v3328 = vsel %vm1055, %v3285, 0.0
    %3329 = vadd.xlane.f32.xlu0 %v3328
    %v3330 = vpop.xlane.xlu0 %3329
    %v3331 = vsel %vm1055, %v3287, 0.0
    %3332 = vadd.xlane.f32.xlu0 %v3331
    %v3333 = vpop.xlane.xlu0 %3332
    %v3334 = vsel %vm1055, %v3289, 0.0
    %3335 = vadd.xlane.f32.xlu0 %v3334
    %v3336 = vpop.xlane.xlu0 %3335
    %v3337 = vsel %vm1055, %v3291, 0.0
    %3338 = vadd.xlane.f32.xlu0 %v3337
    %v3339 = vpop.xlane.xlu0 %3338
    %v3340 = vrcp.pop %v3294
    %v3341 = vrcp.pop %v3297
    %v3342 = vrcp.pop %v3300
    %v3343 = vrcp.pop %v3303
    %v3344 = vrcp.pop %v3306
    %v3345 = vrcp.pop %v3309
    %v3346 = vrcp.pop %v3312
    %v3347 = vrcp.pop %v3315
    %v3348 = vrcp.pop %v3318
    %v3349 = vrcp.pop %v3321
    %v3350 = vrcp.pop %v3324
    %v3351 = vrcp.pop %v3327
    %v3352 = vrcp.pop %v3330
    %v3353 = vrcp.pop %v3333
    %v3354 = vrcp.pop %v3336
    %v3355 = vrcp.pop %v3339
    %v3356 = vmul.f32 %v3261, %v3340
    %v3357 = vmul.f32 %v3263, %v3341
    %v3358 = vmul.f32 %v3265, %v3342
    %v3359 = vmul.f32 %v3267, %v3343
    %v3360 = vmul.f32 %v3269, %v3344
    %v3361 = vmul.f32 %v3271, %v3345
    %v3362 = vmul.f32 %v3273, %v3346
    %v3363 = vmul.f32 %v3275, %v3347
    %v3364 = vmul.f32 %v3277, %v3348
    %v3365 = vmul.f32 %v3279, %v3349
    %v3366 = vmul.f32 %v3281, %v3350
    %v3367 = vmul.f32 %v3283, %v3351
    %v3368 = vmul.f32 %v3285, %v3352
    %v3369 = vmul.f32 %v3287, %v3353
    %v3370 = vmul.f32 %v3289, %v3354
    %v3371 = vmul.f32 %v3291, %v3355
    %v3372 = vpack.c.bf16 %v3357, %v3356
    %v3373 = vpack.c.bf16 %v3359, %v3358
    %v3374 = vpack.c.bf16 %v3361, %v3360
    %v3375 = vpack.c.bf16 %v3363, %v3362
    %v3376 = vpack.c.bf16 %v3365, %v3364
    %v3377 = vpack.c.bf16 %v3367, %v3366
    %v3378 = vpack.c.bf16 %v3369, %v3368
    %v3379 = vpack.c.bf16 %v3371, %v3370
    %v3380 = vpack.c.bf16 %v2612, %v2612
    %v3381 = vpack.c.bf16 %v2613, %v2613
    %v3382 = vpack.c.bf16 %v2614, %v2614
    %v3383 = vpack.c.bf16 %v2615, %v2615
    %v3384 = vpack.c.bf16 %v2644, %v2644
    %v3385 = vpack.c.bf16 %v2645, %v2645
    %v3386 = vpack.c.bf16 %v2646, %v2646
    %v3387 = vpack.c.bf16 %v2647, %v2647
    %v3389 = vsel %vm1055, %v3372, 0
    %v3392 = vsel %vm1055, %v3380, 0
    %3394 = vmatprep.subr.bf16.mxu0 0
    %3395 = vmatpush1.bf16.xpose.msra.mxu0 %v3392
    %3396 = vmatprep.subr.bf16.mxu0 0
    %3397 = vmatpush1.bf16.xpose.msra.mxu0 0
    %3398 = vmatprep.subr.bf16.mxu0 0
    %3399 = vmatpush1.bf16.xpose.msra.mxu0 0
    %3400 = vmatprep.subr.bf16.mxu0 0
    %3401 = vmatpush1.bf16.xpose.msra.mxu0 0
    %3402 = vmatprep.subr.bf16.mxu0 0
    %3403 = vmatpush1.bf16.xpose.msra.mxu0 0
    %3404 = vmatprep.subr.bf16.mxu0 0
    %3405 = vmatpush1.bf16.xpose.msra.mxu0 0
    %3406 = vmatprep.subr.bf16.mxu0 0
    %3407 = vmatpush1.bf16.xpose.msra.mxu0 0
    %3408 = vmatprep.subr.bf16.mxu0 0
    %3409 = vmatpush1.bf16.xpose.msra.mxu0 0
    %3410 = vmatprep.subr.bf16.mxu0 0
    %3411 = vmatpush1.bf16.xpose.msra.mxu0 0
    %3412 = vmatprep.subr.bf16.mxu0 0
    %3413 = vmatpush1.bf16.xpose.msra.mxu0 0
    %3414 = vmatprep.subr.bf16.mxu0 0
    %3415 = vmatpush1.bf16.xpose.msra.mxu0 0
    %3416 = vmatprep.subr.bf16.mxu0 0
    %3417 = vmatpush1.bf16.xpose.msra.mxu0 0
    %3418 = vmatprep.subr.bf16.mxu0 0
    %3419 = vmatpush1.bf16.xpose.msra.mxu0 0
    %3420 = vmatprep.subr.bf16.mxu0 0
    %3421 = vmatpush1.bf16.xpose.msra.mxu0 0
    %3422 = vmatprep.subr.bf16.mxu0 0
    %3423 = vmatpush1.bf16.xpose.msra.mxu0 0
    %3424 = vmatprep.subr.bf16.mxu0 0
    %3425 = vmatpush1.bf16.xpose.msra.mxu0 0
    %3426 = vmatprep.mubr.bf16.mxu0 0
    %3427 = vmatmul.mubr.bf16.gmra.mrb[0].mxu0 %v3389
    %v3428 = vpop.f32.mrb[0].mxu0
    %v3429 = vadd.f32 0.0, %v3428
    %v3430 = vpop.f32.mrb[0].mxu0
    %v3431 = vpop.f32.mrb[0].mxu0
    %v3432 = vadd.f32 0.0, %v3431
    %v3433 = vpop.f32.mrb[0].mxu0
    %3434 = vdwg.mxu0
    %v3436 = vsel %vm1055, %v3373, 0
    %v3439 = vsel %vm1055, %v3381, 0
    %3441 = vmatprep.subr.bf16.mxu0 0
    %3442 = vmatpush1.bf16.xpose.msra.mxu0 %v3439
    %3443 = vmatprep.subr.bf16.mxu0 0
    %3444 = vmatpush1.bf16.xpose.msra.mxu0 0
    %3445 = vmatprep.subr.bf16.mxu0 0
    %3446 = vmatpush1.bf16.xpose.msra.mxu0 0
    %3447 = vmatprep.subr.bf16.mxu0 0
    %3448 = vmatpush1.bf16.xpose.msra.mxu0 0
    %3449 = vmatprep.subr.bf16.mxu0 0
    %3450 = vmatpush1.bf16.xpose.msra.mxu0 0
    %3451 = vmatprep.subr.bf16.mxu0 0
    %3452 = vmatpush1.bf16.xpose.msra.mxu0 0
    %3453 = vmatprep.subr.bf16.mxu0 0
    %3454 = vmatpush1.bf16.xpose.msra.mxu0 0
    %3455 = vmatprep.subr.bf16.mxu0 0
    %3456 = vmatpush1.bf16.xpose.msra.mxu0 0
    %3457 = vmatprep.subr.bf16.mxu0 0
    %3458 = vmatpush1.bf16.xpose.msra.mxu0 0
    %3459 = vmatprep.subr.bf16.mxu0 0
    %3460 = vmatpush1.bf16.xpose.msra.mxu0 0
    %3461 = vmatprep.subr.bf16.mxu0 0
    %3462 = vmatpush1.bf16.xpose.msra.mxu0 0
    %3463 = vmatprep.subr.bf16.mxu0 0
    %3464 = vmatpush1.bf16.xpose.msra.mxu0 0
    %3465 = vmatprep.subr.bf16.mxu0 0
    %3466 = vmatpush1.bf16.xpose.msra.mxu0 0
    %3467 = vmatprep.subr.bf16.mxu0 0
    %3468 = vmatpush1.bf16.xpose.msra.mxu0 0
    %3469 = vmatprep.subr.bf16.mxu0 0
    %3470 = vmatpush1.bf16.xpose.msra.mxu0 0
    %3471 = vmatprep.subr.bf16.mxu0 0
    %3472 = vmatpush1.bf16.xpose.msra.mxu0 0
    %3473 = vmatprep.mubr.bf16.mxu0 0
    %3474 = vmatmul.mubr.bf16.gmra.mrb[0].mxu0 %v3436
    %v3475 = vpop.f32.mrb[0].mxu0
    %v3476 = vadd.f32 0.0, %v3475
    %v3477 = vpop.f32.mrb[0].mxu0
    %v3478 = vpop.f32.mrb[0].mxu0
    %v3479 = vadd.f32 0.0, %v3478
    %v3480 = vpop.f32.mrb[0].mxu0
    %3481 = vdwg.mxu0
    %v3483 = vsel %vm1055, %v3374, 0
    %v3486 = vsel %vm1055, %v3382, 0
    %3488 = vmatprep.subr.bf16.mxu0 0
    %3489 = vmatpush1.bf16.xpose.msra.mxu0 %v3486
    %3490 = vmatprep.subr.bf16.mxu0 0
    %3491 = vmatpush1.bf16.xpose.msra.mxu0 0
    %3492 = vmatprep.subr.bf16.mxu0 0
    %3493 = vmatpush1.bf16.xpose.msra.mxu0 0
    %3494 = vmatprep.subr.bf16.mxu0 0
    %3495 = vmatpush1.bf16.xpose.msra.mxu0 0
    %3496 = vmatprep.subr.bf16.mxu0 0
    %3497 = vmatpush1.bf16.xpose.msra.mxu0 0
    %3498 = vmatprep.subr.bf16.mxu0 0
    %3499 = vmatpush1.bf16.xpose.msra.mxu0 0
    %3500 = vmatprep.subr.bf16.mxu0 0
    %3501 = vmatpush1.bf16.xpose.msra.mxu0 0
    %3502 = vmatprep.subr.bf16.mxu0 0
    %3503 = vmatpush1.bf16.xpose.msra.mxu0 0
    %3504 = vmatprep.subr.bf16.mxu0 0
    %3505 = vmatpush1.bf16.xpose.msra.mxu0 0
    %3506 = vmatprep.subr.bf16.mxu0 0
    %3507 = vmatpush1.bf16.xpose.msra.mxu0 0
    %3508 = vmatprep.subr.bf16.mxu0 0
    %3509 = vmatpush1.bf16.xpose.msra.mxu0 0
    %3510 = vmatprep.subr.bf16.mxu0 0
    %3511 = vmatpush1.bf16.xpose.msra.mxu0 0
    %3512 = vmatprep.subr.bf16.mxu0 0
    %3513 = vmatpush1.bf16.xpose.msra.mxu0 0
    %3514 = vmatprep.subr.bf16.mxu0 0
    %3515 = vmatpush1.bf16.xpose.msra.mxu0 0
    %3516 = vmatprep.subr.bf16.mxu0 0
    %3517 = vmatpush1.bf16.xpose.msra.mxu0 0
    %3518 = vmatprep.subr.bf16.mxu0 0
    %3519 = vmatpush1.bf16.xpose.msra.mxu0 0
    %3520 = vmatprep.mubr.bf16.mxu0 0
    %3521 = vmatmul.mubr.bf16.gmra.mrb[0].mxu0 %v3483
    %v3522 = vpop.f32.mrb[0].mxu0
    %v3523 = vadd.f32 0.0, %v3522
    %v3524 = vpop.f32.mrb[0].mxu0
    %v3525 = vpop.f32.mrb[0].mxu0
    %v3526 = vadd.f32 0.0, %v3525
    %v3527 = vpop.f32.mrb[0].mxu0
    %3528 = vdwg.mxu0
    %v3530 = vsel %vm1055, %v3375, 0
    %v3533 = vsel %vm1055, %v3383, 0
    %3535 = vmatprep.subr.bf16.mxu0 0
    %3536 = vmatpush1.bf16.xpose.msra.mxu0 %v3533
    %3537 = vmatprep.subr.bf16.mxu0 0
    %3538 = vmatpush1.bf16.xpose.msra.mxu0 0
    %3539 = vmatprep.subr.bf16.mxu0 0
    %3540 = vmatpush1.bf16.xpose.msra.mxu0 0
    %3541 = vmatprep.subr.bf16.mxu0 0
    %3542 = vmatpush1.bf16.xpose.msra.mxu0 0
    %3543 = vmatprep.subr.bf16.mxu0 0
    %3544 = vmatpush1.bf16.xpose.msra.mxu0 0
    %3545 = vmatprep.subr.bf16.mxu0 0
    %3546 = vmatpush1.bf16.xpose.msra.mxu0 0
    %3547 = vmatprep.subr.bf16.mxu0 0
    %3548 = vmatpush1.bf16.xpose.msra.mxu0 0
    %3549 = vmatprep.subr.bf16.mxu0 0
    %3550 = vmatpush1.bf16.xpose.msra.mxu0 0
    %3551 = vmatprep.subr.bf16.mxu0 0
    %3552 = vmatpush1.bf16.xpose.msra.mxu0 0
    %3553 = vmatprep.subr.bf16.mxu0 0
    %3554 = vmatpush1.bf16.xpose.msra.mxu0 0
    %3555 = vmatprep.subr.bf16.mxu0 0
    %3556 = vmatpush1.bf16.xpose.msra.mxu0 0
    %3557 = vmatprep.subr.bf16.mxu0 0
    %3558 = vmatpush1.bf16.xpose.msra.mxu0 0
    %3559 = vmatprep.subr.bf16.mxu0 0
    %3560 = vmatpush1.bf16.xpose.msra.mxu0 0
    %3561 = vmatprep.subr.bf16.mxu0 0
    %3562 = vmatpush1.bf16.xpose.msra.mxu0 0
    %3563 = vmatprep.subr.bf16.mxu0 0
    %3564 = vmatpush1.bf16.xpose.msra.mxu0 0
    %3565 = vmatprep.subr.bf16.mxu0 0
    %3566 = vmatpush1.bf16.xpose.msra.mxu0 0
    %3567 = vmatprep.mubr.bf16.mxu0 0
    %3568 = vmatmul.mubr.bf16.gmra.mrb[0].mxu0 %v3530
    %v3569 = vpop.f32.mrb[0].mxu0
    %v3570 = vadd.f32 0.0, %v3569
    %v3571 = vpop.f32.mrb[0].mxu0
    %v3572 = vpop.f32.mrb[0].mxu0
    %v3573 = vadd.f32 0.0, %v3572
    %v3574 = vpop.f32.mrb[0].mxu0
    %3575 = vdwg.mxu0
    %v3577 = vsel %vm1055, %v3376, 0
    %v3580 = vsel %vm1055, %v3384, 0
    %3582 = vmatprep.subr.bf16.mxu0 0
    %3583 = vmatpush1.bf16.xpose.msra.mxu0 %v3580
    %3584 = vmatprep.subr.bf16.mxu0 0
    %3585 = vmatpush1.bf16.xpose.msra.mxu0 0
    %3586 = vmatprep.subr.bf16.mxu0 0
    %3587 = vmatpush1.bf16.xpose.msra.mxu0 0
    %3588 = vmatprep.subr.bf16.mxu0 0
    %3589 = vmatpush1.bf16.xpose.msra.mxu0 0
    %3590 = vmatprep.subr.bf16.mxu0 0
    %3591 = vmatpush1.bf16.xpose.msra.mxu0 0
    %3592 = vmatprep.subr.bf16.mxu0 0
    %3593 = vmatpush1.bf16.xpose.msra.mxu0 0
    %3594 = vmatprep.subr.bf16.mxu0 0
    %3595 = vmatpush1.bf16.xpose.msra.mxu0 0
    %3596 = vmatprep.subr.bf16.mxu0 0
    %3597 = vmatpush1.bf16.xpose.msra.mxu0 0
    %3598 = vmatprep.subr.bf16.mxu0 0
    %3599 = vmatpush1.bf16.xpose.msra.mxu0 0
    %3600 = vmatprep.subr.bf16.mxu0 0
    %3601 = vmatpush1.bf16.xpose.msra.mxu0 0
    %3602 = vmatprep.subr.bf16.mxu0 0
    %3603 = vmatpush1.bf16.xpose.msra.mxu0 0
    %3604 = vmatprep.subr.bf16.mxu0 0
    %3605 = vmatpush1.bf16.xpose.msra.mxu0 0
    %3606 = vmatprep.subr.bf16.mxu0 0
    %3607 = vmatpush1.bf16.xpose.msra.mxu0 0
    %3608 = vmatprep.subr.bf16.mxu0 0
    %3609 = vmatpush1.bf16.xpose.msra.mxu0 0
    %3610 = vmatprep.subr.bf16.mxu0 0
    %3611 = vmatpush1.bf16.xpose.msra.mxu0 0
    %3612 = vmatprep.subr.bf16.mxu0 0
    %3613 = vmatpush1.bf16.xpose.msra.mxu0 0
    %3614 = vmatprep.mubr.bf16.mxu0 0
    %3615 = vmatmul.mubr.bf16.gmra.mrb[0].mxu0 %v3577
    %v3616 = vpop.f32.mrb[0].mxu0
    %v3617 = vadd.f32 0.0, %v3616
    %v3618 = vpop.f32.mrb[0].mxu0
    %v3619 = vpop.f32.mrb[0].mxu0
    %v3620 = vadd.f32 0.0, %v3619
    %v3621 = vpop.f32.mrb[0].mxu0
    %3622 = vdwg.mxu0
    %v3624 = vsel %vm1055, %v3377, 0
    %v3627 = vsel %vm1055, %v3385, 0
    %3629 = vmatprep.subr.bf16.mxu0 0
    %3630 = vmatpush1.bf16.xpose.msra.mxu0 %v3627
    %3631 = vmatprep.subr.bf16.mxu0 0
    %3632 = vmatpush1.bf16.xpose.msra.mxu0 0
    %3633 = vmatprep.subr.bf16.mxu0 0
    %3634 = vmatpush1.bf16.xpose.msra.mxu0 0
    %3635 = vmatprep.subr.bf16.mxu0 0
    %3636 = vmatpush1.bf16.xpose.msra.mxu0 0
    %3637 = vmatprep.subr.bf16.mxu0 0
    %3638 = vmatpush1.bf16.xpose.msra.mxu0 0
    %3639 = vmatprep.subr.bf16.mxu0 0
    %3640 = vmatpush1.bf16.xpose.msra.mxu0 0
    %3641 = vmatprep.subr.bf16.mxu0 0
    %3642 = vmatpush1.bf16.xpose.msra.mxu0 0
    %3643 = vmatprep.subr.bf16.mxu0 0
    %3644 = vmatpush1.bf16.xpose.msra.mxu0 0
    %3645 = vmatprep.subr.bf16.mxu0 0
    %3646 = vmatpush1.bf16.xpose.msra.mxu0 0
    %3647 = vmatprep.subr.bf16.mxu0 0
    %3648 = vmatpush1.bf16.xpose.msra.mxu0 0
    %3649 = vmatprep.subr.bf16.mxu0 0
    %3650 = vmatpush1.bf16.xpose.msra.mxu0 0
    %3651 = vmatprep.subr.bf16.mxu0 0
    %3652 = vmatpush1.bf16.xpose.msra.mxu0 0
    %3653 = vmatprep.subr.bf16.mxu0 0
    %3654 = vmatpush1.bf16.xpose.msra.mxu0 0
    %3655 = vmatprep.subr.bf16.mxu0 0
    %3656 = vmatpush1.bf16.xpose.msra.mxu0 0
    %3657 = vmatprep.subr.bf16.mxu0 0
    %3658 = vmatpush1.bf16.xpose.msra.mxu0 0
    %3659 = vmatprep.subr.bf16.mxu0 0
    %3660 = vmatpush1.bf16.xpose.msra.mxu0 0
    %3661 = vmatprep.mubr.bf16.mxu0 0
    %3662 = vmatmul.mubr.bf16.gmra.mrb[0].mxu0 %v3624
    %v3663 = vpop.f32.mrb[0].mxu0
    %v3664 = vadd.f32 0.0, %v3663
    %v3665 = vpop.f32.mrb[0].mxu0
    %v3666 = vpop.f32.mrb[0].mxu0
    %v3667 = vadd.f32 0.0, %v3666
    %v3668 = vpop.f32.mrb[0].mxu0
    %3669 = vdwg.mxu0
    %v3671 = vsel %vm1055, %v3378, 0
    %v3674 = vsel %vm1055, %v3386, 0
    %3676 = vmatprep.subr.bf16.mxu0 0
    %3677 = vmatpush1.bf16.xpose.msra.mxu0 %v3674
    %3678 = vmatprep.subr.bf16.mxu0 0
    %3679 = vmatpush1.bf16.xpose.msra.mxu0 0
    %3680 = vmatprep.subr.bf16.mxu0 0
    %3681 = vmatpush1.bf16.xpose.msra.mxu0 0
    %3682 = vmatprep.subr.bf16.mxu0 0
    %3683 = vmatpush1.bf16.xpose.msra.mxu0 0
    %3684 = vmatprep.subr.bf16.mxu0 0
    %3685 = vmatpush1.bf16.xpose.msra.mxu0 0
    %3686 = vmatprep.subr.bf16.mxu0 0
    %3687 = vmatpush1.bf16.xpose.msra.mxu0 0
    %3688 = vmatprep.subr.bf16.mxu0 0
    %3689 = vmatpush1.bf16.xpose.msra.mxu0 0
    %3690 = vmatprep.subr.bf16.mxu0 0
    %3691 = vmatpush1.bf16.xpose.msra.mxu0 0
    %3692 = vmatprep.subr.bf16.mxu0 0
    %3693 = vmatpush1.bf16.xpose.msra.mxu0 0
    %3694 = vmatprep.subr.bf16.mxu0 0
    %3695 = vmatpush1.bf16.xpose.msra.mxu0 0
    %3696 = vmatprep.subr.bf16.mxu0 0
    %3697 = vmatpush1.bf16.xpose.msra.mxu0 0
    %3698 = vmatprep.subr.bf16.mxu0 0
    %3699 = vmatpush1.bf16.xpose.msra.mxu0 0
    %3700 = vmatprep.subr.bf16.mxu0 0
    %3701 = vmatpush1.bf16.xpose.msra.mxu0 0
    %3702 = vmatprep.subr.bf16.mxu0 0
    %3703 = vmatpush1.bf16.xpose.msra.mxu0 0
    %3704 = vmatprep.subr.bf16.mxu0 0
    %3705 = vmatpush1.bf16.xpose.msra.mxu0 0
    %3706 = vmatprep.subr.bf16.mxu0 0
    %3707 = vmatpush1.bf16.xpose.msra.mxu0 0
    %3708 = vmatprep.mubr.bf16.mxu0 0
    %3709 = vmatmul.mubr.bf16.gmra.mrb[0].mxu0 %v3671
    %v3710 = vpop.f32.mrb[0].mxu0
    %v3711 = vadd.f32 0.0, %v3710
    %v3712 = vpop.f32.mrb[0].mxu0
    %v3713 = vpop.f32.mrb[0].mxu0
    %v3714 = vadd.f32 0.0, %v3713
    %v3715 = vpop.f32.mrb[0].mxu0
    %3716 = vdwg.mxu0
    %v3718 = vsel %vm1055, %v3379, 0
    %v3721 = vsel %vm1055, %v3387, 0
    %3723 = vmatprep.subr.bf16.mxu0 0
    %3724 = vmatpush1.bf16.xpose.msra.mxu0 %v3721
    %3725 = vmatprep.subr.bf16.mxu0 0
    %3726 = vmatpush1.bf16.xpose.msra.mxu0 0
    %3727 = vmatprep.subr.bf16.mxu0 0
    %3728 = vmatpush1.bf16.xpose.msra.mxu0 0
    %3729 = vmatprep.subr.bf16.mxu0 0
    %3730 = vmatpush1.bf16.xpose.msra.mxu0 0
    %3731 = vmatprep.subr.bf16.mxu0 0
    %3732 = vmatpush1.bf16.xpose.msra.mxu0 0
    %3733 = vmatprep.subr.bf16.mxu0 0
    %3734 = vmatpush1.bf16.xpose.msra.mxu0 0
    %3735 = vmatprep.subr.bf16.mxu0 0
    %3736 = vmatpush1.bf16.xpose.msra.mxu0 0
    %3737 = vmatprep.subr.bf16.mxu0 0
    %3738 = vmatpush1.bf16.xpose.msra.mxu0 0
    %3739 = vmatprep.subr.bf16.mxu0 0
    %3740 = vmatpush1.bf16.xpose.msra.mxu0 0
    %3741 = vmatprep.subr.bf16.mxu0 0
    %3742 = vmatpush1.bf16.xpose.msra.mxu0 0
    %3743 = vmatprep.subr.bf16.mxu0 0
    %3744 = vmatpush1.bf16.xpose.msra.mxu0 0
    %3745 = vmatprep.subr.bf16.mxu0 0
    %3746 = vmatpush1.bf16.xpose.msra.mxu0 0
    %3747 = vmatprep.subr.bf16.mxu0 0
    %3748 = vmatpush1.bf16.xpose.msra.mxu0 0
    %3749 = vmatprep.subr.bf16.mxu0 0
    %3750 = vmatpush1.bf16.xpose.msra.mxu0 0
    %3751 = vmatprep.subr.bf16.mxu0 0
    %3752 = vmatpush1.bf16.xpose.msra.mxu0 0
    %3753 = vmatprep.subr.bf16.mxu0 0
    %3754 = vmatpush1.bf16.xpose.msra.mxu0 0
    %3755 = vmatprep.mubr.bf16.mxu0 0
    %3756 = vmatmul.mubr.bf16.gmra.mrb[0].mxu0 %v3718
    %v3757 = vpop.f32.mrb[0].mxu0
    %v3758 = vadd.f32 0.0, %v3757
    %v3759 = vpop.f32.mrb[0].mxu0
    %v3760 = vpop.f32.mrb[0].mxu0
    %v3761 = vadd.f32 0.0, %v3760
    %v3762 = vpop.f32.mrb[0].mxu0
    %3763 = vdwg.mxu0
    %3764 = vxpose.xlu0.b32.start [1/16] %v3429, 128
    %3765 = vxpose.xlu0.b32.cont [2/16] %v3432, 128
    %3766 = vxpose.xlu0.b32.cont [3/16] 0.0, 128
    %3767 = vxpose.xlu0.b32.cont [4/16] 0.0, 128
    %3768 = vxpose.xlu0.b32.cont [5/16] 0.0, 128
    %3769 = vxpose.xlu0.b32.cont [6/16] 0.0, 128
    %3770 = vxpose.xlu0.b32.cont [7/16] 0.0, 128
    %3771 = vxpose.xlu0.b32.cont [8/16] 0.0, 128
    %3772 = vxpose.xlu0.b32.cont [9/16] 0.0, 128
    %3773 = vxpose.xlu0.b32.cont [10/16] 0.0, 128
    %3774 = vxpose.xlu0.b32.cont [11/16] 0.0, 128
    %3775 = vxpose.xlu0.b32.cont [12/16] 0.0, 128
    %3776 = vxpose.xlu0.b32.cont [13/16] 0.0, 128
    %3777 = vxpose.xlu0.b32.cont [14/16] 0.0, 128
    %3778 = vxpose.xlu0.b32.cont [15/16] 0.0, 128
    %3779 = vxpose.xlu0.b32.end [16/16] 0.0, 128
    %v3780 = vpop.trf.xlu0
    %v3781 = vpop.trf.xlu0
    %v3782 = vpop.trf.xlu0
    %v3783 = vpop.trf.xlu0
    %v3784 = vpop.trf.xlu0
    %v3785 = vpop.trf.xlu0
    %v3786 = vpop.trf.xlu0
    %v3787 = vpop.trf.xlu0
    %v3788 = vpop.trf.xlu0
    %v3789 = vpop.trf.xlu0
    %v3790 = vpop.trf.xlu0
    %v3791 = vpop.trf.xlu0
    %v3792 = vpop.trf.xlu0
    %v3793 = vpop.trf.xlu0
    %v3794 = vpop.trf.xlu0
    %v3795 = vpop.trf.xlu0
    %3796 = vxpose.xlu0.b32.start [1/16] %v3476, 128
    %3797 = vxpose.xlu0.b32.cont [2/16] %v3479, 128
    %3798 = vxpose.xlu0.b32.cont [3/16] 0.0, 128
    %3799 = vxpose.xlu0.b32.cont [4/16] 0.0, 128
    %3800 = vxpose.xlu0.b32.cont [5/16] 0.0, 128
    %3801 = vxpose.xlu0.b32.cont [6/16] 0.0, 128
    %3802 = vxpose.xlu0.b32.cont [7/16] 0.0, 128
    %3803 = vxpose.xlu0.b32.cont [8/16] 0.0, 128
    %3804 = vxpose.xlu0.b32.cont [9/16] 0.0, 128
    %3805 = vxpose.xlu0.b32.cont [10/16] 0.0, 128
    %3806 = vxpose.xlu0.b32.cont [11/16] 0.0, 128
    %3807 = vxpose.xlu0.b32.cont [12/16] 0.0, 128
    %3808 = vxpose.xlu0.b32.cont [13/16] 0.0, 128
    %3809 = vxpose.xlu0.b32.cont [14/16] 0.0, 128
    %3810 = vxpose.xlu0.b32.cont [15/16] 0.0, 128
    %3811 = vxpose.xlu0.b32.end [16/16] 0.0, 128
    %v3812 = vpop.trf.xlu0
    %v3813 = vpop.trf.xlu0
    %v3814 = vpop.trf.xlu0
    %v3815 = vpop.trf.xlu0
    %v3816 = vpop.trf.xlu0
    %v3817 = vpop.trf.xlu0
    %v3818 = vpop.trf.xlu0
    %v3819 = vpop.trf.xlu0
    %v3820 = vpop.trf.xlu0
    %v3821 = vpop.trf.xlu0
    %v3822 = vpop.trf.xlu0
    %v3823 = vpop.trf.xlu0
    %v3824 = vpop.trf.xlu0
    %v3825 = vpop.trf.xlu0
    %v3826 = vpop.trf.xlu0
    %v3827 = vpop.trf.xlu0
    %3828 = vxpose.xlu0.b32.start [1/16] %v3523, 128
    %3829 = vxpose.xlu0.b32.cont [2/16] %v3526, 128
    %3830 = vxpose.xlu0.b32.cont [3/16] 0.0, 128
    %3831 = vxpose.xlu0.b32.cont [4/16] 0.0, 128
    %3832 = vxpose.xlu0.b32.cont [5/16] 0.0, 128
    %3833 = vxpose.xlu0.b32.cont [6/16] 0.0, 128
    %3834 = vxpose.xlu0.b32.cont [7/16] 0.0, 128
    %3835 = vxpose.xlu0.b32.cont [8/16] 0.0, 128
    %3836 = vxpose.xlu0.b32.cont [9/16] 0.0, 128
    %3837 = vxpose.xlu0.b32.cont [10/16] 0.0, 128
    %3838 = vxpose.xlu0.b32.cont [11/16] 0.0, 128
    %3839 = vxpose.xlu0.b32.cont [12/16] 0.0, 128
    %3840 = vxpose.xlu0.b32.cont [13/16] 0.0, 128
    %3841 = vxpose.xlu0.b32.cont [14/16] 0.0, 128
    %3842 = vxpose.xlu0.b32.cont [15/16] 0.0, 128
    %3843 = vxpose.xlu0.b32.end [16/16] 0.0, 128
    %v3844 = vpop.trf.xlu0
    %v3845 = vpop.trf.xlu0
    %v3846 = vpop.trf.xlu0
    %v3847 = vpop.trf.xlu0
    %v3848 = vpop.trf.xlu0
    %v3849 = vpop.trf.xlu0
    %v3850 = vpop.trf.xlu0
    %v3851 = vpop.trf.xlu0
    %v3852 = vpop.trf.xlu0
    %v3853 = vpop.trf.xlu0
    %v3854 = vpop.trf.xlu0
    %v3855 = vpop.trf.xlu0
    %v3856 = vpop.trf.xlu0
    %v3857 = vpop.trf.xlu0
    %v3858 = vpop.trf.xlu0
    %v3859 = vpop.trf.xlu0
    %3860 = vxpose.xlu0.b32.start [1/16] %v3570, 128
    %3861 = vxpose.xlu0.b32.cont [2/16] %v3573, 128
    %3862 = vxpose.xlu0.b32.cont [3/16] 0.0, 128
    %3863 = vxpose.xlu0.b32.cont [4/16] 0.0, 128
    %3864 = vxpose.xlu0.b32.cont [5/16] 0.0, 128
    %3865 = vxpose.xlu0.b32.cont [6/16] 0.0, 128
    %3866 = vxpose.xlu0.b32.cont [7/16] 0.0, 128
    %3867 = vxpose.xlu0.b32.cont [8/16] 0.0, 128
    %3868 = vxpose.xlu0.b32.cont [9/16] 0.0, 128
    %3869 = vxpose.xlu0.b32.cont [10/16] 0.0, 128
    %3870 = vxpose.xlu0.b32.cont [11/16] 0.0, 128
    %3871 = vxpose.xlu0.b32.cont [12/16] 0.0, 128
    %3872 = vxpose.xlu0.b32.cont [13/16] 0.0, 128
    %3873 = vxpose.xlu0.b32.cont [14/16] 0.0, 128
    %3874 = vxpose.xlu0.b32.cont [15/16] 0.0, 128
    %3875 = vxpose.xlu0.b32.end [16/16] 0.0, 128
    %v3876 = vpop.trf.xlu0
    %v3877 = vpop.trf.xlu0
    %v3878 = vpop.trf.xlu0
    %v3879 = vpop.trf.xlu0
    %v3880 = vpop.trf.xlu0
    %v3881 = vpop.trf.xlu0
    %v3882 = vpop.trf.xlu0
    %v3883 = vpop.trf.xlu0
    %v3884 = vpop.trf.xlu0
    %v3885 = vpop.trf.xlu0
    %v3886 = vpop.trf.xlu0
    %v3887 = vpop.trf.xlu0
    %v3888 = vpop.trf.xlu0
    %v3889 = vpop.trf.xlu0
    %v3890 = vpop.trf.xlu0
    %v3891 = vpop.trf.xlu0
    %3892 = vxpose.xlu0.b32.start [1/16] %v3617, 128
    %3893 = vxpose.xlu0.b32.cont [2/16] %v3620, 128
    %3894 = vxpose.xlu0.b32.cont [3/16] 0.0, 128
    %3895 = vxpose.xlu0.b32.cont [4/16] 0.0, 128
    %3896 = vxpose.xlu0.b32.cont [5/16] 0.0, 128
    %3897 = vxpose.xlu0.b32.cont [6/16] 0.0, 128
    %3898 = vxpose.xlu0.b32.cont [7/16] 0.0, 128
    %3899 = vxpose.xlu0.b32.cont [8/16] 0.0, 128
    %3900 = vxpose.xlu0.b32.cont [9/16] 0.0, 128
    %3901 = vxpose.xlu0.b32.cont [10/16] 0.0, 128
    %3902 = vxpose.xlu0.b32.cont [11/16] 0.0, 128
    %3903 = vxpose.xlu0.b32.cont [12/16] 0.0, 128
    %3904 = vxpose.xlu0.b32.cont [13/16] 0.0, 128
    %3905 = vxpose.xlu0.b32.cont [14/16] 0.0, 128
    %3906 = vxpose.xlu0.b32.cont [15/16] 0.0, 128
    %3907 = vxpose.xlu0.b32.end [16/16] 0.0, 128
    %v3908 = vpop.trf.xlu0
    %v3909 = vpop.trf.xlu0
    %v3910 = vpop.trf.xlu0
    %v3911 = vpop.trf.xlu0
    %v3912 = vpop.trf.xlu0
    %v3913 = vpop.trf.xlu0
    %v3914 = vpop.trf.xlu0
    %v3915 = vpop.trf.xlu0
    %v3916 = vpop.trf.xlu0
    %v3917 = vpop.trf.xlu0
    %v3918 = vpop.trf.xlu0
    %v3919 = vpop.trf.xlu0
    %v3920 = vpop.trf.xlu0
    %v3921 = vpop.trf.xlu0
    %v3922 = vpop.trf.xlu0
    %v3923 = vpop.trf.xlu0
    %3924 = vxpose.xlu0.b32.start [1/16] %v3664, 128
    %3925 = vxpose.xlu0.b32.cont [2/16] %v3667, 128
    %3926 = vxpose.xlu0.b32.cont [3/16] 0.0, 128
    %3927 = vxpose.xlu0.b32.cont [4/16] 0.0, 128
    %3928 = vxpose.xlu0.b32.cont [5/16] 0.0, 128
    %3929 = vxpose.xlu0.b32.cont [6/16] 0.0, 128
    %3930 = vxpose.xlu0.b32.cont [7/16] 0.0, 128
    %3931 = vxpose.xlu0.b32.cont [8/16] 0.0, 128
    %3932 = vxpose.xlu0.b32.cont [9/16] 0.0, 128
    %3933 = vxpose.xlu0.b32.cont [10/16] 0.0, 128
    %3934 = vxpose.xlu0.b32.cont [11/16] 0.0, 128
    %3935 = vxpose.xlu0.b32.cont [12/16] 0.0, 128
    %3936 = vxpose.xlu0.b32.cont [13/16] 0.0, 128
    %3937 = vxpose.xlu0.b32.cont [14/16] 0.0, 128
    %3938 = vxpose.xlu0.b32.cont [15/16] 0.0, 128
    %3939 = vxpose.xlu0.b32.end [16/16] 0.0, 128
    %v3940 = vpop.trf.xlu0
    %v3941 = vpop.trf.xlu0
    %v3942 = vpop.trf.xlu0
    %v3943 = vpop.trf.xlu0
    %v3944 = vpop.trf.xlu0
    %v3945 = vpop.trf.xlu0
    %v3946 = vpop.trf.xlu0
    %v3947 = vpop.trf.xlu0
    %v3948 = vpop.trf.xlu0
    %v3949 = vpop.trf.xlu0
    %v3950 = vpop.trf.xlu0
    %v3951 = vpop.trf.xlu0
    %v3952 = vpop.trf.xlu0
    %v3953 = vpop.trf.xlu0
    %v3954 = vpop.trf.xlu0
    %v3955 = vpop.trf.xlu0
    %3956 = vxpose.xlu0.b32.start [1/16] %v3711, 128
    %3957 = vxpose.xlu0.b32.cont [2/16] %v3714, 128
    %3958 = vxpose.xlu0.b32.cont [3/16] 0.0, 128
    %3959 = vxpose.xlu0.b32.cont [4/16] 0.0, 128
    %3960 = vxpose.xlu0.b32.cont [5/16] 0.0, 128
    %3961 = vxpose.xlu0.b32.cont [6/16] 0.0, 128
    %3962 = vxpose.xlu0.b32.cont [7/16] 0.0, 128
    %3963 = vxpose.xlu0.b32.cont [8/16] 0.0, 128
    %3964 = vxpose.xlu0.b32.cont [9/16] 0.0, 128
    %3965 = vxpose.xlu0.b32.cont [10/16] 0.0, 128
    %3966 = vxpose.xlu0.b32.cont [11/16] 0.0, 128
    %3967 = vxpose.xlu0.b32.cont [12/16] 0.0, 128
    %3968 = vxpose.xlu0.b32.cont [13/16] 0.0, 128
    %3969 = vxpose.xlu0.b32.cont [14/16] 0.0, 128
    %3970 = vxpose.xlu0.b32.cont [15/16] 0.0, 128
    %3971 = vxpose.xlu0.b32.end [16/16] 0.0, 128
    %v3972 = vpop.trf.xlu0
    %v3973 = vpop.trf.xlu0
    %v3974 = vpop.trf.xlu0
    %v3975 = vpop.trf.xlu0
    %v3976 = vpop.trf.xlu0
    %v3977 = vpop.trf.xlu0
    %v3978 = vpop.trf.xlu0
    %v3979 = vpop.trf.xlu0
    %v3980 = vpop.trf.xlu0
    %v3981 = vpop.trf.xlu0
    %v3982 = vpop.trf.xlu0
    %v3983 = vpop.trf.xlu0
    %v3984 = vpop.trf.xlu0
    %v3985 = vpop.trf.xlu0
    %v3986 = vpop.trf.xlu0
    %v3987 = vpop.trf.xlu0
    %3988 = vxpose.xlu0.b32.start [1/16] %v3758, 128
    %3989 = vxpose.xlu0.b32.cont [2/16] %v3761, 128
    %3990 = vxpose.xlu0.b32.cont [3/16] 0.0, 128
    %3991 = vxpose.xlu0.b32.cont [4/16] 0.0, 128
    %3992 = vxpose.xlu0.b32.cont [5/16] 0.0, 128
    %3993 = vxpose.xlu0.b32.cont [6/16] 0.0, 128
    %3994 = vxpose.xlu0.b32.cont [7/16] 0.0, 128
    %3995 = vxpose.xlu0.b32.cont [8/16] 0.0, 128
    %3996 = vxpose.xlu0.b32.cont [9/16] 0.0, 128
    %3997 = vxpose.xlu0.b32.cont [10/16] 0.0, 128
    %3998 = vxpose.xlu0.b32.cont [11/16] 0.0, 128
    %3999 = vxpose.xlu0.b32.cont [12/16] 0.0, 128
    %4000 = vxpose.xlu0.b32.cont [13/16] 0.0, 128
    %4001 = vxpose.xlu0.b32.cont [14/16] 0.0, 128
    %4002 = vxpose.xlu0.b32.cont [15/16] 0.0, 128
    %4003 = vxpose.xlu0.b32.end [16/16] 0.0, 128
    %v4004 = vpop.trf.xlu0
    %v4005 = vpop.trf.xlu0
    %v4006 = vpop.trf.xlu0
    %v4007 = vpop.trf.xlu0
    %v4008 = vpop.trf.xlu0
    %v4009 = vpop.trf.xlu0
    %v4010 = vpop.trf.xlu0
    %v4011 = vpop.trf.xlu0
    %v4012 = vpop.trf.xlu0
    %v4013 = vpop.trf.xlu0
    %v4014 = vpop.trf.xlu0
    %v4015 = vpop.trf.xlu0
    %v4016 = vpop.trf.xlu0
    %v4017 = vpop.trf.xlu0
    %v4018 = vpop.trf.xlu0
    %v4019 = vpop.trf.xlu0
    %4020 = vxpose.xlu0.b32.start [1/16] %v3780, 128
    %4021 = vxpose.xlu0.b32.cont [2/16] %v3812, 128
    %4022 = vxpose.xlu0.b32.cont [3/16] %v3844, 128
    %4023 = vxpose.xlu0.b32.cont [4/16] %v3876, 128
    %4024 = vxpose.xlu0.b32.cont [5/16] 0.0, 128
    %4025 = vxpose.xlu0.b32.cont [6/16] 0.0, 128
    %4026 = vxpose.xlu0.b32.cont [7/16] 0.0, 128
    %4027 = vxpose.xlu0.b32.cont [8/16] 0.0, 128
    %4028 = vxpose.xlu0.b32.cont [9/16] 0.0, 128
    %4029 = vxpose.xlu0.b32.cont [10/16] 0.0, 128
    %4030 = vxpose.xlu0.b32.cont [11/16] 0.0, 128
    %4031 = vxpose.xlu0.b32.cont [12/16] 0.0, 128
    %4032 = vxpose.xlu0.b32.cont [13/16] 0.0, 128
    %4033 = vxpose.xlu0.b32.cont [14/16] 0.0, 128
    %4034 = vxpose.xlu0.b32.cont [15/16] 0.0, 128
    %4035 = vxpose.xlu0.b32.end [16/16] 0.0, 128
    %v4036 = vpop.trf.xlu0
    %v4037 = vpop.trf.xlu0
    %v4038 = vpop.trf.xlu0
    %v4039 = vpop.trf.xlu0
    %v4040 = vpop.trf.xlu0
    %v4041 = vpop.trf.xlu0
    %v4042 = vpop.trf.xlu0
    %v4043 = vpop.trf.xlu0
    %v4044 = vpop.trf.xlu0
    %v4045 = vpop.trf.xlu0
    %v4046 = vpop.trf.xlu0
    %v4047 = vpop.trf.xlu0
    %v4048 = vpop.trf.xlu0
    %v4049 = vpop.trf.xlu0
    %v4050 = vpop.trf.xlu0
    %v4051 = vpop.trf.xlu0
    %4052 = vxpose.xlu0.b32.start [1/16] %v3908, 128
    %4053 = vxpose.xlu0.b32.cont [2/16] %v3940, 128
    %4054 = vxpose.xlu0.b32.cont [3/16] %v3972, 128
    %4055 = vxpose.xlu0.b32.cont [4/16] %v4004, 128
    %4056 = vxpose.xlu0.b32.cont [5/16] 0.0, 128
    %4057 = vxpose.xlu0.b32.cont [6/16] 0.0, 128
    %4058 = vxpose.xlu0.b32.cont [7/16] 0.0, 128
    %4059 = vxpose.xlu0.b32.cont [8/16] 0.0, 128
    %4060 = vxpose.xlu0.b32.cont [9/16] 0.0, 128
    %4061 = vxpose.xlu0.b32.cont [10/16] 0.0, 128
    %4062 = vxpose.xlu0.b32.cont [11/16] 0.0, 128
    %4063 = vxpose.xlu0.b32.cont [12/16] 0.0, 128
    %4064 = vxpose.xlu0.b32.cont [13/16] 0.0, 128
    %4065 = vxpose.xlu0.b32.cont [14/16] 0.0, 128
    %4066 = vxpose.xlu0.b32.cont [15/16] 0.0, 128
    %4067 = vxpose.xlu0.b32.end [16/16] 0.0, 128
    %v4068 = vpop.trf.xlu0
    %v4069 = vpop.trf.xlu0
    %v4070 = vpop.trf.xlu0
    %v4071 = vpop.trf.xlu0
    %v4072 = vpop.trf.xlu0
    %v4073 = vpop.trf.xlu0
    %v4074 = vpop.trf.xlu0
    %v4075 = vpop.trf.xlu0
    %v4076 = vpop.trf.xlu0
    %v4077 = vpop.trf.xlu0
    %v4078 = vpop.trf.xlu0
    %v4079 = vpop.trf.xlu0
    %v4080 = vpop.trf.xlu0
    %v4081 = vpop.trf.xlu0
    %v4082 = vpop.trf.xlu0
    %v4083 = vpop.trf.xlu0
    %s4084 = scalar_lea.vmem %s4, 16
    %v4085 = vld [vmem:[%s4084] sm:$0xf]
    %v4086 = vld [vmem:[%s4084 + $0x4] sm:$0xf]
    %v4087 = vld [vmem:[%s4084 + $0x8] sm:$0xf]
    %v4088 = vld [vmem:[%s4084 + $0xc] sm:$0xf]
    %v4089 = vpack.c.bf16 %v4037, %v4036
    %v4090 = vpack.c.bf16 %v4069, %v4068
    %v4091 = vlaneseq
    %v4092 = vshrl.u32 %v4091, 7
    %v4093 = vsub.s32 2, %v4092
    %v4094 = vrot.slane %v2295, %v4093
    %v4099 = vunpack.c.l.b16 %v4085
    %v4100 = vunpack.c.l.b16 %v4086
    %v4101 = vunpack.c.l.b16 %v4087
    %v4102 = vunpack.c.l.b16 %v4088
    %v4103 = vpack.c.b16 %v4100, %v4099
    %v4104 = vpack.c.b16 %v4102, %v4101
    %v4108 = vsel %vm154, %v4089, 0
    %v4111 = vsel %vm154, %v4090, 0
    %4113 = vmatprep.subr.bf16.mxu0 0
    %4114 = vmatpush1.bf16.msra.mxu0 %v4103
    %4115 = vmatprep.subr.bf16.mxu0 0
    %4116 = vmatpush1.bf16.msra.mxu0 %v4104
    %4117 = vmatprep.subr.bf16.mxu0 0
    %4118 = vmatpush1.bf16.msra.mxu0 0
    %4119 = vmatprep.subr.bf16.mxu0 0
    %4120 = vmatpush1.bf16.msra.mxu0 0
    %4121 = vmatprep.subr.bf16.mxu0 0
    %4122 = vmatpush1.bf16.msra.mxu0 0
    %4123 = vmatprep.subr.bf16.mxu0 0
    %4124 = vmatpush1.bf16.msra.mxu0 0
    %4125 = vmatprep.subr.bf16.mxu0 0
    %4126 = vmatpush1.bf16.msra.mxu0 0
    %4127 = vmatprep.subr.bf16.mxu0 0
    %4128 = vmatpush1.bf16.msra.mxu0 0
    %4129 = vmatprep.subr.bf16.mxu0 0
    %4130 = vmatpush1.bf16.msra.mxu0 0
    %4131 = vmatprep.subr.bf16.mxu0 0
    %4132 = vmatpush1.bf16.msra.mxu0 0
    %4133 = vmatprep.subr.bf16.mxu0 0
    %4134 = vmatpush1.bf16.msra.mxu0 0
    %4135 = vmatprep.subr.bf16.mxu0 0
    %4136 = vmatpush1.bf16.msra.mxu0 0
    %4137 = vmatprep.subr.bf16.mxu0 0
    %4138 = vmatpush1.bf16.msra.mxu0 0
    %4139 = vmatprep.subr.bf16.mxu0 0
    %4140 = vmatpush1.bf16.msra.mxu0 0
    %4141 = vmatprep.subr.bf16.mxu0 0
    %4142 = vmatpush1.bf16.msra.mxu0 0
    %4143 = vmatprep.subr.bf16.mxu0 0
    %4144 = vmatpush1.bf16.msra.mxu0 0
    %4145 = vmatprep.mubr.bf16.mxu0 0
    %4146 = vmatmul.mubr.bf16.gmra.mrb[0].mxu0 %v4108
    %v4147 = vpop.f32.mrb[0].mxu0
    %v4148 = vadd.f32 %v4094, %v4147
    %v4149 = vpop.f32.mrb[0].mxu0
    %v4150 = vpop.f32.mrb[0].mxu0
    %v4151 = vadd.f32 %v4094, %v4150
    %v4152 = vpop.f32.mrb[0].mxu0
    %4153 = vmatprep.mubr.bf16.mxu0 0
    %4154 = vmatmul.mubr.bf16.gmra.mrb[0].mxu0 %v4111
    %v4155 = vpop.f32.mrb[0].mxu0
    %v4156 = vadd.f32 %v4094, %v4155
    %v4157 = vpop.f32.mrb[0].mxu0
    %v4158 = vpop.f32.mrb[0].mxu0
    %v4159 = vadd.f32 %v4094, %v4158
    %v4160 = vpop.f32.mrb[0].mxu0
    %4161 = vdwg.mxu0
    %v4162 = vadd.f32 %v2286, %v4148
    %v4163 = vadd.f32 %v2287, %v4151
    %v4164 = vadd.f32 %v2288, %v4156
    %v4165 = vadd.f32 %v2289, %v4159
    %v4166 = vsel %vm154, %v4162, 0.0
    %4167 = vadd.xlane.f32.xlu0 %v4166
    %v4168 = vpop.xlane.xlu0 %4167
    %v4169 = vsel %vm154, %v4163, 0.0
    %4170 = vadd.xlane.f32.xlu0 %v4169
    %v4171 = vpop.xlane.xlu0 %4170
    %v4172 = vsel %vm154, %v4164, 0.0
    %4173 = vadd.xlane.f32.xlu0 %v4172
    %v4174 = vpop.xlane.xlu0 %4173
    %v4175 = vsel %vm154, %v4165, 0.0
    %4176 = vadd.xlane.f32.xlu0 %v4175
    %v4177 = vpop.xlane.xlu0 %4176
    %v4178 = vmul.f32 %v4168, %v167
    %v4179 = vmul.f32 %v4171, %v167
    %v4180 = vmul.f32 %v4174, %v167
    %v4181 = vmul.f32 %v4177, %v167
    %v4182 = vsub.f32 %v4162, %v4178
    %v4183 = vsub.f32 %v4163, %v4179
    %v4184 = vsub.f32 %v4164, %v4180
    %v4185 = vsub.f32 %v4165, %v4181
    %v4186 = vmul.f32 %v4182, %v4182
    %v4187 = vmul.f32 %v4183, %v4183
    %v4188 = vmul.f32 %v4184, %v4184
    %v4189 = vmul.f32 %v4185, %v4185
    %v4190 = vsel %vm154, %v4186, 0.0
    %4191 = vadd.xlane.f32.xlu0 %v4190
    %v4192 = vpop.xlane.xlu0 %4191
    %v4193 = vsel %vm154, %v4187, 0.0
    %4194 = vadd.xlane.f32.xlu0 %v4193
    %v4195 = vpop.xlane.xlu0 %4194
    %v4196 = vsel %vm154, %v4188, 0.0
    %4197 = vadd.xlane.f32.xlu0 %v4196
    %v4198 = vpop.xlane.xlu0 %4197
    %v4199 = vsel %vm154, %v4189, 0.0
    %4200 = vadd.xlane.f32.xlu0 %v4199
    %v4201 = vpop.xlane.xlu0 %4200
    %v4202 = vmul.f32 %v4192, %v167
    %v4203 = vmul.f32 %v4195, %v167
    %v4204 = vmul.f32 %v4198, %v167
    %v4205 = vmul.f32 %v4201, %v167
    %v4206 = vadd.f32 %v4202, 1e-05
    %v4207 = vadd.f32 %v4203, 1e-05
    %v4208 = vadd.f32 %v4204, 1e-05
    %v4209 = vadd.f32 %v4205, 1e-05
    %v4210 = vrsqrt.pop %v4206
    %v4211 = vrsqrt.pop %v4207
    %v4212 = vrsqrt.pop %v4208
    %v4213 = vrsqrt.pop %v4209
    %v4214 = vmul.f32 %v4182, %v4210
    %v4215 = vmul.f32 %v4183, %v4211
    %v4216 = vmul.f32 %v4184, %v4212
    %v4217 = vmul.f32 %v4185, %v4213
    %v4218 = vlaneseq
    %v4219 = vshrl.u32 %v4218, 7
    %v4220 = vsub.s32 3, %v4219
    %v4221 = vrot.slane %v2295, %v4220
    %v4222 = vmul.f32 %v4214, %v4221
    %v4223 = vmul.f32 %v4215, %v4221
    %v4224 = vmul.f32 %v4216, %v4221
    %v4225 = vmul.f32 %v4217, %v4221
    %v4226 = vlaneseq
    %v4227 = vshrl.u32 %v4226, 7
    %v4228 = vsub.s32 4, %v4227
    %v4229 = vrot.slane %v2295, %v4228
    %v4230 = vadd.f32 %v4222, %v4229
    %v4231 = vadd.f32 %v4223, %v4229
    %v4232 = vadd.f32 %v4224, %v4229
    %v4233 = vadd.f32 %v4225, %v4229
    %s4234 = scalar_lea.vmem [#allocation2], 16
    %v4235 = vld [vmem:[%s4234] sm:$0xf]
    %v4236 = vld [vmem:[%s4234 + $0x4] sm:$0xf]
    %v4237 = vld [vmem:[%s4234 + $0x8] sm:$0xf]
    %v4238 = vld [vmem:[%s4234 + $0xc] sm:$0xf]
    %v4239 = vpack.c.bf16 %v4231, %v4230
    %v4240 = vpack.c.bf16 %v4233, %v4232
    %v4242 = vlaneseq
    %v4243 = vshrl.u32 %v4242, 7
    %v4244 = vsub.s32 0, %v4243
    %v4245 = vrot.slane %v2297, %v4244
    %v4251 = vunpack.c.l.b16 %v4235
    %v4252 = vunpack.c.l.b16 %v4236
    %v4253 = vunpack.c.l.b16 %v4237
    %v4254 = vunpack.c.l.b16 %v4238
    %v4255 = vpack.c.b16 %v4252, %v4251
    %v4256 = vpack.c.b16 %v4254, %v4253
    %v4260 = vsel %vm154, %v4239, 0
    %v4263 = vsel %vm154, %v4240, 0
    %4265 = vmatprep.subr.bf16.mxu0 0
    %4266 = vmatpush1.bf16.msra.mxu0 %v4255
    %4267 = vmatprep.subr.bf16.mxu0 0
    %4268 = vmatpush1.bf16.msra.mxu0 %v4256
    %4269 = vmatprep.subr.bf16.mxu0 0
    %4270 = vmatpush1.bf16.msra.mxu0 0
    %4271 = vmatprep.subr.bf16.mxu0 0
    %4272 = vmatpush1.bf16.msra.mxu0 0
    %4273 = vmatprep.subr.bf16.mxu0 0
    %4274 = vmatpush1.bf16.msra.mxu0 0
    %4275 = vmatprep.subr.bf16.mxu0 0
    %4276 = vmatpush1.bf16.msra.mxu0 0
    %4277 = vmatprep.subr.bf16.mxu0 0
    %4278 = vmatpush1.bf16.msra.mxu0 0
    %4279 = vmatprep.subr.bf16.mxu0 0
    %4280 = vmatpush1.bf16.msra.mxu0 0
    %4281 = vmatprep.subr.bf16.mxu0 0
    %4282 = vmatpush1.bf16.msra.mxu0 0
    %4283 = vmatprep.subr.bf16.mxu0 0
    %4284 = vmatpush1.bf16.msra.mxu0 0
    %4285 = vmatprep.subr.bf16.mxu0 0
    %4286 = vmatpush1.bf16.msra.mxu0 0
    %4287 = vmatprep.subr.bf16.mxu0 0
    %4288 = vmatpush1.bf16.msra.mxu0 0
    %4289 = vmatprep.subr.bf16.mxu0 0
    %4290 = vmatpush1.bf16.msra.mxu0 0
    %4291 = vmatprep.subr.bf16.mxu0 0
    %4292 = vmatpush1.bf16.msra.mxu0 0
    %4293 = vmatprep.subr.bf16.mxu0 0
    %4294 = vmatpush1.bf16.msra.mxu0 0
    %4295 = vmatprep.subr.bf16.mxu0 0
    %4296 = vmatpush1.bf16.msra.mxu0 0
    %4297 = vmatprep.mubr.bf16.mxu0 0
    %4298 = vmatmul.mubr.bf16.gmra.mrb[0].mxu0 %v4260
    %v4299 = vpop.f32.mrb[0].mxu0
    %v4300 = vadd.f32 %v4245, %v4299
    %v4301 = vpop.f32.mrb[0].mxu0
    %v4302 = vpop.f32.mrb[0].mxu0
    %v4303 = vadd.f32 %v4245, %v4302
    %v4304 = vpop.f32.mrb[0].mxu0
    %4305 = vmatprep.mubr.bf16.mxu0 0
    %4306 = vmatmul.mubr.bf16.gmra.mrb[0].mxu0 %v4263
    %v4307 = vpop.f32.mrb[0].mxu0
    %v4308 = vadd.f32 %v4245, %v4307
    %v4309 = vpop.f32.mrb[0].mxu0
    %v4310 = vpop.f32.mrb[0].mxu0
    %v4311 = vadd.f32 %v4245, %v4310
    %v4312 = vpop.f32.mrb[0].mxu0
    %4313 = vdwg.mxu0
    %v4314 = vmul.f32 %v4300, 0.5
    %v4315 = vmul.f32 %v4303, 0.5
    %v4316 = vmul.f32 %v4308, 0.5
    %v4317 = vmul.f32 %v4311, 0.5
    %v4318 = vmul.f32 %v4300, %v2176
    %v4319 = vmul.f32 %v4303, %v2176
    %v4320 = vmul.f32 %v4308, %v2176
    %v4321 = vmul.f32 %v4311, %v2176
    %v4322 = verf.f32.pop %v4318
    %v4323 = verf.f32.pop %v4319
    %v4324 = verf.f32.pop %v4320
    %v4325 = verf.f32.pop %v4321
    %v4326 = vadd.f32 %v4322, 1.0
    %v4327 = vadd.f32 %v4323, 1.0
    %v4328 = vadd.f32 %v4324, 1.0
    %v4329 = vadd.f32 %v4325, 1.0
    %v4330 = vmul.f32 %v4314, %v4326
    %v4331 = vmul.f32 %v4315, %v4327
    %v4332 = vmul.f32 %v4316, %v4328
    %v4333 = vmul.f32 %v4317, %v4329
    %s4334 = scalar_lea.vmem %s6, 32
    %v4335 = vld [vmem:[%s4334] sm:$0xf]
    %v4336 = vld [vmem:[%s4334 + $0x4] sm:$0xf]
    %v4337 = vld [vmem:[%s4334 + $0x8] sm:$0xf]
    %v4338 = vld [vmem:[%s4334 + $0xc] sm:$0xf]
    %v4339 = vld [vmem:[%s4334 + $0x10] sm:$0xf]
    %v4340 = vld [vmem:[%s4334 + $0x14] sm:$0xf]
    %v4341 = vld [vmem:[%s4334 + $0x18] sm:$0xf]
    %v4342 = vld [vmem:[%s4334 + $0x1c] sm:$0xf]
    %v4343 = vpack.c.bf16 %v4331, %v4330
    %v4344 = vpack.c.bf16 %v4333, %v4332
    %v4345 = vlaneseq
    %v4346 = vshrl.u32 %v4345, 7
    %v4347 = vsub.s32 5, %v4346
    %v4348 = vrot.slane %v2295, %v4347
    %v4357 = vunpack.c.l.b16 %v4335
    %v4358 = vunpack.c.l.b16 %v4336
    %v4359 = vunpack.c.l.b16 %v4337
    %v4360 = vunpack.c.l.b16 %v4338
    %v4361 = vunpack.c.l.b16 %v4339
    %v4362 = vunpack.c.l.b16 %v4340
    %v4363 = vunpack.c.l.b16 %v4341
    %v4364 = vunpack.c.l.b16 %v4342
    %v4365 = vpack.c.b16 %v4358, %v4357
    %v4366 = vpack.c.b16 %v4360, %v4359
    %v4367 = vpack.c.b16 %v4362, %v4361
    %v4368 = vpack.c.b16 %v4364, %v4363
    %v4374 = vsel %vm96, %v4343, 0
    %v4377 = vsel %vm96, %v4344, 0
    %4379 = vmatprep.subr.bf16.mxu0 0
    %4380 = vmatpush1.bf16.msra.mxu0 %v4365
    %4381 = vmatprep.subr.bf16.mxu0 0
    %4382 = vmatpush1.bf16.msra.mxu0 %v4366
    %4383 = vmatprep.subr.bf16.mxu0 0
    %4384 = vmatpush1.bf16.msra.mxu0 %v4367
    %4385 = vmatprep.subr.bf16.mxu0 0
    %4386 = vmatpush1.bf16.msra.mxu0 %v4368
    %4387 = vmatprep.subr.bf16.mxu0 0
    %4388 = vmatpush1.bf16.msra.mxu0 0
    %4389 = vmatprep.subr.bf16.mxu0 0
    %4390 = vmatpush1.bf16.msra.mxu0 0
    %4391 = vmatprep.subr.bf16.mxu0 0
    %4392 = vmatpush1.bf16.msra.mxu0 0
    %4393 = vmatprep.subr.bf16.mxu0 0
    %4394 = vmatpush1.bf16.msra.mxu0 0
    %4395 = vmatprep.subr.bf16.mxu0 0
    %4396 = vmatpush1.bf16.msra.mxu0 0
    %4397 = vmatprep.subr.bf16.mxu0 0
    %4398 = vmatpush1.bf16.msra.mxu0 0
    %4399 = vmatprep.subr.bf16.mxu0 0
    %4400 = vmatpush1.bf16.msra.mxu0 0
    %4401 = vmatprep.subr.bf16.mxu0 0
    %4402 = vmatpush1.bf16.msra.mxu0 0
    %4403 = vmatprep.subr.bf16.mxu0 0
    %4404 = vmatpush1.bf16.msra.mxu0 0
    %4405 = vmatprep.subr.bf16.mxu0 0
    %4406 = vmatpush1.bf16.msra.mxu0 0
    %4407 = vmatprep.subr.bf16.mxu0 0
    %4408 = vmatpush1.bf16.msra.mxu0 0
    %4409 = vmatprep.subr.bf16.mxu0 0
    %4410 = vmatpush1.bf16.msra.mxu0 0
    %4411 = vmatprep.mubr.bf16.mxu0 0
    %4412 = vmatmul.mubr.bf16.gmra.mrb[0].mxu0 %v4374
    %v4413 = vpop.f32.mrb[0].mxu0
    %v4414 = vadd.f32 %v4348, %v4413
    %v4415 = vpop.f32.mrb[0].mxu0
    %v4416 = vpop.f32.mrb[0].mxu0
    %v4417 = vadd.f32 %v4348, %v4416
    %v4418 = vpop.f32.mrb[0].mxu0
    %4419 = vmatprep.mubr.bf16.mxu0 0
    %4420 = vmatmul.mubr.bf16.gmra.mrb[0].mxu0 %v4377
    %v4421 = vpop.f32.mrb[0].mxu0
    %v4422 = vadd.f32 %v4348, %v4421
    %v4423 = vpop.f32.mrb[0].mxu0
    %v4424 = vpop.f32.mrb[0].mxu0
    %v4425 = vadd.f32 %v4348, %v4424
    %v4426 = vpop.f32.mrb[0].mxu0
    %4427 = vdwg.mxu0
    %v4428 = vadd.f32 %v4162, %v4414
    %v4429 = vadd.f32 %v4163, %v4417
    %v4430 = vadd.f32 %v4164, %v4422
    %v4431 = vadd.f32 %v4165, %v4425
    %s4432 = scalar_lea.vmem [#allocation5], 32
    %4433 = vst.msk [vmem:[%s4432] sm:$0xff] %vm154, %v4428
    %4434 = vst.msk [vmem:[%s4432 + $0x8] sm:$0xff] %vm154, %v4429
    %4435 = vst.msk [vmem:[%s4432 + $0x10] sm:$0xff] %vm154, %v4430
    %4436 = vst.msk [vmem:[%s4432 + $0x18] sm:$0xff] %vm154, %v4431
    %v4437 = vld [vmem:[%s9] sm:$0x1]
    %v4438 = vld [vmem:[%s9 + $0x1] sm:$0x1]
    %v4439 = vsel %vm154, %v4428, 0.0
    %4440 = vadd.xlane.f32.xlu0 %v4439
    %v4441 = vpop.xlane.xlu0 %4440
    %v4442 = vsel %vm154, %v4429, 0.0
    %4443 = vadd.xlane.f32.xlu0 %v4442
    %v4444 = vpop.xlane.xlu0 %4443
    %v4445 = vsel %vm154, %v4430, 0.0
    %4446 = vadd.xlane.f32.xlu0 %v4445
    %v4447 = vpop.xlane.xlu0 %4446
    %v4448 = vsel %vm154, %v4431, 0.0
    %4449 = vadd.xlane.f32.xlu0 %v4448
    %v4450 = vpop.xlane.xlu0 %4449
    %v4451 = vmul.f32 %v4441, %v167
    %v4452 = vmul.f32 %v4444, %v167
    %v4453 = vmul.f32 %v4447, %v167
    %v4454 = vmul.f32 %v4450, %v167
    %v4455 = vsub.f32 %v4428, %v4451
    %v4456 = vsub.f32 %v4429, %v4452
    %v4457 = vsub.f32 %v4430, %v4453
    %v4458 = vsub.f32 %v4431, %v4454
    %v4459 = vmul.f32 %v4455, %v4455
    %v4460 = vmul.f32 %v4456, %v4456
    %v4461 = vmul.f32 %v4457, %v4457
    %v4462 = vmul.f32 %v4458, %v4458
    %v4463 = vsel %vm154, %v4459, 0.0
    %4464 = vadd.xlane.f32.xlu0 %v4463
    %v4465 = vpop.xlane.xlu0 %4464
    %v4466 = vsel %vm154, %v4460, 0.0
    %4467 = vadd.xlane.f32.xlu0 %v4466
    %v4468 = vpop.xlane.xlu0 %4467
    %v4469 = vsel %vm154, %v4461, 0.0
    %4470 = vadd.xlane.f32.xlu0 %v4469
    %v4471 = vpop.xlane.xlu0 %4470
    %v4472 = vsel %vm154, %v4462, 0.0
    %4473 = vadd.xlane.f32.xlu0 %v4472
    %v4474 = vpop.xlane.xlu0 %4473
    %v4475 = vmul.f32 %v4465, %v167
    %v4476 = vmul.f32 %v4468, %v167
    %v4477 = vmul.f32 %v4471, %v167
    %v4478 = vmul.f32 %v4474, %v167
    %v4479 = vadd.f32 %v4475, 1e-05
    %v4480 = vadd.f32 %v4476, 1e-05
    %v4481 = vadd.f32 %v4477, 1e-05
    %v4482 = vadd.f32 %v4478, 1e-05
    %v4483 = vrsqrt.pop %v4479
    %v4484 = vrsqrt.pop %v4480
    %v4485 = vrsqrt.pop %v4481
    %v4486 = vrsqrt.pop %v4482
    %v4487 = vmul.f32 %v4455, %v4483
    %v4488 = vmul.f32 %v4456, %v4484
    %v4489 = vmul.f32 %v4457, %v4485
    %v4490 = vmul.f32 %v4458, %v4486
    %v4491 = vlaneseq
    %v4492 = vshrl.u32 %v4491, 7
    %v4493 = vsub.s32 0, %v4492
    %v4494 = vrot.slane %v4437, %v4493
    %v4495 = vmul.f32 %v4487, %v4494
    %v4496 = vmul.f32 %v4488, %v4494
    %v4497 = vmul.f32 %v4489, %v4494
    %v4498 = vmul.f32 %v4490, %v4494
    %v4499 = vlaneseq
    %v4500 = vshrl.u32 %v4499, 7
    %v4501 = vsub.s32 0, %v4500
    %v4502 = vrot.slane %v4438, %v4501
    %v4503 = vadd.f32 %v4495, %v4502
    %v4504 = vadd.f32 %v4496, %v4502
    %v4505 = vadd.f32 %v4497, %v4502
    %v4506 = vadd.f32 %v4498, %v4502
    %4507 = vst.msk [vmem:[#allocation6] sm:$0xff] %vm154, %v4503
    %4508 = vst.msk [vmem:[#allocation6 + $0x8] sm:$0xff] %vm154, %v4504
    %4509 = vst.msk [vmem:[#allocation6 + $0x10] sm:$0xff] %vm154, %v4505
    %4510 = vst.msk [vmem:[#allocation6 + $0x18] sm:$0xff] %vm154, %v4506
    // Predicated region
    $region46: #{tpu_custom_call.1} parent=1 // pred_check
      _
    $region47: #{tpu_custom_call.1} parent=1 // pred_check_branch
      %4512 = sbr.rel (0) target = $region49
    $region48: #{tpu_custom_call.1} parent=1 // pred_region
      %s4514 = ssub.s32 1024, 1024
      %4515 = vsyncadd [#allocation4], %s4514
      %s4516 = sshll.u32 [#allocation5], 4
      %s4517 = int_to_ptr.vmem [resolvable:$true] %s4516
      %4522 = dma.vmem_to_hbm [thread:$0]  %s4517, 1024, %s10, [#allocation4], 128, 128, 8
    $region49: #{tpu_custom_call.1} parent=1 // pred_fallthru
      _
    // Predicated region
    $region50: #{tpu_custom_call.1} parent=1 // pred_check
      _
    $region51: #{tpu_custom_call.1} parent=1 // pred_check_branch
      %4524 = sbr.rel (0) target = $region53
    $region52: #{tpu_custom_call.1} parent=1 // pred_region
      %s4526 = ssub.s32 512, 512
      %4527 = vsyncadd [#allocation7], %s4526
      %s4528 = sshll.u32 [#allocation6], 4
      %s4529 = int_to_ptr.vmem [resolvable:$true] %s4528
      %4534 = dma.vmem_to_hbm [thread:$0]  %s4529, 512, %s11, [#allocation7], 128, 128, 8
    $region53: #{tpu_custom_call.1} parent=1 // pred_fallthru
      _
    // Predicated region
    $region54: #{tpu_custom_call.1} parent=1 // pred_check
      _
    $region55: #{tpu_custom_call.1} parent=1 // pred_check_branch
      %4536 = sbr.rel (0) target = $region57
    $region56: #{tpu_custom_call.1} parent=1 // pred_region
      %4537 = dma.done [#allocation4], 1024
    $region57: #{tpu_custom_call.1} parent=1 // pred_fallthru
      _
    // Predicated region
    $region58: #{tpu_custom_call.1} parent=1 // pred_check
      _
    $region59: #{tpu_custom_call.1} parent=1 // pred_check_branch
      %4539 = sbr.rel (0) target = $region61
    $region60: #{tpu_custom_call.1} parent=1 // pred_region
      %4540 = dma.done [#allocation7], 512
    $region61: #{tpu_custom_call.1} parent=1 // pred_fallthru
      _
    %4541 = vsyncpa [#allocation3], 1
    %4542 = vsyncpa [#allocation4], 1
    %4543 = vsyncpa [#allocation7], 1

</llo_original>
